<compile_context>
chip_gen: v6e
topology: v6e:2x2x1
jax: 0.10.0
libtpu: 0.0.40
codegen_flags: <defaults>
</compile_context>

<pallas_src>
import functools

import jax
import jax.numpy as jnp
from jax import lax
from jax.experimental import pallas as pl
from jax.experimental.pallas import tpu as pltpu

VTH = 1.0   # vth=1 in the module
DT = 1.0    # dt=1 in the module


# ----------------------------------------------------------------------------
# Pallas kernel: TT timesteps of layers 1-4 per grid step (layer-1 linear hoisted out,
# dense_4 applied once to the accumulated spike rate at the last time chunk).
# Grid = (batch_blocks, time_chunks); state carried across the time axis in VMEM.
# ----------------------------------------------------------------------------
def _snn_recurrent_kernel(z1_ref,
                          be1, ob1, al1, oa1,
                          w2, b2, be2, ob2, al2, oa2,
                          w3, b3, be3, ob3, al3, oa3,
                          w4, b4,
                          m1_0, m2_0, m3_0,
                          out_ref,
                          mem1, din1, mem2, din2, mem3, din3, sp3_sum):
    tc = pl.program_id(1)

    @pl.when(tc == 0)
    def _init():
        # set_neuron_state: mem ~ U[0,1) (passed in, deterministic), d_input = 0.
        # spike = 0 is implicit: it is recomputed as (mem > vth) and mem_init < vth.
        mem1[...] = m1_0[...]
        mem2[...] = m2_0[...]
        mem3[...] = m3_0[...]
        din1[...] = jnp.zeros_like(din1)
        din2[...] = jnp.zeros_like(din2)
        din3[...] = jnp.zeros_like(din3)
        sp3_sum[...] = jnp.zeros_like(sp3_sum)
        out_ref[...] = jnp.zeros_like(out_ref)

    # static sizes derived from ref shapes
    h1 = al1.shape[-1]
    h2 = al2.shape[-1]
    h3 = al3.shape[-1]
    n_branch = be1.shape[-1] // h1
    tt_steps = z1_ref.shape[0]          # time-chunk length (static)

    # Hoist constant loads out of the unrolled time loop.
    be1v, ob1v, al1v, oa1v = be1[...], ob1[...], al1[...], oa1[...]
    be2v, ob2v, al2v, oa2v = be2[...], ob2[...], al2[...], oa2[...]
    be3v, ob3v, al3v, oa3v = be3[...], ob3[...], al3[...], oa3[...]
    w2v, b2v = w2[...], b2[...]
    w3v, b3v = w3[...], b3[...]

    def branch_sum(d, h):
        # d is (B, branch*h), branch-major: sum of `branch` static lane slices
        # (VPU adds, no MXU / selection matrix needed).
        acc = d[:, 0:h]
        for j in range(1, n_branch):
            acc = acc + d[:, j * h:(j + 1) * h]
        return acc

    def neuron_update(z, be, ob, al, oa, mem_ref, d_ref, h, out_dtype):
        mem_prev = mem_ref[...]
        # previous-step spike, recomputed from the stored membrane (no spike scratch).
        spk_prev = (mem_prev > VTH).astype(jnp.float32)
        # per-branch leaky integration with beta = sigmoid(tau_n)
        d_new = be * d_ref[...] + ob * z
        d_ref[...] = d_new
        l_in = branch_sum(d_new, h)
        # soft-reset LIF membrane with alpha = sigmoid(tau_m)
        mem = (mem_prev - spk_prev * VTH) * al + oa * DT * l_in
        mem_ref[...] = mem
        return (mem > VTH).astype(out_dtype)

    def step(tt, carry):
        # layer 1: its masked linear (z1 = x_t @ W1 + b1) was hoisted out of the loop.
        z1_t = z1_ref[tt].astype(jnp.float32)
        sp1 = neuron_update(z1_t, be1v, ob1v, al1v, oa1v, mem1, din1, h1, w2v.dtype)

        z2 = jnp.dot(sp1, w2v, preferred_element_type=jnp.float32) + b2v
        sp2 = neuron_update(z2, be2v, ob2v, al2v, oa2v, mem2, din2, h2, w3v.dtype)

        z3 = jnp.dot(sp2, w3v, preferred_element_type=jnp.float32) + b3v
        sp3 = neuron_update(z3, be3v, ob3v, al3v, oa3v, mem3, din3, h3, jnp.float32)

        # spike-rate accumulation; dense_4 is applied once at the end.
        sp3_sum[...] += sp3
        return carry

    lax.fori_loop(0, tt_steps, step, 0, unroll=True)

    @pl.when(tc == pl.num_programs(1) - 1)
    def _final():
        # dense_4 on the accumulated rate (1/T already folded into w4, b4 added once).
        out_ref[...] = jnp.dot(sp3_sum[...].astype(w4.dtype), w4[...],
                               preferred_element_type=jnp.float32) + b4[...]


# ----------------------------------------------------------------------------
# Parameter construction (synthetic, deterministic). Masks folded into weights,
# sigmoid(tau) precomputed, everything stored BRANCH-MAJOR so branch sums become
# lane slices. Only arrays are stored (no python ints in the jitted pytree).
# ----------------------------------------------------------------------------
def _make_branch_mask(key, out_dim, branch, isz):
    """mask[i, j, k] = 1 iff input k is assigned to branch j of neuron i."""
    chunk = isz // branch
    keys = jax.random.split(key, out_dim)
    perms = jax.vmap(lambda k: jax.random.permutation(k, isz))(keys)      # (out_dim, isz)
    ranks = jnp.arange(isz)
    branch_ids = jnp.minimum(ranks // chunk, branch - 1)                  # (isz,)
    onehot = jax.nn.one_hot(branch_ids, branch, dtype=jnp.float32).T      # (branch, isz)

    def per_neuron(perm):
        m = jnp.zeros((branch, isz), jnp.float32)
        return m.at[:, perm].set(onehot)

    return jax.vmap(per_neuron)(perms)                                    # (out_dim, branch, isz)


def _init_dendritic_layer(key, in_dim, out_dim, branch):
    pad = (-in_dim) % branch
    isz = in_dim + pad
    k_w, k_b, k_tm, k_tn, k_m = jax.random.split(key, 5)
    bound = 1.0 / jnp.sqrt(jnp.float32(isz))
    w = jax.random.uniform(k_w, (out_dim, branch, isz), jnp.float32, -bound, bound)
    b = jax.random.uniform(k_b, (out_dim, branch), jnp.float32, -bound, bound)
    tau_m = jax.random.uniform(k_tm, (out_dim,), jnp.float32, 0.0, 4.0)       # low=0, high=4
    tau_n = jax.random.uniform(k_tn, (out_dim, branch), jnp.float32, 0.0, 4.0)
    mask = _make_branch_mask(k_m, out_dim, branch, isz)                        # (out, branch, isz)

    # branch-major fused output dim: column = j*out_dim + i
    w_eff = jnp.transpose(w * mask, (2, 1, 0)).reshape(isz, branch * out_dim)
    b_bm = b.T.reshape(1, branch * out_dim)
    beta = jax.nn.sigmoid(tau_n).T.reshape(1, branch * out_dim)
    alpha = jax.nn.sigmoid(tau_m).reshape(1, out_dim)
    return dict(w=w_eff, b=b_bm,
                beta=beta, omb=1.0 - beta,
                alpha=alpha, oma=1.0 - alpha)


def init_params(key, in_dim, h1, h2, h3, n_out, branch):
    assert h1 % branch == 0 and h2 % branch == 0, "hidden dims must be divisible by branch"
    k1, k2, k3, k4 = jax.random.split(key, 4)
    l1 = _init_dendritic_layer(k1, in_dim, h1, branch)
    l2 = _init_dendritic_layer(k2, h1, h2, branch)
    l3 = _init_dendritic_layer(k3, h2, h3, branch)
    kw, kb = jax.random.split(k4)
    bound = 1.0 / jnp.sqrt(jnp.float32(h3))
    w4 = jax.random.uniform(kw, (n_out, h3), jnp.float32, -bound, bound).T     # (h3, n_out)
    b4 = jax.random.uniform(kb, (n_out,), jnp.float32, -bound, bound).reshape(1, -1)
    return dict(l1=l1, l2=l2, l3=l3, w4=w4, b4=b4)


def _pick_time_block(T, max_tt):
    """Largest divisor of T that is <= max_tt (keeps the grid math exact, no masking)."""
    for tt in range(min(T, max_tt), 0, -1):
        if T % tt == 0:
            return tt
    return 1


# ----------------------------------------------------------------------------
# Wrapper: layout plumbing, hoisted layer-1 matmul, pallas_call
# ----------------------------------------------------------------------------
@functools.partial(jax.jit, static_argnames=("n_out", "batch_block", "time_block"))
def dense_test_4layer_forward(dvs_inp, params, mem_inits, n_out,
                              batch_block=None, time_block=None):
    B, T, C, W, H = dvs_inp.shape
    D = C * W * H
    l1, l2, l3 = params["l1"], params["l2"], params["l3"]

    # static sizes derived from (static) array shapes, never from pytree leaves
    h1 = l1["alpha"].shape[-1]
    h2 = l2["alpha"].shape[-1]
    h3 = l3["alpha"].shape[-1]
    br = l1["beta"].shape[-1] // h1
    D_pad = l1["w"].shape[0]
    pad = D_pad - D

    # Per-generation VMEM headroom: ~75% of physical (48 MiB on v7x, 96 MiB v5e/v6e).
    try:
        vmem_cap = int(pltpu.get_tpu_info().vmem_capacity_bytes)
    except Exception:
        vmem_cap = 64 * 1024 * 1024
    vmem_limit = int(0.75 * vmem_cap)

    # batch_block: keep n_bb >= 2 when possible so the "parallel" bb axis can feed a
    # second TensorCore (v7x); cap at 128 for very large batches (raise to 256 on
    # v6e/v7x if B and VMEM allow).
    if batch_block is None:
        if B >= 256:
            batch_block = 128
        elif B >= 16 and (B // 2) % 8 == 0:
            batch_block = B // 2
        else:
            batch_block = B
    assert B % batch_block == 0
    n_bb = B // batch_block

    # time chunking: amortize per-grid-step overhead; smaller chunk on small-VMEM chips.
    if time_block is None:
        time_block = _pick_time_block(T, 8 if vmem_cap <= 64 * 1024 * 1024 else 16)
    assert T % time_block == 0
    n_tc = T // time_block

    # (B,T,C,W,H) -> (T,B,D) matching dvs_inp.permute([1,0,2,3,4])[i].reshape(B,-1)
    x = jnp.transpose(dvs_inp, (1, 0, 2, 3, 4)).reshape(T, B, D).astype(jnp.float32)
    if pad:
        x = jnp.concatenate([x, jnp.zeros((T, B, pad), jnp.float32)], axis=-1)

    # --- hoisted layer-1 masked linear: one big bf16 matmul over all T*B rows.
    #     The per-step stream into the kernel is bf16 (halves HBM traffic + VMEM).
    w1 = l1["w"].astype(jnp.bfloat16)
    z1 = jnp.dot(x.reshape(T * B, D_pad).astype(jnp.bfloat16), w1,
                 preferred_element_type=jnp.float32) + l1["b"]
    z1 = z1.reshape(T, B, br * h1).astype(jnp.bfloat16)

    # --- output layer: pad to a full 128-lane width; 1/T folded into W4 only
    #     (b4 is added once, at the final time chunk).
    n_pad = ((n_out + 127) // 128) * 128
    w4 = (params["w4"] / T).astype(jnp.bfloat16)
    b4 = params["b4"]
    if n_pad != n_out:
        w4 = jnp.pad(w4, ((0, 0), (0, n_pad - n_out)))
        b4 = jnp.pad(b4, ((0, 0), (0, n_pad - n_out)))

    w2 = l2["w"].astype(jnp.bfloat16)
    w3 = l3["w"].astype(jnp.bfloat16)

    m1_0, m2_0, m3_0 = mem_inits

    const_operands = [
        l1["beta"], l1["omb"], l1["alpha"], l1["oma"],
        w2, l2["b"], l2["beta"], l2["omb"], l2["alpha"], l2["oma"],
        w3, l3["b"], l3["beta"], l3["omb"], l3["alpha"], l3["oma"],
        w4, b4,
    ]
    operands = [z1] + const_operands + [m1_0, m2_0, m3_0]

    def const_spec(a):
        nd = a.ndim
        return pl.BlockSpec(a.shape, lambda bb, t, _nd=nd: (0,) * _nd)

    in_specs = (
        [pl.BlockSpec((time_block, batch_block, br * h1), lambda bb, t: (t, bb, 0))]
        + [const_spec(a) for a in const_operands]
        + [pl.BlockSpec((batch_block, h1), lambda bb, t: (bb, 0)),
           pl.BlockSpec((batch_block, h2), lambda bb, t: (bb, 0)),
           pl.BlockSpec((batch_block, h3), lambda bb, t: (bb, 0))]
    )

    out = pl.pallas_call(
        _snn_recurrent_kernel,
        out_shape=jax.ShapeDtypeStruct((B, n_pad), jnp.float32),
        grid_spec=pltpu.PrefetchScalarGridSpec(
            num_scalar_prefetch=0,
            grid=(n_bb, n_tc),
            in_specs=in_specs,
            out_specs=pl.BlockSpec((batch_block, n_pad), lambda bb, t: (bb, 0)),
            scratch_shapes=[
                pltpu.VMEM((batch_block, h1), jnp.float32),        # mem1
                pltpu.VMEM((batch_block, h1 * br), jnp.float32),   # d_input1 (branch-major)
                pltpu.VMEM((batch_block, h2), jnp.float32),        # mem2
                pltpu.VMEM((batch_block, h2 * br), jnp.float32),   # d_input2
                pltpu.VMEM((batch_block, h3), jnp.float32),        # mem3
                pltpu.VMEM((batch_block, h3 * br), jnp.float32),   # d_input3
                pltpu.VMEM((batch_block, h3), jnp.float32),        # Σ_t spike3 (rate)
            ],
        ),
        compiler_params=pltpu.CompilerParams(
            # batch blocks are independent -> parallel (uses both TCs on v7x);
            # time-chunk axis carries state -> arbitrary (sequential).
            dimension_semantics=("parallel", "arbitrary"),
            vmem_limit_bytes=vmem_limit,
        ),
    )(*operands)
    return out[:, :n_out]


# ----------------------------------------------------------------------------
# Main
# ----------------------------------------------------------------------------
if __name__ == "__main__":
    key = jax.random.PRNGKey(0)
    # SMALL shapes consistent with the module's (batch, seq, channel, w, h) input.
    B, T, C, W, H = 8, 8, 2, 8, 8           # D = C*W*H = 128 (module uses 32*43*2)
    branch = 4
    h1, h2, h3, n_out = 128, 128, 128, 100  # module uses 512, 512, 256, 100

    k_inp, k_par, k_m1, k_m2, k_m3 = jax.random.split(key, 5)
    dvs_inp = jax.random.bernoulli(k_inp, 0.2, (B, T, C, W, H)).astype(jnp.float32)
    params = init_params(k_par, C * W * H, h1, h2, h3, n_out, branch)
    mem_inits = (                           # set_neuron_state: mem ~ U[0,1)
        jax.random.uniform(k_m1, (B, h1), jnp.float32),
        jax.random.uniform(k_m2, (B, h2), jnp.float32),
        jax.random.uniform(k_m3, (B, h3), jnp.float32),
    )

    out = dense_test_4layer_forward(dvs_inp, params, mem_inits, n_out)
    out = jax.block_until_ready(out)

    assert out.shape == (B, n_out)
    assert bool(jnp.all(jnp.isfinite(out)))
    print("KERNEL_OK")
</pallas_src>

<mosaic_0001>
module attributes {stable_mosaic.version = 11 : i64} {
  func.func @_snn_recurrent_kernel(%arg0: i32, %arg1: i32, %arg2: memref<8x8x512xbf16, #tpu.memory_space<vmem>>, %arg3: memref<1x512xf32, #tpu.memory_space<vmem>>, %arg4: memref<1x512xf32, #tpu.memory_space<vmem>>, %arg5: memref<1x128xf32, #tpu.memory_space<vmem>>, %arg6: memref<1x128xf32, #tpu.memory_space<vmem>>, %arg7: memref<128x512xbf16, #tpu.memory_space<vmem>>, %arg8: memref<1x512xf32, #tpu.memory_space<vmem>>, %arg9: memref<1x512xf32, #tpu.memory_space<vmem>>, %arg10: memref<1x512xf32, #tpu.memory_space<vmem>>, %arg11: memref<1x128xf32, #tpu.memory_space<vmem>>, %arg12: memref<1x128xf32, #tpu.memory_space<vmem>>, %arg13: memref<128x512xbf16, #tpu.memory_space<vmem>>, %arg14: memref<1x512xf32, #tpu.memory_space<vmem>>, %arg15: memref<1x512xf32, #tpu.memory_space<vmem>>, %arg16: memref<1x512xf32, #tpu.memory_space<vmem>>, %arg17: memref<1x128xf32, #tpu.memory_space<vmem>>, %arg18: memref<1x128xf32, #tpu.memory_space<vmem>>, %arg19: memref<128x128xbf16, #tpu.memory_space<vmem>>, %arg20: memref<1x128xf32, #tpu.memory_space<vmem>>, %arg21: memref<8x128xf32, #tpu.memory_space<vmem>>, %arg22: memref<8x128xf32, #tpu.memory_space<vmem>>, %arg23: memref<8x128xf32, #tpu.memory_space<vmem>>, %arg24: memref<8x128xf32, #tpu.memory_space<vmem>>, %arg25: memref<8x128xf32, #tpu.memory_space<vmem>>, %arg26: memref<8x512xf32, #tpu.memory_space<vmem>>, %arg27: memref<8x128xf32, #tpu.memory_space<vmem>>, %arg28: memref<8x512xf32, #tpu.memory_space<vmem>>, %arg29: memref<8x128xf32, #tpu.memory_space<vmem>>, %arg30: memref<8x512xf32, #tpu.memory_space<vmem>>, %arg31: memref<8x128xf32, #tpu.memory_space<vmem>>) attributes {dimension_semantics = [#tpu.dimension_semantics<parallel>, #tpu.dimension_semantics<arbitrary>], iteration_bounds = array<i64: 1, 1>, scalar_prefetch = 0 : i64, scratch_operands = 7 : i64, tpu.core_type = #tpu.core_type<tc>, window_params = [{transform_indices = @transform_0, window_bounds = array<i64: 8, 8, 512>}, {pipeline_mode = #tpu.pipeline_mode<synchronous>, transform_indices = @transform_1, window_bounds = array<i64: 1, 512>}, {pipeline_mode = #tpu.pipeline_mode<synchronous>, transform_indices = @transform_2, window_bounds = array<i64: 1, 512>}, {pipeline_mode = #tpu.pipeline_mode<synchronous>, transform_indices = @transform_3, window_bounds = array<i64: 1, 128>}, {pipeline_mode = #tpu.pipeline_mode<synchronous>, transform_indices = @transform_4, window_bounds = array<i64: 1, 128>}, {pipeline_mode = #tpu.pipeline_mode<synchronous>, transform_indices = @transform_5, window_bounds = array<i64: 128, 512>}, {pipeline_mode = #tpu.pipeline_mode<synchronous>, transform_indices = @transform_6, window_bounds = array<i64: 1, 512>}, {pipeline_mode = #tpu.pipeline_mode<synchronous>, transform_indices = @transform_7, window_bounds = array<i64: 1, 512>}, {pipeline_mode = #tpu.pipeline_mode<synchronous>, transform_indices = @transform_8, window_bounds = array<i64: 1, 512>}, {pipeline_mode = #tpu.pipeline_mode<synchronous>, transform_indices = @transform_9, window_bounds = array<i64: 1, 128>}, {pipeline_mode = #tpu.pipeline_mode<synchronous>, transform_indices = @transform_10, window_bounds = array<i64: 1, 128>}, {pipeline_mode = #tpu.pipeline_mode<synchronous>, transform_indices = @transform_11, window_bounds = array<i64: 128, 512>}, {pipeline_mode = #tpu.pipeline_mode<synchronous>, transform_indices = @transform_12, window_bounds = array<i64: 1, 512>}, {pipeline_mode = #tpu.pipeline_mode<synchronous>, transform_indices = @transform_13, window_bounds = array<i64: 1, 512>}, {pipeline_mode = #tpu.pipeline_mode<synchronous>, transform_indices = @transform_14, window_bounds = array<i64: 1, 512>}, {pipeline_mode = #tpu.pipeline_mode<synchronous>, transform_indices = @transform_15, window_bounds = array<i64: 1, 128>}, {pipeline_mode = #tpu.pipeline_mode<synchronous>, transform_indices = @transform_16, window_bounds = array<i64: 1, 128>}, {pipeline_mode = #tpu.pipeline_mode<synchronous>, transform_indices = @transform_17, window_bounds = array<i64: 128, 128>}, {pipeline_mode = #tpu.pipeline_mode<synchronous>, transform_indices = @transform_18, window_bounds = array<i64: 1, 128>}, {transform_indices = @transform_19, window_bounds = array<i64: 8, 128>}, {transform_indices = @transform_20, window_bounds = array<i64: 8, 128>}, {transform_indices = @transform_21, window_bounds = array<i64: 8, 128>}, {transform_indices = @transform_22, window_bounds = array<i64: 8, 128>}]} {
    %c0_i32 = arith.constant 0 : i32
    %0 = arith.cmpi eq, %arg1, %c0_i32 : i32
    %1 = arith.extui %0 : i1 to i32
    %c0_i32_0 = arith.constant 0 : i32
    %2 = arith.cmpi ne, %1, %c0_i32_0 : i32
    scf.if %2 {
      %c0_386 = arith.constant 0 : index
      %c0_387 = arith.constant 0 : index
      %958 = vector.load %arg21[%c0_386, %c0_387] : memref<8x128xf32, #tpu.memory_space<vmem>>, vector<8x128xf32>
      %c0_388 = arith.constant 0 : index
      %c0_389 = arith.constant 0 : index
      %959 = vector.load %arg25[%c0_388, %c0_389] : memref<8x128xf32, #tpu.memory_space<vmem>>, vector<8x128xf32>
      tpu.vector_store %arg25[%c0_388, %c0_389], %958 {strides = array<i32>} : memref<8x128xf32, #tpu.memory_space<vmem>>, vector<8x128xf32>,
      %c0_390 = arith.constant 0 : index
      %c0_391 = arith.constant 0 : index
      %960 = vector.load %arg22[%c0_390, %c0_391] : memref<8x128xf32, #tpu.memory_space<vmem>>, vector<8x128xf32>
      %c0_392 = arith.constant 0 : index
      %c0_393 = arith.constant 0 : index
      %961 = vector.load %arg27[%c0_392, %c0_393] : memref<8x128xf32, #tpu.memory_space<vmem>>, vector<8x128xf32>
      tpu.vector_store %arg27[%c0_392, %c0_393], %960 {strides = array<i32>} : memref<8x128xf32, #tpu.memory_space<vmem>>, vector<8x128xf32>,
      %c0_394 = arith.constant 0 : index
      %c0_395 = arith.constant 0 : index
      %962 = vector.load %arg23[%c0_394, %c0_395] : memref<8x128xf32, #tpu.memory_space<vmem>>, vector<8x128xf32>
      %c0_396 = arith.constant 0 : index
      %c0_397 = arith.constant 0 : index
      %963 = vector.load %arg29[%c0_396, %c0_397] : memref<8x128xf32, #tpu.memory_space<vmem>>, vector<8x128xf32>
      tpu.vector_store %arg29[%c0_396, %c0_397], %962 {strides = array<i32>} : memref<8x128xf32, #tpu.memory_space<vmem>>, vector<8x128xf32>,
      %cst_398 = arith.constant 0.000000e+00 : f32
      %964 = vector.broadcast %cst_398 : f32 to vector<8x512xf32>
      %c0_399 = arith.constant 0 : index
      %c0_400 = arith.constant 0 : index
      %965 = vector.load %arg26[%c0_399, %c0_400] : memref<8x512xf32, #tpu.memory_space<vmem>>, vector<8x512xf32>
      tpu.vector_store %arg26[%c0_399, %c0_400], %964 {strides = array<i32>} : memref<8x512xf32, #tpu.memory_space<vmem>>, vector<8x512xf32>,
      %cst_401 = arith.constant 0.000000e+00 : f32
      %966 = vector.broadcast %cst_401 : f32 to vector<8x512xf32>
      %c0_402 = arith.constant 0 : index
      %c0_403 = arith.constant 0 : index
      %967 = vector.load %arg28[%c0_402, %c0_403] : memref<8x512xf32, #tpu.memory_space<vmem>>, vector<8x512xf32>
      tpu.vector_store %arg28[%c0_402, %c0_403], %966 {strides = array<i32>} : memref<8x512xf32, #tpu.memory_space<vmem>>, vector<8x512xf32>,
      %cst_404 = arith.constant 0.000000e+00 : f32
      %968 = vector.broadcast %cst_404 : f32 to vector<8x512xf32>
      %c0_405 = arith.constant 0 : index
      %c0_406 = arith.constant 0 : index
      %969 = vector.load %arg30[%c0_405, %c0_406] : memref<8x512xf32, #tpu.memory_space<vmem>>, vector<8x512xf32>
      tpu.vector_store %arg30[%c0_405, %c0_406], %968 {strides = array<i32>} : memref<8x512xf32, #tpu.memory_space<vmem>>, vector<8x512xf32>,
      %cst_407 = arith.constant 0.000000e+00 : f32
      %970 = vector.broadcast %cst_407 : f32 to vector<8x128xf32>
      %c0_408 = arith.constant 0 : index
      %c0_409 = arith.constant 0 : index
      %971 = vector.load %arg31[%c0_408, %c0_409] : memref<8x128xf32, #tpu.memory_space<vmem>>, vector<8x128xf32>
      tpu.vector_store %arg31[%c0_408, %c0_409], %970 {strides = array<i32>} : memref<8x128xf32, #tpu.memory_space<vmem>>, vector<8x128xf32>,
      %cst_410 = arith.constant 0.000000e+00 : f32
      %972 = vector.broadcast %cst_410 : f32 to vector<8x128xf32>
      %c0_411 = arith.constant 0 : index
      %c0_412 = arith.constant 0 : index
      %973 = vector.load %arg24[%c0_411, %c0_412] : memref<8x128xf32, #tpu.memory_space<vmem>>, vector<8x128xf32>
      tpu.vector_store %arg24[%c0_411, %c0_412], %972 {strides = array<i32>} : memref<8x128xf32, #tpu.memory_space<vmem>>, vector<8x128xf32>,
    } else {
    }
    %c0 = arith.constant 0 : index
    %c0_1 = arith.constant 0 : index
    %3 = vector.load %arg3[%c0, %c0_1] : memref<1x512xf32, #tpu.memory_space<vmem>>, vector<1x512xf32>
    %c0_2 = arith.constant 0 : index
    %c0_3 = arith.constant 0 : index
    %4 = vector.load %arg4[%c0_2, %c0_3] : memref<1x512xf32, #tpu.memory_space<vmem>>, vector<1x512xf32>
    %c0_4 = arith.constant 0 : index
    %c0_5 = arith.constant 0 : index
    %5 = vector.load %arg5[%c0_4, %c0_5] : memref<1x128xf32, #tpu.memory_space<vmem>>, vector<1x128xf32>
    %c0_6 = arith.constant 0 : index
    %c0_7 = arith.constant 0 : index
    %6 = vector.load %arg6[%c0_6, %c0_7] : memref<1x128xf32, #tpu.memory_space<vmem>>, vector<1x128xf32>
    %c0_8 = arith.constant 0 : index
    %c0_9 = arith.constant 0 : index
    %7 = vector.load %arg9[%c0_8, %c0_9] : memref<1x512xf32, #tpu.memory_space<vmem>>, vector<1x512xf32>
    %c0_10 = arith.constant 0 : index
    %c0_11 = arith.constant 0 : index
    %8 = vector.load %arg10[%c0_10, %c0_11] : memref<1x512xf32, #tpu.memory_space<vmem>>, vector<1x512xf32>
    %c0_12 = arith.constant 0 : index
    %c0_13 = arith.constant 0 : index
    %9 = vector.load %arg11[%c0_12, %c0_13] : memref<1x128xf32, #tpu.memory_space<vmem>>, vector<1x128xf32>
    %c0_14 = arith.constant 0 : index
    %c0_15 = arith.constant 0 : index
    %10 = vector.load %arg12[%c0_14, %c0_15] : memref<1x128xf32, #tpu.memory_space<vmem>>, vector<1x128xf32>
    %c0_16 = arith.constant 0 : index
    %c0_17 = arith.constant 0 : index
    %11 = vector.load %arg15[%c0_16, %c0_17] : memref<1x512xf32, #tpu.memory_space<vmem>>, vector<1x512xf32>
    %c0_18 = arith.constant 0 : index
    %c0_19 = arith.constant 0 : index
    %12 = vector.load %arg16[%c0_18, %c0_19] : memref<1x512xf32, #tpu.memory_space<vmem>>, vector<1x512xf32>
    %c0_20 = arith.constant 0 : index
    %c0_21 = arith.constant 0 : index
    %13 = vector.load %arg17[%c0_20, %c0_21] : memref<1x128xf32, #tpu.memory_space<vmem>>, vector<1x128xf32>
    %c0_22 = arith.constant 0 : index
    %c0_23 = arith.constant 0 : index
    %14 = vector.load %arg18[%c0_22, %c0_23] : memref<1x128xf32, #tpu.memory_space<vmem>>, vector<1x128xf32>
    %c0_24 = arith.constant 0 : index
    %c0_25 = arith.constant 0 : index
    %15 = vector.load %arg7[%c0_24, %c0_25] : memref<128x512xbf16, #tpu.memory_space<vmem>>, vector<128x512xbf16>
    %c0_26 = arith.constant 0 : index
    %c0_27 = arith.constant 0 : index
    %16 = vector.load %arg8[%c0_26, %c0_27] : memref<1x512xf32, #tpu.memory_space<vmem>>, vector<1x512xf32>
    %c0_28 = arith.constant 0 : index
    %c0_29 = arith.constant 0 : index
    %17 = vector.load %arg13[%c0_28, %c0_29] : memref<128x512xbf16, #tpu.memory_space<vmem>>, vector<128x512xbf16>
    %c0_30 = arith.constant 0 : index
    %c0_31 = arith.constant 0 : index
    %18 = vector.load %arg14[%c0_30, %c0_31] : memref<1x512xf32, #tpu.memory_space<vmem>>, vector<1x512xf32>
    %c0_i32_32 = arith.constant 0 : i32
    %19 = arith.index_cast %c0_i32_32 : i32 to index
    %c0_33 = arith.constant 0 : index
    %c0_34 = arith.constant 0 : index
    %20 = vector.load %arg2[%19, %c0_33, %c0_34] : memref<8x8x512xbf16, #tpu.memory_space<vmem>>, vector<1x8x512xbf16>
    %21 = vector.shape_cast %20 : vector<1x8x512xbf16> to vector<8x512xbf16>
    %22 = arith.extf %21 : vector<8x512xbf16> to vector<8x512xf32>
    %c0_35 = arith.constant 0 : index
    %c0_36 = arith.constant 0 : index
    %23 = vector.load %arg25[%c0_35, %c0_36] : memref<8x128xf32, #tpu.memory_space<vmem>>, vector<8x128xf32>
    %cst = arith.constant 1.000000e+00 : f32
    %24 = vector.broadcast %cst : f32 to vector<8x128xf32>
    %25 = arith.cmpf ogt, %23, %24 : vector<8x128xf32>
    %26 = arith.extui %25 : vector<8x128xi1> to vector<8x128xi32>
    %27 = arith.sitofp %26 : vector<8x128xi32> to vector<8x128xf32>
    %c0_37 = arith.constant 0 : index
    %c0_38 = arith.constant 0 : index
    %28 = vector.load %arg26[%c0_37, %c0_38] : memref<8x512xf32, #tpu.memory_space<vmem>>, vector<8x512xf32>
    %29 = vector.broadcast %3 : vector<1x512xf32> to vector<8x512xf32>
    %30 = arith.mulf %29, %28 : vector<8x512xf32>
    %31 = vector.broadcast %4 : vector<1x512xf32> to vector<8x512xf32>
    %32 = arith.mulf %31, %22 : vector<8x512xf32>
    %33 = arith.addf %30, %32 : vector<8x512xf32>
    %c0_39 = arith.constant 0 : index
    %c0_40 = arith.constant 0 : index
    %34 = vector.load %arg26[%c0_39, %c0_40] : memref<8x512xf32, #tpu.memory_space<vmem>>, vector<8x512xf32>
    tpu.vector_store %arg26[%c0_39, %c0_40], %33 {strides = array<i32>} : memref<8x512xf32, #tpu.memory_space<vmem>>, vector<8x512xf32>,
    %35 = vector.extract_strided_slice %33 {offsets = [0, 0], sizes = [8, 128], strides = [1, 1]} : vector<8x512xf32> to vector<8x128xf32>
    %36 = vector.extract_strided_slice %33 {offsets = [0, 128], sizes = [8, 128], strides = [1, 1]} : vector<8x512xf32> to vector<8x128xf32>
    %37 = arith.addf %35, %36 : vector<8x128xf32>
    %38 = vector.extract_strided_slice %33 {offsets = [0, 256], sizes = [8, 128], strides = [1, 1]} : vector<8x512xf32> to vector<8x128xf32>
    %39 = arith.addf %37, %38 : vector<8x128xf32>
    %40 = vector.extract_strided_slice %33 {offsets = [0, 384], sizes = [8, 128], strides = [1, 1]} : vector<8x512xf32> to vector<8x128xf32>
    %41 = arith.addf %39, %40 : vector<8x128xf32>
    %cst_41 = arith.constant 1.000000e+00 : f32
    %42 = vector.broadcast %cst_41 : f32 to vector<8x128xf32>
    %43 = arith.mulf %27, %42 : vector<8x128xf32>
    %44 = arith.subf %23, %43 : vector<8x128xf32>
    %45 = vector.broadcast %5 : vector<1x128xf32> to vector<8x128xf32>
    %46 = arith.mulf %44, %45 : vector<8x128xf32>
    %cst_42 = arith.constant 1.000000e+00 : f32
    %47 = vector.broadcast %cst_42 : f32 to vector<1x128xf32>
    %48 = arith.mulf %6, %47 : vector<1x128xf32>
    %49 = vector.broadcast %48 : vector<1x128xf32> to vector<8x128xf32>
    %50 = arith.mulf %49, %41 : vector<8x128xf32>
    %51 = arith.addf %46, %50 : vector<8x128xf32>
    %c0_43 = arith.constant 0 : index
    %c0_44 = arith.constant 0 : index
    %52 = vector.load %arg25[%c0_43, %c0_44] : memref<8x128xf32, #tpu.memory_space<vmem>>, vector<8x128xf32>
    tpu.vector_store %arg25[%c0_43, %c0_44], %51 {strides = array<i32>} : memref<8x128xf32, #tpu.memory_space<vmem>>, vector<8x128xf32>,
    %cst_45 = arith.constant 1.000000e+00 : f32
    %53 = vector.broadcast %cst_45 : f32 to vector<8x128xf32>
    %54 = arith.cmpf ogt, %51, %53 : vector<8x128xf32>
    %55 = arith.extui %54 : vector<8x128xi1> to vector<8x128xi32>
    %56 = arith.sitofp %55 : vector<8x128xi32> to vector<8x128xf32>
    %57 = arith.truncf %56 : vector<8x128xf32> to vector<8x128xbf16>
    %cst_46 = arith.constant dense<0.000000e+00> : vector<8x512xf32>
    %58 = tpu.matmul %57, %15, %cst_46 {dimension_numbers = #tpu.dot_dimension_numbers<[1], [0], [0], [1], [0, 0, 1, 1], [], []>} : vector<8x128xbf16>, vector<128x512xbf16>, vector<8x512xf32> -> vector<8x512xf32>
    %59 = vector.broadcast %16 : vector<1x512xf32> to vector<8x512xf32>
    %60 = arith.addf %58, %59 : vector<8x512xf32>
    %c0_47 = arith.constant 0 : index
    %c0_48 = arith.constant 0 : index
    %61 = vector.load %arg27[%c0_47, %c0_48] : memref<8x128xf32, #tpu.memory_space<vmem>>, vector<8x128xf32>
    %cst_49 = arith.constant 1.000000e+00 : f32
    %62 = vector.broadcast %cst_49 : f32 to vector<8x128xf32>
    %63 = arith.cmpf ogt, %61, %62 : vector<8x128xf32>
    %64 = arith.extui %63 : vector<8x128xi1> to vector<8x128xi32>
    %65 = arith.sitofp %64 : vector<8x128xi32> to vector<8x128xf32>
    %c0_50 = arith.constant 0 : index
    %c0_51 = arith.constant 0 : index
    %66 = vector.load %arg28[%c0_50, %c0_51] : memref<8x512xf32, #tpu.memory_space<vmem>>, vector<8x512xf32>
    %67 = vector.broadcast %7 : vector<1x512xf32> to vector<8x512xf32>
    %68 = arith.mulf %67, %66 : vector<8x512xf32>
    %69 = vector.broadcast %8 : vector<1x512xf32> to vector<8x512xf32>
    %70 = arith.mulf %69, %60 : vector<8x512xf32>
    %71 = arith.addf %68, %70 : vector<8x512xf32>
    %c0_52 = arith.constant 0 : index
    %c0_53 = arith.constant 0 : index
    %72 = vector.load %arg28[%c0_52, %c0_53] : memref<8x512xf32, #tpu.memory_space<vmem>>, vector<8x512xf32>
    tpu.vector_store %arg28[%c0_52, %c0_53], %71 {strides = array<i32>} : memref<8x512xf32, #tpu.memory_space<vmem>>, vector<8x512xf32>,
    %73 = vector.extract_strided_slice %71 {offsets = [0, 0], sizes = [8, 128], strides = [1, 1]} : vector<8x512xf32> to vector<8x128xf32>
    %74 = vector.extract_strided_slice %71 {offsets = [0, 128], sizes = [8, 128], strides = [1, 1]} : vector<8x512xf32> to vector<8x128xf32>
    %75 = arith.addf %73, %74 : vector<8x128xf32>
    %76 = vector.extract_strided_slice %71 {offsets = [0, 256], sizes = [8, 128], strides = [1, 1]} : vector<8x512xf32> to vector<8x128xf32>
    %77 = arith.addf %75, %76 : vector<8x128xf32>
    %78 = vector.extract_strided_slice %71 {offsets = [0, 384], sizes = [8, 128], strides = [1, 1]} : vector<8x512xf32> to vector<8x128xf32>
    %79 = arith.addf %77, %78 : vector<8x128xf32>
    %cst_54 = arith.constant 1.000000e+00 : f32
    %80 = vector.broadcast %cst_54 : f32 to vector<8x128xf32>
    %81 = arith.mulf %65, %80 : vector<8x128xf32>
    %82 = arith.subf %61, %81 : vector<8x128xf32>
    %83 = vector.broadcast %9 : vector<1x128xf32> to vector<8x128xf32>
    %84 = arith.mulf %82, %83 : vector<8x128xf32>
    %cst_55 = arith.constant 1.000000e+00 : f32
    %85 = vector.broadcast %cst_55 : f32 to vector<1x128xf32>
    %86 = arith.mulf %10, %85 : vector<1x128xf32>
    %87 = vector.broadcast %86 : vector<1x128xf32> to vector<8x128xf32>
    %88 = arith.mulf %87, %79 : vector<8x128xf32>
    %89 = arith.addf %84, %88 : vector<8x128xf32>
    %c0_56 = arith.constant 0 : index
    %c0_57 = arith.constant 0 : index
    %90 = vector.load %arg27[%c0_56, %c0_57] : memref<8x128xf32, #tpu.memory_space<vmem>>, vector<8x128xf32>
    tpu.vector_store %arg27[%c0_56, %c0_57], %89 {strides = array<i32>} : memref<8x128xf32, #tpu.memory_space<vmem>>, vector<8x128xf32>,
    %cst_58 = arith.constant 1.000000e+00 : f32
    %91 = vector.broadcast %cst_58 : f32 to vector<8x128xf32>
    %92 = arith.cmpf ogt, %89, %91 : vector<8x128xf32>
    %93 = arith.extui %92 : vector<8x128xi1> to vector<8x128xi32>
    %94 = arith.sitofp %93 : vector<8x128xi32> to vector<8x128xf32>
    %95 = arith.truncf %94 : vector<8x128xf32> to vector<8x128xbf16>
    %cst_59 = arith.constant dense<0.000000e+00> : vector<8x512xf32>
    %96 = tpu.matmul %95, %17, %cst_59 {dimension_numbers = #tpu.dot_dimension_numbers<[1], [0], [0], [1], [0, 0, 1, 1], [], []>} : vector<8x128xbf16>, vector<128x512xbf16>, vector<8x512xf32> -> vector<8x512xf32>
    %97 = vector.broadcast %18 : vector<1x512xf32> to vector<8x512xf32>
    %98 = arith.addf %96, %97 : vector<8x512xf32>
    %c0_60 = arith.constant 0 : index
    %c0_61 = arith.constant 0 : index
    %99 = vector.load %arg29[%c0_60, %c0_61] : memref<8x128xf32, #tpu.memory_space<vmem>>, vector<8x128xf32>
    %cst_62 = arith.constant 1.000000e+00 : f32
    %100 = vector.broadcast %cst_62 : f32 to vector<8x128xf32>
    %101 = arith.cmpf ogt, %99, %100 : vector<8x128xf32>
    %102 = arith.extui %101 : vector<8x128xi1> to vector<8x128xi32>
    %103 = arith.sitofp %102 : vector<8x128xi32> to vector<8x128xf32>
    %c0_63 = arith.constant 0 : index
    %c0_64 = arith.constant 0 : index
    %104 = vector.load %arg30[%c0_63, %c0_64] : memref<8x512xf32, #tpu.memory_space<vmem>>, vector<8x512xf32>
    %105 = vector.broadcast %11 : vector<1x512xf32> to vector<8x512xf32>
    %106 = arith.mulf %105, %104 : vector<8x512xf32>
    %107 = vector.broadcast %12 : vector<1x512xf32> to vector<8x512xf32>
    %108 = arith.mulf %107, %98 : vector<8x512xf32>
    %109 = arith.addf %106, %108 : vector<8x512xf32>
    %c0_65 = arith.constant 0 : index
    %c0_66 = arith.constant 0 : index
    %110 = vector.load %arg30[%c0_65, %c0_66] : memref<8x512xf32, #tpu.memory_space<vmem>>, vector<8x512xf32>
    tpu.vector_store %arg30[%c0_65, %c0_66], %109 {strides = array<i32>} : memref<8x512xf32, #tpu.memory_space<vmem>>, vector<8x512xf32>,
    %111 = vector.extract_strided_slice %109 {offsets = [0, 0], sizes = [8, 128], strides = [1, 1]} : vector<8x512xf32> to vector<8x128xf32>
    %112 = vector.extract_strided_slice %109 {offsets = [0, 128], sizes = [8, 128], strides = [1, 1]} : vector<8x512xf32> to vector<8x128xf32>
    %113 = arith.addf %111, %112 : vector<8x128xf32>
    %114 = vector.extract_strided_slice %109 {offsets = [0, 256], sizes = [8, 128], strides = [1, 1]} : vector<8x512xf32> to vector<8x128xf32>
    %115 = arith.addf %113, %114 : vector<8x128xf32>
    %116 = vector.extract_strided_slice %109 {offsets = [0, 384], sizes = [8, 128], strides = [1, 1]} : vector<8x512xf32> to vector<8x128xf32>
    %117 = arith.addf %115, %116 : vector<8x128xf32>
    %cst_67 = arith.constant 1.000000e+00 : f32
    %118 = vector.broadcast %cst_67 : f32 to vector<8x128xf32>
    %119 = arith.mulf %103, %118 : vector<8x128xf32>
    %120 = arith.subf %99, %119 : vector<8x128xf32>
    %121 = vector.broadcast %13 : vector<1x128xf32> to vector<8x128xf32>
    %122 = arith.mulf %120, %121 : vector<8x128xf32>
    %cst_68 = arith.constant 1.000000e+00 : f32
    %123 = vector.broadcast %cst_68 : f32 to vector<1x128xf32>
    %124 = arith.mulf %14, %123 : vector<1x128xf32>
    %125 = vector.broadcast %124 : vector<1x128xf32> to vector<8x128xf32>
    %126 = arith.mulf %125, %117 : vector<8x128xf32>
    %127 = arith.addf %122, %126 : vector<8x128xf32>
    %c0_69 = arith.constant 0 : index
    %c0_70 = arith.constant 0 : index
    %128 = vector.load %arg29[%c0_69, %c0_70] : memref<8x128xf32, #tpu.memory_space<vmem>>, vector<8x128xf32>
    tpu.vector_store %arg29[%c0_69, %c0_70], %127 {strides = array<i32>} : memref<8x128xf32, #tpu.memory_space<vmem>>, vector<8x128xf32>,
    %cst_71 = arith.constant 1.000000e+00 : f32
    %129 = vector.broadcast %cst_71 : f32 to vector<8x128xf32>
    %130 = arith.cmpf ogt, %127, %129 : vector<8x128xf32>
    %131 = arith.extui %130 : vector<8x128xi1> to vector<8x128xi32>
    %132 = arith.sitofp %131 : vector<8x128xi32> to vector<8x128xf32>
    %c0_72 = arith.constant 0 : index
    %c0_73 = arith.constant 0 : index
    %133 = vector.load %arg31[%c0_72, %c0_73] : memref<8x128xf32, #tpu.memory_space<vmem>>, vector<8x128xf32>
    %134 = arith.addf %133, %132 : vector<8x128xf32>
    %c0_74 = arith.constant 0 : index
    %c0_75 = arith.constant 0 : index
    %135 = vector.load %arg31[%c0_74, %c0_75] : memref<8x128xf32, #tpu.memory_space<vmem>>, vector<8x128xf32>
    tpu.vector_store %arg31[%c0_74, %c0_75], %134 {strides = array<i32>} : memref<8x128xf32, #tpu.memory_space<vmem>>, vector<8x128xf32>,
    %c1_i32 = arith.constant 1 : i32
    %136 = arith.index_cast %c1_i32 : i32 to index
    %c0_76 = arith.constant 0 : index
    %c0_77 = arith.constant 0 : index
    %137 = vector.load %arg2[%136, %c0_76, %c0_77] : memref<8x8x512xbf16, #tpu.memory_space<vmem>>, vector<1x8x512xbf16>
    %138 = vector.shape_cast %137 : vector<1x8x512xbf16> to vector<8x512xbf16>
    %139 = arith.extf %138 : vector<8x512xbf16> to vector<8x512xf32>
    %c0_78 = arith.constant 0 : index
    %c0_79 = arith.constant 0 : index
    %140 = vector.load %arg25[%c0_78, %c0_79] : memref<8x128xf32, #tpu.memory_space<vmem>>, vector<8x128xf32>
    %cst_80 = arith.constant 1.000000e+00 : f32
    %141 = vector.broadcast %cst_80 : f32 to vector<8x128xf32>
    %142 = arith.cmpf ogt, %140, %141 : vector<8x128xf32>
    %143 = arith.extui %142 : vector<8x128xi1> to vector<8x128xi32>
    %144 = arith.sitofp %143 : vector<8x128xi32> to vector<8x128xf32>
    %c0_81 = arith.constant 0 : index
    %c0_82 = arith.constant 0 : index
    %145 = vector.load %arg26[%c0_81, %c0_82] : memref<8x512xf32, #tpu.memory_space<vmem>>, vector<8x512xf32>
    %146 = vector.broadcast %3 : vector<1x512xf32> to vector<8x512xf32>
    %147 = arith.mulf %146, %145 : vector<8x512xf32>
    %148 = vector.broadcast %4 : vector<1x512xf32> to vector<8x512xf32>
    %149 = arith.mulf %148, %139 : vector<8x512xf32>
    %150 = arith.addf %147, %149 : vector<8x512xf32>
    %c0_83 = arith.constant 0 : index
    %c0_84 = arith.constant 0 : index
    %151 = vector.load %arg26[%c0_83, %c0_84] : memref<8x512xf32, #tpu.memory_space<vmem>>, vector<8x512xf32>
    tpu.vector_store %arg26[%c0_83, %c0_84], %150 {strides = array<i32>} : memref<8x512xf32, #tpu.memory_space<vmem>>, vector<8x512xf32>,
    %152 = vector.extract_strided_slice %150 {offsets = [0, 0], sizes = [8, 128], strides = [1, 1]} : vector<8x512xf32> to vector<8x128xf32>
    %153 = vector.extract_strided_slice %150 {offsets = [0, 128], sizes = [8, 128], strides = [1, 1]} : vector<8x512xf32> to vector<8x128xf32>
    %154 = arith.addf %152, %153 : vector<8x128xf32>
    %155 = vector.extract_strided_slice %150 {offsets = [0, 256], sizes = [8, 128], strides = [1, 1]} : vector<8x512xf32> to vector<8x128xf32>
    %156 = arith.addf %154, %155 : vector<8x128xf32>
    %157 = vector.extract_strided_slice %150 {offsets = [0, 384], sizes = [8, 128], strides = [1, 1]} : vector<8x512xf32> to vector<8x128xf32>
    %158 = arith.addf %156, %157 : vector<8x128xf32>
    %cst_85 = arith.constant 1.000000e+00 : f32
    %159 = vector.broadcast %cst_85 : f32 to vector<8x128xf32>
    %160 = arith.mulf %144, %159 : vector<8x128xf32>
    %161 = arith.subf %140, %160 : vector<8x128xf32>
    %162 = vector.broadcast %5 : vector<1x128xf32> to vector<8x128xf32>
    %163 = arith.mulf %161, %162 : vector<8x128xf32>
    %cst_86 = arith.constant 1.000000e+00 : f32
    %164 = vector.broadcast %cst_86 : f32 to vector<1x128xf32>
    %165 = arith.mulf %6, %164 : vector<1x128xf32>
    %166 = vector.broadcast %165 : vector<1x128xf32> to vector<8x128xf32>
    %167 = arith.mulf %166, %158 : vector<8x128xf32>
    %168 = arith.addf %163, %167 : vector<8x128xf32>
    %c0_87 = arith.constant 0 : index
    %c0_88 = arith.constant 0 : index
    %169 = vector.load %arg25[%c0_87, %c0_88] : memref<8x128xf32, #tpu.memory_space<vmem>>, vector<8x128xf32>
    tpu.vector_store %arg25[%c0_87, %c0_88], %168 {strides = array<i32>} : memref<8x128xf32, #tpu.memory_space<vmem>>, vector<8x128xf32>,
    %cst_89 = arith.constant 1.000000e+00 : f32
    %170 = vector.broadcast %cst_89 : f32 to vector<8x128xf32>
    %171 = arith.cmpf ogt, %168, %170 : vector<8x128xf32>
    %172 = arith.extui %171 : vector<8x128xi1> to vector<8x128xi32>
    %173 = arith.sitofp %172 : vector<8x128xi32> to vector<8x128xf32>
    %174 = arith.truncf %173 : vector<8x128xf32> to vector<8x128xbf16>
    %cst_90 = arith.constant dense<0.000000e+00> : vector<8x512xf32>
    %175 = tpu.matmul %174, %15, %cst_90 {dimension_numbers = #tpu.dot_dimension_numbers<[1], [0], [0], [1], [0, 0, 1, 1], [], []>} : vector<8x128xbf16>, vector<128x512xbf16>, vector<8x512xf32> -> vector<8x512xf32>
    %176 = vector.broadcast %16 : vector<1x512xf32> to vector<8x512xf32>
    %177 = arith.addf %175, %176 : vector<8x512xf32>
    %c0_91 = arith.constant 0 : index
    %c0_92 = arith.constant 0 : index
    %178 = vector.load %arg27[%c0_91, %c0_92] : memref<8x128xf32, #tpu.memory_space<vmem>>, vector<8x128xf32>
    %cst_93 = arith.constant 1.000000e+00 : f32
    %179 = vector.broadcast %cst_93 : f32 to vector<8x128xf32>
    %180 = arith.cmpf ogt, %178, %179 : vector<8x128xf32>
    %181 = arith.extui %180 : vector<8x128xi1> to vector<8x128xi32>
    %182 = arith.sitofp %181 : vector<8x128xi32> to vector<8x128xf32>
    %c0_94 = arith.constant 0 : index
    %c0_95 = arith.constant 0 : index
    %183 = vector.load %arg28[%c0_94, %c0_95] : memref<8x512xf32, #tpu.memory_space<vmem>>, vector<8x512xf32>
    %184 = vector.broadcast %7 : vector<1x512xf32> to vector<8x512xf32>
    %185 = arith.mulf %184, %183 : vector<8x512xf32>
    %186 = vector.broadcast %8 : vector<1x512xf32> to vector<8x512xf32>
    %187 = arith.mulf %186, %177 : vector<8x512xf32>
    %188 = arith.addf %185, %187 : vector<8x512xf32>
    %c0_96 = arith.constant 0 : index
    %c0_97 = arith.constant 0 : index
    %189 = vector.load %arg28[%c0_96, %c0_97] : memref<8x512xf32, #tpu.memory_space<vmem>>, vector<8x512xf32>
    tpu.vector_store %arg28[%c0_96, %c0_97], %188 {strides = array<i32>} : memref<8x512xf32, #tpu.memory_space<vmem>>, vector<8x512xf32>,
    %190 = vector.extract_strided_slice %188 {offsets = [0, 0], sizes = [8, 128], strides = [1, 1]} : vector<8x512xf32> to vector<8x128xf32>
    %191 = vector.extract_strided_slice %188 {offsets = [0, 128], sizes = [8, 128], strides = [1, 1]} : vector<8x512xf32> to vector<8x128xf32>
    %192 = arith.addf %190, %191 : vector<8x128xf32>
    %193 = vector.extract_strided_slice %188 {offsets = [0, 256], sizes = [8, 128], strides = [1, 1]} : vector<8x512xf32> to vector<8x128xf32>
    %194 = arith.addf %192, %193 : vector<8x128xf32>
    %195 = vector.extract_strided_slice %188 {offsets = [0, 384], sizes = [8, 128], strides = [1, 1]} : vector<8x512xf32> to vector<8x128xf32>
    %196 = arith.addf %194, %195 : vector<8x128xf32>
    %cst_98 = arith.constant 1.000000e+00 : f32
    %197 = vector.broadcast %cst_98 : f32 to vector<8x128xf32>
    %198 = arith.mulf %182, %197 : vector<8x128xf32>
    %199 = arith.subf %178, %198 : vector<8x128xf32>
    %200 = vector.broadcast %9 : vector<1x128xf32> to vector<8x128xf32>
    %201 = arith.mulf %199, %200 : vector<8x128xf32>
    %cst_99 = arith.constant 1.000000e+00 : f32
    %202 = vector.broadcast %cst_99 : f32 to vector<1x128xf32>
    %203 = arith.mulf %10, %202 : vector<1x128xf32>
    %204 = vector.broadcast %203 : vector<1x128xf32> to vector<8x128xf32>
    %205 = arith.mulf %204, %196 : vector<8x128xf32>
    %206 = arith.addf %201, %205 : vector<8x128xf32>
    %c0_100 = arith.constant 0 : index
    %c0_101 = arith.constant 0 : index
    %207 = vector.load %arg27[%c0_100, %c0_101] : memref<8x128xf32, #tpu.memory_space<vmem>>, vector<8x128xf32>
    tpu.vector_store %arg27[%c0_100, %c0_101], %206 {strides = array<i32>} : memref<8x128xf32, #tpu.memory_space<vmem>>, vector<8x128xf32>,
    %cst_102 = arith.constant 1.000000e+00 : f32
    %208 = vector.broadcast %cst_102 : f32 to vector<8x128xf32>
    %209 = arith.cmpf ogt, %206, %208 : vector<8x128xf32>
    %210 = arith.extui %209 : vector<8x128xi1> to vector<8x128xi32>
    %211 = arith.sitofp %210 : vector<8x128xi32> to vector<8x128xf32>
    %212 = arith.truncf %211 : vector<8x128xf32> to vector<8x128xbf16>
    %cst_103 = arith.constant dense<0.000000e+00> : vector<8x512xf32>
    %213 = tpu.matmul %212, %17, %cst_103 {dimension_numbers = #tpu.dot_dimension_numbers<[1], [0], [0], [1], [0, 0, 1, 1], [], []>} : vector<8x128xbf16>, vector<128x512xbf16>, vector<8x512xf32> -> vector<8x512xf32>
    %214 = vector.broadcast %18 : vector<1x512xf32> to vector<8x512xf32>
    %215 = arith.addf %213, %214 : vector<8x512xf32>
    %c0_104 = arith.constant 0 : index
    %c0_105 = arith.constant 0 : index
    %216 = vector.load %arg29[%c0_104, %c0_105] : memref<8x128xf32, #tpu.memory_space<vmem>>, vector<8x128xf32>
    %cst_106 = arith.constant 1.000000e+00 : f32
    %217 = vector.broadcast %cst_106 : f32 to vector<8x128xf32>
    %218 = arith.cmpf ogt, %216, %217 : vector<8x128xf32>
    %219 = arith.extui %218 : vector<8x128xi1> to vector<8x128xi32>
    %220 = arith.sitofp %219 : vector<8x128xi32> to vector<8x128xf32>
    %c0_107 = arith.constant 0 : index
    %c0_108 = arith.constant 0 : index
    %221 = vector.load %arg30[%c0_107, %c0_108] : memref<8x512xf32, #tpu.memory_space<vmem>>, vector<8x512xf32>
    %222 = vector.broadcast %11 : vector<1x512xf32> to vector<8x512xf32>
    %223 = arith.mulf %222, %221 : vector<8x512xf32>
    %224 = vector.broadcast %12 : vector<1x512xf32> to vector<8x512xf32>
    %225 = arith.mulf %224, %215 : vector<8x512xf32>
    %226 = arith.addf %223, %225 : vector<8x512xf32>
    %c0_109 = arith.constant 0 : index
    %c0_110 = arith.constant 0 : index
    %227 = vector.load %arg30[%c0_109, %c0_110] : memref<8x512xf32, #tpu.memory_space<vmem>>, vector<8x512xf32>
    tpu.vector_store %arg30[%c0_109, %c0_110], %226 {strides = array<i32>} : memref<8x512xf32, #tpu.memory_space<vmem>>, vector<8x512xf32>,
    %228 = vector.extract_strided_slice %226 {offsets = [0, 0], sizes = [8, 128], strides = [1, 1]} : vector<8x512xf32> to vector<8x128xf32>
    %229 = vector.extract_strided_slice %226 {offsets = [0, 128], sizes = [8, 128], strides = [1, 1]} : vector<8x512xf32> to vector<8x128xf32>
    %230 = arith.addf %228, %229 : vector<8x128xf32>
    %231 = vector.extract_strided_slice %226 {offsets = [0, 256], sizes = [8, 128], strides = [1, 1]} : vector<8x512xf32> to vector<8x128xf32>
    %232 = arith.addf %230, %231 : vector<8x128xf32>
    %233 = vector.extract_strided_slice %226 {offsets = [0, 384], sizes = [8, 128], strides = [1, 1]} : vector<8x512xf32> to vector<8x128xf32>
    %234 = arith.addf %232, %233 : vector<8x128xf32>
    %cst_111 = arith.constant 1.000000e+00 : f32
    %235 = vector.broadcast %cst_111 : f32 to vector<8x128xf32>
    %236 = arith.mulf %220, %235 : vector<8x128xf32>
    %237 = arith.subf %216, %236 : vector<8x128xf32>
    %238 = vector.broadcast %13 : vector<1x128xf32> to vector<8x128xf32>
    %239 = arith.mulf %237, %238 : vector<8x128xf32>
    %cst_112 = arith.constant 1.000000e+00 : f32
    %240 = vector.broadcast %cst_112 : f32 to vector<1x128xf32>
    %241 = arith.mulf %14, %240 : vector<1x128xf32>
    %242 = vector.broadcast %241 : vector<1x128xf32> to vector<8x128xf32>
    %243 = arith.mulf %242, %234 : vector<8x128xf32>
    %244 = arith.addf %239, %243 : vector<8x128xf32>
    %c0_113 = arith.constant 0 : index
    %c0_114 = arith.constant 0 : index
    %245 = vector.load %arg29[%c0_113, %c0_114] : memref<8x128xf32, #tpu.memory_space<vmem>>, vector<8x128xf32>
    tpu.vector_store %arg29[%c0_113, %c0_114], %244 {strides = array<i32>} : memref<8x128xf32, #tpu.memory_space<vmem>>, vector<8x128xf32>,
    %cst_115 = arith.constant 1.000000e+00 : f32
    %246 = vector.broadcast %cst_115 : f32 to vector<8x128xf32>
    %247 = arith.cmpf ogt, %244, %246 : vector<8x128xf32>
    %248 = arith.extui %247 : vector<8x128xi1> to vector<8x128xi32>
    %249 = arith.sitofp %248 : vector<8x128xi32> to vector<8x128xf32>
    %c0_116 = arith.constant 0 : index
    %c0_117 = arith.constant 0 : index
    %250 = vector.load %arg31[%c0_116, %c0_117] : memref<8x128xf32, #tpu.memory_space<vmem>>, vector<8x128xf32>
    %251 = arith.addf %250, %249 : vector<8x128xf32>
    %c0_118 = arith.constant 0 : index
    %c0_119 = arith.constant 0 : index
    %252 = vector.load %arg31[%c0_118, %c0_119] : memref<8x128xf32, #tpu.memory_space<vmem>>, vector<8x128xf32>
    tpu.vector_store %arg31[%c0_118, %c0_119], %251 {strides = array<i32>} : memref<8x128xf32, #tpu.memory_space<vmem>>, vector<8x128xf32>,
    %c2_i32 = arith.constant 2 : i32
    %253 = arith.index_cast %c2_i32 : i32 to index
    %c0_120 = arith.constant 0 : index
    %c0_121 = arith.constant 0 : index
    %254 = vector.load %arg2[%253, %c0_120, %c0_121] : memref<8x8x512xbf16, #tpu.memory_space<vmem>>, vector<1x8x512xbf16>
    %255 = vector.shape_cast %254 : vector<1x8x512xbf16> to vector<8x512xbf16>
    %256 = arith.extf %255 : vector<8x512xbf16> to vector<8x512xf32>
    %c0_122 = arith.constant 0 : index
    %c0_123 = arith.constant 0 : index
    %257 = vector.load %arg25[%c0_122, %c0_123] : memref<8x128xf32, #tpu.memory_space<vmem>>, vector<8x128xf32>
    %cst_124 = arith.constant 1.000000e+00 : f32
    %258 = vector.broadcast %cst_124 : f32 to vector<8x128xf32>
    %259 = arith.cmpf ogt, %257, %258 : vector<8x128xf32>
    %260 = arith.extui %259 : vector<8x128xi1> to vector<8x128xi32>
    %261 = arith.sitofp %260 : vector<8x128xi32> to vector<8x128xf32>
    %c0_125 = arith.constant 0 : index
    %c0_126 = arith.constant 0 : index
    %262 = vector.load %arg26[%c0_125, %c0_126] : memref<8x512xf32, #tpu.memory_space<vmem>>, vector<8x512xf32>
    %263 = vector.broadcast %3 : vector<1x512xf32> to vector<8x512xf32>
    %264 = arith.mulf %263, %262 : vector<8x512xf32>
    %265 = vector.broadcast %4 : vector<1x512xf32> to vector<8x512xf32>
    %266 = arith.mulf %265, %256 : vector<8x512xf32>
    %267 = arith.addf %264, %266 : vector<8x512xf32>
    %c0_127 = arith.constant 0 : index
    %c0_128 = arith.constant 0 : index
    %268 = vector.load %arg26[%c0_127, %c0_128] : memref<8x512xf32, #tpu.memory_space<vmem>>, vector<8x512xf32>
    tpu.vector_store %arg26[%c0_127, %c0_128], %267 {strides = array<i32>} : memref<8x512xf32, #tpu.memory_space<vmem>>, vector<8x512xf32>,
    %269 = vector.extract_strided_slice %267 {offsets = [0, 0], sizes = [8, 128], strides = [1, 1]} : vector<8x512xf32> to vector<8x128xf32>
    %270 = vector.extract_strided_slice %267 {offsets = [0, 128], sizes = [8, 128], strides = [1, 1]} : vector<8x512xf32> to vector<8x128xf32>
    %271 = arith.addf %269, %270 : vector<8x128xf32>
    %272 = vector.extract_strided_slice %267 {offsets = [0, 256], sizes = [8, 128], strides = [1, 1]} : vector<8x512xf32> to vector<8x128xf32>
    %273 = arith.addf %271, %272 : vector<8x128xf32>
    %274 = vector.extract_strided_slice %267 {offsets = [0, 384], sizes = [8, 128], strides = [1, 1]} : vector<8x512xf32> to vector<8x128xf32>
    %275 = arith.addf %273, %274 : vector<8x128xf32>
    %cst_129 = arith.constant 1.000000e+00 : f32
    %276 = vector.broadcast %cst_129 : f32 to vector<8x128xf32>
    %277 = arith.mulf %261, %276 : vector<8x128xf32>
    %278 = arith.subf %257, %277 : vector<8x128xf32>
    %279 = vector.broadcast %5 : vector<1x128xf32> to vector<8x128xf32>
    %280 = arith.mulf %278, %279 : vector<8x128xf32>
    %cst_130 = arith.constant 1.000000e+00 : f32
    %281 = vector.broadcast %cst_130 : f32 to vector<1x128xf32>
    %282 = arith.mulf %6, %281 : vector<1x128xf32>
    %283 = vector.broadcast %282 : vector<1x128xf32> to vector<8x128xf32>
    %284 = arith.mulf %283, %275 : vector<8x128xf32>
    %285 = arith.addf %280, %284 : vector<8x128xf32>
    %c0_131 = arith.constant 0 : index
    %c0_132 = arith.constant 0 : index
    %286 = vector.load %arg25[%c0_131, %c0_132] : memref<8x128xf32, #tpu.memory_space<vmem>>, vector<8x128xf32>
    tpu.vector_store %arg25[%c0_131, %c0_132], %285 {strides = array<i32>} : memref<8x128xf32, #tpu.memory_space<vmem>>, vector<8x128xf32>,
    %cst_133 = arith.constant 1.000000e+00 : f32
    %287 = vector.broadcast %cst_133 : f32 to vector<8x128xf32>
    %288 = arith.cmpf ogt, %285, %287 : vector<8x128xf32>
    %289 = arith.extui %288 : vector<8x128xi1> to vector<8x128xi32>
    %290 = arith.sitofp %289 : vector<8x128xi32> to vector<8x128xf32>
    %291 = arith.truncf %290 : vector<8x128xf32> to vector<8x128xbf16>
    %cst_134 = arith.constant dense<0.000000e+00> : vector<8x512xf32>
    %292 = tpu.matmul %291, %15, %cst_134 {dimension_numbers = #tpu.dot_dimension_numbers<[1], [0], [0], [1], [0, 0, 1, 1], [], []>} : vector<8x128xbf16>, vector<128x512xbf16>, vector<8x512xf32> -> vector<8x512xf32>
    %293 = vector.broadcast %16 : vector<1x512xf32> to vector<8x512xf32>
    %294 = arith.addf %292, %293 : vector<8x512xf32>
    %c0_135 = arith.constant 0 : index
    %c0_136 = arith.constant 0 : index
    %295 = vector.load %arg27[%c0_135, %c0_136] : memref<8x128xf32, #tpu.memory_space<vmem>>, vector<8x128xf32>
    %cst_137 = arith.constant 1.000000e+00 : f32
    %296 = vector.broadcast %cst_137 : f32 to vector<8x128xf32>
    %297 = arith.cmpf ogt, %295, %296 : vector<8x128xf32>
    %298 = arith.extui %297 : vector<8x128xi1> to vector<8x128xi32>
    %299 = arith.sitofp %298 : vector<8x128xi32> to vector<8x128xf32>
    %c0_138 = arith.constant 0 : index
    %c0_139 = arith.constant 0 : index
    %300 = vector.load %arg28[%c0_138, %c0_139] : memref<8x512xf32, #tpu.memory_space<vmem>>, vector<8x512xf32>
    %301 = vector.broadcast %7 : vector<1x512xf32> to vector<8x512xf32>
    %302 = arith.mulf %301, %300 : vector<8x512xf32>
    %303 = vector.broadcast %8 : vector<1x512xf32> to vector<8x512xf32>
    %304 = arith.mulf %303, %294 : vector<8x512xf32>
    %305 = arith.addf %302, %304 : vector<8x512xf32>
    %c0_140 = arith.constant 0 : index
    %c0_141 = arith.constant 0 : index
    %306 = vector.load %arg28[%c0_140, %c0_141] : memref<8x512xf32, #tpu.memory_space<vmem>>, vector<8x512xf32>
    tpu.vector_store %arg28[%c0_140, %c0_141], %305 {strides = array<i32>} : memref<8x512xf32, #tpu.memory_space<vmem>>, vector<8x512xf32>,
    %307 = vector.extract_strided_slice %305 {offsets = [0, 0], sizes = [8, 128], strides = [1, 1]} : vector<8x512xf32> to vector<8x128xf32>
    %308 = vector.extract_strided_slice %305 {offsets = [0, 128], sizes = [8, 128], strides = [1, 1]} : vector<8x512xf32> to vector<8x128xf32>
    %309 = arith.addf %307, %308 : vector<8x128xf32>
    %310 = vector.extract_strided_slice %305 {offsets = [0, 256], sizes = [8, 128], strides = [1, 1]} : vector<8x512xf32> to vector<8x128xf32>
    %311 = arith.addf %309, %310 : vector<8x128xf32>
    %312 = vector.extract_strided_slice %305 {offsets = [0, 384], sizes = [8, 128], strides = [1, 1]} : vector<8x512xf32> to vector<8x128xf32>
    %313 = arith.addf %311, %312 : vector<8x128xf32>
    %cst_142 = arith.constant 1.000000e+00 : f32
    %314 = vector.broadcast %cst_142 : f32 to vector<8x128xf32>
    %315 = arith.mulf %299, %314 : vector<8x128xf32>
    %316 = arith.subf %295, %315 : vector<8x128xf32>
    %317 = vector.broadcast %9 : vector<1x128xf32> to vector<8x128xf32>
    %318 = arith.mulf %316, %317 : vector<8x128xf32>
    %cst_143 = arith.constant 1.000000e+00 : f32
    %319 = vector.broadcast %cst_143 : f32 to vector<1x128xf32>
    %320 = arith.mulf %10, %319 : vector<1x128xf32>
    %321 = vector.broadcast %320 : vector<1x128xf32> to vector<8x128xf32>
    %322 = arith.mulf %321, %313 : vector<8x128xf32>
    %323 = arith.addf %318, %322 : vector<8x128xf32>
    %c0_144 = arith.constant 0 : index
    %c0_145 = arith.constant 0 : index
    %324 = vector.load %arg27[%c0_144, %c0_145] : memref<8x128xf32, #tpu.memory_space<vmem>>, vector<8x128xf32>
    tpu.vector_store %arg27[%c0_144, %c0_145], %323 {strides = array<i32>} : memref<8x128xf32, #tpu.memory_space<vmem>>, vector<8x128xf32>,
    %cst_146 = arith.constant 1.000000e+00 : f32
    %325 = vector.broadcast %cst_146 : f32 to vector<8x128xf32>
    %326 = arith.cmpf ogt, %323, %325 : vector<8x128xf32>
    %327 = arith.extui %326 : vector<8x128xi1> to vector<8x128xi32>
    %328 = arith.sitofp %327 : vector<8x128xi32> to vector<8x128xf32>
    %329 = arith.truncf %328 : vector<8x128xf32> to vector<8x128xbf16>
    %cst_147 = arith.constant dense<0.000000e+00> : vector<8x512xf32>
    %330 = tpu.matmul %329, %17, %cst_147 {dimension_numbers = #tpu.dot_dimension_numbers<[1], [0], [0], [1], [0, 0, 1, 1], [], []>} : vector<8x128xbf16>, vector<128x512xbf16>, vector<8x512xf32> -> vector<8x512xf32>
    %331 = vector.broadcast %18 : vector<1x512xf32> to vector<8x512xf32>
    %332 = arith.addf %330, %331 : vector<8x512xf32>
    %c0_148 = arith.constant 0 : index
    %c0_149 = arith.constant 0 : index
    %333 = vector.load %arg29[%c0_148, %c0_149] : memref<8x128xf32, #tpu.memory_space<vmem>>, vector<8x128xf32>
    %cst_150 = arith.constant 1.000000e+00 : f32
    %334 = vector.broadcast %cst_150 : f32 to vector<8x128xf32>
    %335 = arith.cmpf ogt, %333, %334 : vector<8x128xf32>
    %336 = arith.extui %335 : vector<8x128xi1> to vector<8x128xi32>
    %337 = arith.sitofp %336 : vector<8x128xi32> to vector<8x128xf32>
    %c0_151 = arith.constant 0 : index
    %c0_152 = arith.constant 0 : index
    %338 = vector.load %arg30[%c0_151, %c0_152] : memref<8x512xf32, #tpu.memory_space<vmem>>, vector<8x512xf32>
    %339 = vector.broadcast %11 : vector<1x512xf32> to vector<8x512xf32>
    %340 = arith.mulf %339, %338 : vector<8x512xf32>
    %341 = vector.broadcast %12 : vector<1x512xf32> to vector<8x512xf32>
    %342 = arith.mulf %341, %332 : vector<8x512xf32>
    %343 = arith.addf %340, %342 : vector<8x512xf32>
    %c0_153 = arith.constant 0 : index
    %c0_154 = arith.constant 0 : index
    %344 = vector.load %arg30[%c0_153, %c0_154] : memref<8x512xf32, #tpu.memory_space<vmem>>, vector<8x512xf32>
    tpu.vector_store %arg30[%c0_153, %c0_154], %343 {strides = array<i32>} : memref<8x512xf32, #tpu.memory_space<vmem>>, vector<8x512xf32>,
    %345 = vector.extract_strided_slice %343 {offsets = [0, 0], sizes = [8, 128], strides = [1, 1]} : vector<8x512xf32> to vector<8x128xf32>
    %346 = vector.extract_strided_slice %343 {offsets = [0, 128], sizes = [8, 128], strides = [1, 1]} : vector<8x512xf32> to vector<8x128xf32>
    %347 = arith.addf %345, %346 : vector<8x128xf32>
    %348 = vector.extract_strided_slice %343 {offsets = [0, 256], sizes = [8, 128], strides = [1, 1]} : vector<8x512xf32> to vector<8x128xf32>
    %349 = arith.addf %347, %348 : vector<8x128xf32>
    %350 = vector.extract_strided_slice %343 {offsets = [0, 384], sizes = [8, 128], strides = [1, 1]} : vector<8x512xf32> to vector<8x128xf32>
    %351 = arith.addf %349, %350 : vector<8x128xf32>
    %cst_155 = arith.constant 1.000000e+00 : f32
    %352 = vector.broadcast %cst_155 : f32 to vector<8x128xf32>
    %353 = arith.mulf %337, %352 : vector<8x128xf32>
    %354 = arith.subf %333, %353 : vector<8x128xf32>
    %355 = vector.broadcast %13 : vector<1x128xf32> to vector<8x128xf32>
    %356 = arith.mulf %354, %355 : vector<8x128xf32>
    %cst_156 = arith.constant 1.000000e+00 : f32
    %357 = vector.broadcast %cst_156 : f32 to vector<1x128xf32>
    %358 = arith.mulf %14, %357 : vector<1x128xf32>
    %359 = vector.broadcast %358 : vector<1x128xf32> to vector<8x128xf32>
    %360 = arith.mulf %359, %351 : vector<8x128xf32>
    %361 = arith.addf %356, %360 : vector<8x128xf32>
    %c0_157 = arith.constant 0 : index
    %c0_158 = arith.constant 0 : index
    %362 = vector.load %arg29[%c0_157, %c0_158] : memref<8x128xf32, #tpu.memory_space<vmem>>, vector<8x128xf32>
    tpu.vector_store %arg29[%c0_157, %c0_158], %361 {strides = array<i32>} : memref<8x128xf32, #tpu.memory_space<vmem>>, vector<8x128xf32>,
    %cst_159 = arith.constant 1.000000e+00 : f32
    %363 = vector.broadcast %cst_159 : f32 to vector<8x128xf32>
    %364 = arith.cmpf ogt, %361, %363 : vector<8x128xf32>
    %365 = arith.extui %364 : vector<8x128xi1> to vector<8x128xi32>
    %366 = arith.sitofp %365 : vector<8x128xi32> to vector<8x128xf32>
    %c0_160 = arith.constant 0 : index
    %c0_161 = arith.constant 0 : index
    %367 = vector.load %arg31[%c0_160, %c0_161] : memref<8x128xf32, #tpu.memory_space<vmem>>, vector<8x128xf32>
    %368 = arith.addf %367, %366 : vector<8x128xf32>
    %c0_162 = arith.constant 0 : index
    %c0_163 = arith.constant 0 : index
    %369 = vector.load %arg31[%c0_162, %c0_163] : memref<8x128xf32, #tpu.memory_space<vmem>>, vector<8x128xf32>
    tpu.vector_store %arg31[%c0_162, %c0_163], %368 {strides = array<i32>} : memref<8x128xf32, #tpu.memory_space<vmem>>, vector<8x128xf32>,
    %c3_i32 = arith.constant 3 : i32
    %370 = arith.index_cast %c3_i32 : i32 to index
    %c0_164 = arith.constant 0 : index
    %c0_165 = arith.constant 0 : index
    %371 = vector.load %arg2[%370, %c0_164, %c0_165] : memref<8x8x512xbf16, #tpu.memory_space<vmem>>, vector<1x8x512xbf16>
    %372 = vector.shape_cast %371 : vector<1x8x512xbf16> to vector<8x512xbf16>
    %373 = arith.extf %372 : vector<8x512xbf16> to vector<8x512xf32>
    %c0_166 = arith.constant 0 : index
    %c0_167 = arith.constant 0 : index
    %374 = vector.load %arg25[%c0_166, %c0_167] : memref<8x128xf32, #tpu.memory_space<vmem>>, vector<8x128xf32>
    %cst_168 = arith.constant 1.000000e+00 : f32
    %375 = vector.broadcast %cst_168 : f32 to vector<8x128xf32>
    %376 = arith.cmpf ogt, %374, %375 : vector<8x128xf32>
    %377 = arith.extui %376 : vector<8x128xi1> to vector<8x128xi32>
    %378 = arith.sitofp %377 : vector<8x128xi32> to vector<8x128xf32>
    %c0_169 = arith.constant 0 : index
    %c0_170 = arith.constant 0 : index
    %379 = vector.load %arg26[%c0_169, %c0_170] : memref<8x512xf32, #tpu.memory_space<vmem>>, vector<8x512xf32>
    %380 = vector.broadcast %3 : vector<1x512xf32> to vector<8x512xf32>
    %381 = arith.mulf %380, %379 : vector<8x512xf32>
    %382 = vector.broadcast %4 : vector<1x512xf32> to vector<8x512xf32>
    %383 = arith.mulf %382, %373 : vector<8x512xf32>
    %384 = arith.addf %381, %383 : vector<8x512xf32>
    %c0_171 = arith.constant 0 : index
    %c0_172 = arith.constant 0 : index
    %385 = vector.load %arg26[%c0_171, %c0_172] : memref<8x512xf32, #tpu.memory_space<vmem>>, vector<8x512xf32>
    tpu.vector_store %arg26[%c0_171, %c0_172], %384 {strides = array<i32>} : memref<8x512xf32, #tpu.memory_space<vmem>>, vector<8x512xf32>,
    %386 = vector.extract_strided_slice %384 {offsets = [0, 0], sizes = [8, 128], strides = [1, 1]} : vector<8x512xf32> to vector<8x128xf32>
    %387 = vector.extract_strided_slice %384 {offsets = [0, 128], sizes = [8, 128], strides = [1, 1]} : vector<8x512xf32> to vector<8x128xf32>
    %388 = arith.addf %386, %387 : vector<8x128xf32>
    %389 = vector.extract_strided_slice %384 {offsets = [0, 256], sizes = [8, 128], strides = [1, 1]} : vector<8x512xf32> to vector<8x128xf32>
    %390 = arith.addf %388, %389 : vector<8x128xf32>
    %391 = vector.extract_strided_slice %384 {offsets = [0, 384], sizes = [8, 128], strides = [1, 1]} : vector<8x512xf32> to vector<8x128xf32>
    %392 = arith.addf %390, %391 : vector<8x128xf32>
    %cst_173 = arith.constant 1.000000e+00 : f32
    %393 = vector.broadcast %cst_173 : f32 to vector<8x128xf32>
    %394 = arith.mulf %378, %393 : vector<8x128xf32>
    %395 = arith.subf %374, %394 : vector<8x128xf32>
    %396 = vector.broadcast %5 : vector<1x128xf32> to vector<8x128xf32>
    %397 = arith.mulf %395, %396 : vector<8x128xf32>
    %cst_174 = arith.constant 1.000000e+00 : f32
    %398 = vector.broadcast %cst_174 : f32 to vector<1x128xf32>
    %399 = arith.mulf %6, %398 : vector<1x128xf32>
    %400 = vector.broadcast %399 : vector<1x128xf32> to vector<8x128xf32>
    %401 = arith.mulf %400, %392 : vector<8x128xf32>
    %402 = arith.addf %397, %401 : vector<8x128xf32>
    %c0_175 = arith.constant 0 : index
    %c0_176 = arith.constant 0 : index
    %403 = vector.load %arg25[%c0_175, %c0_176] : memref<8x128xf32, #tpu.memory_space<vmem>>, vector<8x128xf32>
    tpu.vector_store %arg25[%c0_175, %c0_176], %402 {strides = array<i32>} : memref<8x128xf32, #tpu.memory_space<vmem>>, vector<8x128xf32>,
    %cst_177 = arith.constant 1.000000e+00 : f32
    %404 = vector.broadcast %cst_177 : f32 to vector<8x128xf32>
    %405 = arith.cmpf ogt, %402, %404 : vector<8x128xf32>
    %406 = arith.extui %405 : vector<8x128xi1> to vector<8x128xi32>
    %407 = arith.sitofp %406 : vector<8x128xi32> to vector<8x128xf32>
    %408 = arith.truncf %407 : vector<8x128xf32> to vector<8x128xbf16>
    %cst_178 = arith.constant dense<0.000000e+00> : vector<8x512xf32>
    %409 = tpu.matmul %408, %15, %cst_178 {dimension_numbers = #tpu.dot_dimension_numbers<[1], [0], [0], [1], [0, 0, 1, 1], [], []>} : vector<8x128xbf16>, vector<128x512xbf16>, vector<8x512xf32> -> vector<8x512xf32>
    %410 = vector.broadcast %16 : vector<1x512xf32> to vector<8x512xf32>
    %411 = arith.addf %409, %410 : vector<8x512xf32>
    %c0_179 = arith.constant 0 : index
    %c0_180 = arith.constant 0 : index
    %412 = vector.load %arg27[%c0_179, %c0_180] : memref<8x128xf32, #tpu.memory_space<vmem>>, vector<8x128xf32>
    %cst_181 = arith.constant 1.000000e+00 : f32
    %413 = vector.broadcast %cst_181 : f32 to vector<8x128xf32>
    %414 = arith.cmpf ogt, %412, %413 : vector<8x128xf32>
    %415 = arith.extui %414 : vector<8x128xi1> to vector<8x128xi32>
    %416 = arith.sitofp %415 : vector<8x128xi32> to vector<8x128xf32>
    %c0_182 = arith.constant 0 : index
    %c0_183 = arith.constant 0 : index
    %417 = vector.load %arg28[%c0_182, %c0_183] : memref<8x512xf32, #tpu.memory_space<vmem>>, vector<8x512xf32>
    %418 = vector.broadcast %7 : vector<1x512xf32> to vector<8x512xf32>
    %419 = arith.mulf %418, %417 : vector<8x512xf32>
    %420 = vector.broadcast %8 : vector<1x512xf32> to vector<8x512xf32>
    %421 = arith.mulf %420, %411 : vector<8x512xf32>
    %422 = arith.addf %419, %421 : vector<8x512xf32>
    %c0_184 = arith.constant 0 : index
    %c0_185 = arith.constant 0 : index
    %423 = vector.load %arg28[%c0_184, %c0_185] : memref<8x512xf32, #tpu.memory_space<vmem>>, vector<8x512xf32>
    tpu.vector_store %arg28[%c0_184, %c0_185], %422 {strides = array<i32>} : memref<8x512xf32, #tpu.memory_space<vmem>>, vector<8x512xf32>,
    %424 = vector.extract_strided_slice %422 {offsets = [0, 0], sizes = [8, 128], strides = [1, 1]} : vector<8x512xf32> to vector<8x128xf32>
    %425 = vector.extract_strided_slice %422 {offsets = [0, 128], sizes = [8, 128], strides = [1, 1]} : vector<8x512xf32> to vector<8x128xf32>
    %426 = arith.addf %424, %425 : vector<8x128xf32>
    %427 = vector.extract_strided_slice %422 {offsets = [0, 256], sizes = [8, 128], strides = [1, 1]} : vector<8x512xf32> to vector<8x128xf32>
    %428 = arith.addf %426, %427 : vector<8x128xf32>
    %429 = vector.extract_strided_slice %422 {offsets = [0, 384], sizes = [8, 128], strides = [1, 1]} : vector<8x512xf32> to vector<8x128xf32>
    %430 = arith.addf %428, %429 : vector<8x128xf32>
    %cst_186 = arith.constant 1.000000e+00 : f32
    %431 = vector.broadcast %cst_186 : f32 to vector<8x128xf32>
    %432 = arith.mulf %416, %431 : vector<8x128xf32>
    %433 = arith.subf %412, %432 : vector<8x128xf32>
    %434 = vector.broadcast %9 : vector<1x128xf32> to vector<8x128xf32>
    %435 = arith.mulf %433, %434 : vector<8x128xf32>
    %cst_187 = arith.constant 1.000000e+00 : f32
    %436 = vector.broadcast %cst_187 : f32 to vector<1x128xf32>
    %437 = arith.mulf %10, %436 : vector<1x128xf32>
    %438 = vector.broadcast %437 : vector<1x128xf32> to vector<8x128xf32>
    %439 = arith.mulf %438, %430 : vector<8x128xf32>
    %440 = arith.addf %435, %439 : vector<8x128xf32>
    %c0_188 = arith.constant 0 : index
    %c0_189 = arith.constant 0 : index
    %441 = vector.load %arg27[%c0_188, %c0_189] : memref<8x128xf32, #tpu.memory_space<vmem>>, vector<8x128xf32>
    tpu.vector_store %arg27[%c0_188, %c0_189], %440 {strides = array<i32>} : memref<8x128xf32, #tpu.memory_space<vmem>>, vector<8x128xf32>,
    %cst_190 = arith.constant 1.000000e+00 : f32
    %442 = vector.broadcast %cst_190 : f32 to vector<8x128xf32>
    %443 = arith.cmpf ogt, %440, %442 : vector<8x128xf32>
    %444 = arith.extui %443 : vector<8x128xi1> to vector<8x128xi32>
    %445 = arith.sitofp %444 : vector<8x128xi32> to vector<8x128xf32>
    %446 = arith.truncf %445 : vector<8x128xf32> to vector<8x128xbf16>
    %cst_191 = arith.constant dense<0.000000e+00> : vector<8x512xf32>
    %447 = tpu.matmul %446, %17, %cst_191 {dimension_numbers = #tpu.dot_dimension_numbers<[1], [0], [0], [1], [0, 0, 1, 1], [], []>} : vector<8x128xbf16>, vector<128x512xbf16>, vector<8x512xf32> -> vector<8x512xf32>
    %448 = vector.broadcast %18 : vector<1x512xf32> to vector<8x512xf32>
    %449 = arith.addf %447, %448 : vector<8x512xf32>
    %c0_192 = arith.constant 0 : index
    %c0_193 = arith.constant 0 : index
    %450 = vector.load %arg29[%c0_192, %c0_193] : memref<8x128xf32, #tpu.memory_space<vmem>>, vector<8x128xf32>
    %cst_194 = arith.constant 1.000000e+00 : f32
    %451 = vector.broadcast %cst_194 : f32 to vector<8x128xf32>
    %452 = arith.cmpf ogt, %450, %451 : vector<8x128xf32>
    %453 = arith.extui %452 : vector<8x128xi1> to vector<8x128xi32>
    %454 = arith.sitofp %453 : vector<8x128xi32> to vector<8x128xf32>
    %c0_195 = arith.constant 0 : index
    %c0_196 = arith.constant 0 : index
    %455 = vector.load %arg30[%c0_195, %c0_196] : memref<8x512xf32, #tpu.memory_space<vmem>>, vector<8x512xf32>
    %456 = vector.broadcast %11 : vector<1x512xf32> to vector<8x512xf32>
    %457 = arith.mulf %456, %455 : vector<8x512xf32>
    %458 = vector.broadcast %12 : vector<1x512xf32> to vector<8x512xf32>
    %459 = arith.mulf %458, %449 : vector<8x512xf32>
    %460 = arith.addf %457, %459 : vector<8x512xf32>
    %c0_197 = arith.constant 0 : index
    %c0_198 = arith.constant 0 : index
    %461 = vector.load %arg30[%c0_197, %c0_198] : memref<8x512xf32, #tpu.memory_space<vmem>>, vector<8x512xf32>
    tpu.vector_store %arg30[%c0_197, %c0_198], %460 {strides = array<i32>} : memref<8x512xf32, #tpu.memory_space<vmem>>, vector<8x512xf32>,
    %462 = vector.extract_strided_slice %460 {offsets = [0, 0], sizes = [8, 128], strides = [1, 1]} : vector<8x512xf32> to vector<8x128xf32>
    %463 = vector.extract_strided_slice %460 {offsets = [0, 128], sizes = [8, 128], strides = [1, 1]} : vector<8x512xf32> to vector<8x128xf32>
    %464 = arith.addf %462, %463 : vector<8x128xf32>
    %465 = vector.extract_strided_slice %460 {offsets = [0, 256], sizes = [8, 128], strides = [1, 1]} : vector<8x512xf32> to vector<8x128xf32>
    %466 = arith.addf %464, %465 : vector<8x128xf32>
    %467 = vector.extract_strided_slice %460 {offsets = [0, 384], sizes = [8, 128], strides = [1, 1]} : vector<8x512xf32> to vector<8x128xf32>
    %468 = arith.addf %466, %467 : vector<8x128xf32>
    %cst_199 = arith.constant 1.000000e+00 : f32
    %469 = vector.broadcast %cst_199 : f32 to vector<8x128xf32>
    %470 = arith.mulf %454, %469 : vector<8x128xf32>
    %471 = arith.subf %450, %470 : vector<8x128xf32>
    %472 = vector.broadcast %13 : vector<1x128xf32> to vector<8x128xf32>
    %473 = arith.mulf %471, %472 : vector<8x128xf32>
    %cst_200 = arith.constant 1.000000e+00 : f32
    %474 = vector.broadcast %cst_200 : f32 to vector<1x128xf32>
    %475 = arith.mulf %14, %474 : vector<1x128xf32>
    %476 = vector.broadcast %475 : vector<1x128xf32> to vector<8x128xf32>
    %477 = arith.mulf %476, %468 : vector<8x128xf32>
    %478 = arith.addf %473, %477 : vector<8x128xf32>
    %c0_201 = arith.constant 0 : index
    %c0_202 = arith.constant 0 : index
    %479 = vector.load %arg29[%c0_201, %c0_202] : memref<8x128xf32, #tpu.memory_space<vmem>>, vector<8x128xf32>
    tpu.vector_store %arg29[%c0_201, %c0_202], %478 {strides = array<i32>} : memref<8x128xf32, #tpu.memory_space<vmem>>, vector<8x128xf32>,
    %cst_203 = arith.constant 1.000000e+00 : f32
    %480 = vector.broadcast %cst_203 : f32 to vector<8x128xf32>
    %481 = arith.cmpf ogt, %478, %480 : vector<8x128xf32>
    %482 = arith.extui %481 : vector<8x128xi1> to vector<8x128xi32>
    %483 = arith.sitofp %482 : vector<8x128xi32> to vector<8x128xf32>
    %c0_204 = arith.constant 0 : index
    %c0_205 = arith.constant 0 : index
    %484 = vector.load %arg31[%c0_204, %c0_205] : memref<8x128xf32, #tpu.memory_space<vmem>>, vector<8x128xf32>
    %485 = arith.addf %484, %483 : vector<8x128xf32>
    %c0_206 = arith.constant 0 : index
    %c0_207 = arith.constant 0 : index
    %486 = vector.load %arg31[%c0_206, %c0_207] : memref<8x128xf32, #tpu.memory_space<vmem>>, vector<8x128xf32>
    tpu.vector_store %arg31[%c0_206, %c0_207], %485 {strides = array<i32>} : memref<8x128xf32, #tpu.memory_space<vmem>>, vector<8x128xf32>,
    %c4_i32 = arith.constant 4 : i32
    %487 = arith.index_cast %c4_i32 : i32 to index
    %c0_208 = arith.constant 0 : index
    %c0_209 = arith.constant 0 : index
    %488 = vector.load %arg2[%487, %c0_208, %c0_209] : memref<8x8x512xbf16, #tpu.memory_space<vmem>>, vector<1x8x512xbf16>
    %489 = vector.shape_cast %488 : vector<1x8x512xbf16> to vector<8x512xbf16>
    %490 = arith.extf %489 : vector<8x512xbf16> to vector<8x512xf32>
    %c0_210 = arith.constant 0 : index
    %c0_211 = arith.constant 0 : index
    %491 = vector.load %arg25[%c0_210, %c0_211] : memref<8x128xf32, #tpu.memory_space<vmem>>, vector<8x128xf32>
    %cst_212 = arith.constant 1.000000e+00 : f32
    %492 = vector.broadcast %cst_212 : f32 to vector<8x128xf32>
    %493 = arith.cmpf ogt, %491, %492 : vector<8x128xf32>
    %494 = arith.extui %493 : vector<8x128xi1> to vector<8x128xi32>
    %495 = arith.sitofp %494 : vector<8x128xi32> to vector<8x128xf32>
    %c0_213 = arith.constant 0 : index
    %c0_214 = arith.constant 0 : index
    %496 = vector.load %arg26[%c0_213, %c0_214] : memref<8x512xf32, #tpu.memory_space<vmem>>, vector<8x512xf32>
    %497 = vector.broadcast %3 : vector<1x512xf32> to vector<8x512xf32>
    %498 = arith.mulf %497, %496 : vector<8x512xf32>
    %499 = vector.broadcast %4 : vector<1x512xf32> to vector<8x512xf32>
    %500 = arith.mulf %499, %490 : vector<8x512xf32>
    %501 = arith.addf %498, %500 : vector<8x512xf32>
    %c0_215 = arith.constant 0 : index
    %c0_216 = arith.constant 0 : index
    %502 = vector.load %arg26[%c0_215, %c0_216] : memref<8x512xf32, #tpu.memory_space<vmem>>, vector<8x512xf32>
    tpu.vector_store %arg26[%c0_215, %c0_216], %501 {strides = array<i32>} : memref<8x512xf32, #tpu.memory_space<vmem>>, vector<8x512xf32>,
    %503 = vector.extract_strided_slice %501 {offsets = [0, 0], sizes = [8, 128], strides = [1, 1]} : vector<8x512xf32> to vector<8x128xf32>
    %504 = vector.extract_strided_slice %501 {offsets = [0, 128], sizes = [8, 128], strides = [1, 1]} : vector<8x512xf32> to vector<8x128xf32>
    %505 = arith.addf %503, %504 : vector<8x128xf32>
    %506 = vector.extract_strided_slice %501 {offsets = [0, 256], sizes = [8, 128], strides = [1, 1]} : vector<8x512xf32> to vector<8x128xf32>
    %507 = arith.addf %505, %506 : vector<8x128xf32>
    %508 = vector.extract_strided_slice %501 {offsets = [0, 384], sizes = [8, 128], strides = [1, 1]} : vector<8x512xf32> to vector<8x128xf32>
    %509 = arith.addf %507, %508 : vector<8x128xf32>
    %cst_217 = arith.constant 1.000000e+00 : f32
    %510 = vector.broadcast %cst_217 : f32 to vector<8x128xf32>
    %511 = arith.mulf %495, %510 : vector<8x128xf32>
    %512 = arith.subf %491, %511 : vector<8x128xf32>
    %513 = vector.broadcast %5 : vector<1x128xf32> to vector<8x128xf32>
    %514 = arith.mulf %512, %513 : vector<8x128xf32>
    %cst_218 = arith.constant 1.000000e+00 : f32
    %515 = vector.broadcast %cst_218 : f32 to vector<1x128xf32>
    %516 = arith.mulf %6, %515 : vector<1x128xf32>
    %517 = vector.broadcast %516 : vector<1x128xf32> to vector<8x128xf32>
    %518 = arith.mulf %517, %509 : vector<8x128xf32>
    %519 = arith.addf %514, %518 : vector<8x128xf32>
    %c0_219 = arith.constant 0 : index
    %c0_220 = arith.constant 0 : index
    %520 = vector.load %arg25[%c0_219, %c0_220] : memref<8x128xf32, #tpu.memory_space<vmem>>, vector<8x128xf32>
    tpu.vector_store %arg25[%c0_219, %c0_220], %519 {strides = array<i32>} : memref<8x128xf32, #tpu.memory_space<vmem>>, vector<8x128xf32>,
    %cst_221 = arith.constant 1.000000e+00 : f32
    %521 = vector.broadcast %cst_221 : f32 to vector<8x128xf32>
    %522 = arith.cmpf ogt, %519, %521 : vector<8x128xf32>
    %523 = arith.extui %522 : vector<8x128xi1> to vector<8x128xi32>
    %524 = arith.sitofp %523 : vector<8x128xi32> to vector<8x128xf32>
    %525 = arith.truncf %524 : vector<8x128xf32> to vector<8x128xbf16>
    %cst_222 = arith.constant dense<0.000000e+00> : vector<8x512xf32>
    %526 = tpu.matmul %525, %15, %cst_222 {dimension_numbers = #tpu.dot_dimension_numbers<[1], [0], [0], [1], [0, 0, 1, 1], [], []>} : vector<8x128xbf16>, vector<128x512xbf16>, vector<8x512xf32> -> vector<8x512xf32>
    %527 = vector.broadcast %16 : vector<1x512xf32> to vector<8x512xf32>
    %528 = arith.addf %526, %527 : vector<8x512xf32>
    %c0_223 = arith.constant 0 : index
    %c0_224 = arith.constant 0 : index
    %529 = vector.load %arg27[%c0_223, %c0_224] : memref<8x128xf32, #tpu.memory_space<vmem>>, vector<8x128xf32>
    %cst_225 = arith.constant 1.000000e+00 : f32
    %530 = vector.broadcast %cst_225 : f32 to vector<8x128xf32>
    %531 = arith.cmpf ogt, %529, %530 : vector<8x128xf32>
    %532 = arith.extui %531 : vector<8x128xi1> to vector<8x128xi32>
    %533 = arith.sitofp %532 : vector<8x128xi32> to vector<8x128xf32>
    %c0_226 = arith.constant 0 : index
    %c0_227 = arith.constant 0 : index
    %534 = vector.load %arg28[%c0_226, %c0_227] : memref<8x512xf32, #tpu.memory_space<vmem>>, vector<8x512xf32>
    %535 = vector.broadcast %7 : vector<1x512xf32> to vector<8x512xf32>
    %536 = arith.mulf %535, %534 : vector<8x512xf32>
    %537 = vector.broadcast %8 : vector<1x512xf32> to vector<8x512xf32>
    %538 = arith.mulf %537, %528 : vector<8x512xf32>
    %539 = arith.addf %536, %538 : vector<8x512xf32>
    %c0_228 = arith.constant 0 : index
    %c0_229 = arith.constant 0 : index
    %540 = vector.load %arg28[%c0_228, %c0_229] : memref<8x512xf32, #tpu.memory_space<vmem>>, vector<8x512xf32>
    tpu.vector_store %arg28[%c0_228, %c0_229], %539 {strides = array<i32>} : memref<8x512xf32, #tpu.memory_space<vmem>>, vector<8x512xf32>,
    %541 = vector.extract_strided_slice %539 {offsets = [0, 0], sizes = [8, 128], strides = [1, 1]} : vector<8x512xf32> to vector<8x128xf32>
    %542 = vector.extract_strided_slice %539 {offsets = [0, 128], sizes = [8, 128], strides = [1, 1]} : vector<8x512xf32> to vector<8x128xf32>
    %543 = arith.addf %541, %542 : vector<8x128xf32>
    %544 = vector.extract_strided_slice %539 {offsets = [0, 256], sizes = [8, 128], strides = [1, 1]} : vector<8x512xf32> to vector<8x128xf32>
    %545 = arith.addf %543, %544 : vector<8x128xf32>
    %546 = vector.extract_strided_slice %539 {offsets = [0, 384], sizes = [8, 128], strides = [1, 1]} : vector<8x512xf32> to vector<8x128xf32>
    %547 = arith.addf %545, %546 : vector<8x128xf32>
    %cst_230 = arith.constant 1.000000e+00 : f32
    %548 = vector.broadcast %cst_230 : f32 to vector<8x128xf32>
    %549 = arith.mulf %533, %548 : vector<8x128xf32>
    %550 = arith.subf %529, %549 : vector<8x128xf32>
    %551 = vector.broadcast %9 : vector<1x128xf32> to vector<8x128xf32>
    %552 = arith.mulf %550, %551 : vector<8x128xf32>
    %cst_231 = arith.constant 1.000000e+00 : f32
    %553 = vector.broadcast %cst_231 : f32 to vector<1x128xf32>
    %554 = arith.mulf %10, %553 : vector<1x128xf32>
    %555 = vector.broadcast %554 : vector<1x128xf32> to vector<8x128xf32>
    %556 = arith.mulf %555, %547 : vector<8x128xf32>
    %557 = arith.addf %552, %556 : vector<8x128xf32>
    %c0_232 = arith.constant 0 : index
    %c0_233 = arith.constant 0 : index
    %558 = vector.load %arg27[%c0_232, %c0_233] : memref<8x128xf32, #tpu.memory_space<vmem>>, vector<8x128xf32>
    tpu.vector_store %arg27[%c0_232, %c0_233], %557 {strides = array<i32>} : memref<8x128xf32, #tpu.memory_space<vmem>>, vector<8x128xf32>,
    %cst_234 = arith.constant 1.000000e+00 : f32
    %559 = vector.broadcast %cst_234 : f32 to vector<8x128xf32>
    %560 = arith.cmpf ogt, %557, %559 : vector<8x128xf32>
    %561 = arith.extui %560 : vector<8x128xi1> to vector<8x128xi32>
    %562 = arith.sitofp %561 : vector<8x128xi32> to vector<8x128xf32>
    %563 = arith.truncf %562 : vector<8x128xf32> to vector<8x128xbf16>
    %cst_235 = arith.constant dense<0.000000e+00> : vector<8x512xf32>
    %564 = tpu.matmul %563, %17, %cst_235 {dimension_numbers = #tpu.dot_dimension_numbers<[1], [0], [0], [1], [0, 0, 1, 1], [], []>} : vector<8x128xbf16>, vector<128x512xbf16>, vector<8x512xf32> -> vector<8x512xf32>
    %565 = vector.broadcast %18 : vector<1x512xf32> to vector<8x512xf32>
    %566 = arith.addf %564, %565 : vector<8x512xf32>
    %c0_236 = arith.constant 0 : index
    %c0_237 = arith.constant 0 : index
    %567 = vector.load %arg29[%c0_236, %c0_237] : memref<8x128xf32, #tpu.memory_space<vmem>>, vector<8x128xf32>
    %cst_238 = arith.constant 1.000000e+00 : f32
    %568 = vector.broadcast %cst_238 : f32 to vector<8x128xf32>
    %569 = arith.cmpf ogt, %567, %568 : vector<8x128xf32>
    %570 = arith.extui %569 : vector<8x128xi1> to vector<8x128xi32>
    %571 = arith.sitofp %570 : vector<8x128xi32> to vector<8x128xf32>
    %c0_239 = arith.constant 0 : index
    %c0_240 = arith.constant 0 : index
    %572 = vector.load %arg30[%c0_239, %c0_240] : memref<8x512xf32, #tpu.memory_space<vmem>>, vector<8x512xf32>
    %573 = vector.broadcast %11 : vector<1x512xf32> to vector<8x512xf32>
    %574 = arith.mulf %573, %572 : vector<8x512xf32>
    %575 = vector.broadcast %12 : vector<1x512xf32> to vector<8x512xf32>
    %576 = arith.mulf %575, %566 : vector<8x512xf32>
    %577 = arith.addf %574, %576 : vector<8x512xf32>
    %c0_241 = arith.constant 0 : index
    %c0_242 = arith.constant 0 : index
    %578 = vector.load %arg30[%c0_241, %c0_242] : memref<8x512xf32, #tpu.memory_space<vmem>>, vector<8x512xf32>
    tpu.vector_store %arg30[%c0_241, %c0_242], %577 {strides = array<i32>} : memref<8x512xf32, #tpu.memory_space<vmem>>, vector<8x512xf32>,
    %579 = vector.extract_strided_slice %577 {offsets = [0, 0], sizes = [8, 128], strides = [1, 1]} : vector<8x512xf32> to vector<8x128xf32>
    %580 = vector.extract_strided_slice %577 {offsets = [0, 128], sizes = [8, 128], strides = [1, 1]} : vector<8x512xf32> to vector<8x128xf32>
    %581 = arith.addf %579, %580 : vector<8x128xf32>
    %582 = vector.extract_strided_slice %577 {offsets = [0, 256], sizes = [8, 128], strides = [1, 1]} : vector<8x512xf32> to vector<8x128xf32>
    %583 = arith.addf %581, %582 : vector<8x128xf32>
    %584 = vector.extract_strided_slice %577 {offsets = [0, 384], sizes = [8, 128], strides = [1, 1]} : vector<8x512xf32> to vector<8x128xf32>
    %585 = arith.addf %583, %584 : vector<8x128xf32>
    %cst_243 = arith.constant 1.000000e+00 : f32
    %586 = vector.broadcast %cst_243 : f32 to vector<8x128xf32>
    %587 = arith.mulf %571, %586 : vector<8x128xf32>
    %588 = arith.subf %567, %587 : vector<8x128xf32>
    %589 = vector.broadcast %13 : vector<1x128xf32> to vector<8x128xf32>
    %590 = arith.mulf %588, %589 : vector<8x128xf32>
    %cst_244 = arith.constant 1.000000e+00 : f32
    %591 = vector.broadcast %cst_244 : f32 to vector<1x128xf32>
    %592 = arith.mulf %14, %591 : vector<1x128xf32>
    %593 = vector.broadcast %592 : vector<1x128xf32> to vector<8x128xf32>
    %594 = arith.mulf %593, %585 : vector<8x128xf32>
    %595 = arith.addf %590, %594 : vector<8x128xf32>
    %c0_245 = arith.constant 0 : index
    %c0_246 = arith.constant 0 : index
    %596 = vector.load %arg29[%c0_245, %c0_246] : memref<8x128xf32, #tpu.memory_space<vmem>>, vector<8x128xf32>
    tpu.vector_store %arg29[%c0_245, %c0_246], %595 {strides = array<i32>} : memref<8x128xf32, #tpu.memory_space<vmem>>, vector<8x128xf32>,
    %cst_247 = arith.constant 1.000000e+00 : f32
    %597 = vector.broadcast %cst_247 : f32 to vector<8x128xf32>
    %598 = arith.cmpf ogt, %595, %597 : vector<8x128xf32>
    %599 = arith.extui %598 : vector<8x128xi1> to vector<8x128xi32>
    %600 = arith.sitofp %599 : vector<8x128xi32> to vector<8x128xf32>
    %c0_248 = arith.constant 0 : index
    %c0_249 = arith.constant 0 : index
    %601 = vector.load %arg31[%c0_248, %c0_249] : memref<8x128xf32, #tpu.memory_space<vmem>>, vector<8x128xf32>
    %602 = arith.addf %601, %600 : vector<8x128xf32>
    %c0_250 = arith.constant 0 : index
    %c0_251 = arith.constant 0 : index
    %603 = vector.load %arg31[%c0_250, %c0_251] : memref<8x128xf32, #tpu.memory_space<vmem>>, vector<8x128xf32>
    tpu.vector_store %arg31[%c0_250, %c0_251], %602 {strides = array<i32>} : memref<8x128xf32, #tpu.memory_space<vmem>>, vector<8x128xf32>,
    %c5_i32 = arith.constant 5 : i32
    %604 = arith.index_cast %c5_i32 : i32 to index
    %c0_252 = arith.constant 0 : index
    %c0_253 = arith.constant 0 : index
    %605 = vector.load %arg2[%604, %c0_252, %c0_253] : memref<8x8x512xbf16, #tpu.memory_space<vmem>>, vector<1x8x512xbf16>
    %606 = vector.shape_cast %605 : vector<1x8x512xbf16> to vector<8x512xbf16>
    %607 = arith.extf %606 : vector<8x512xbf16> to vector<8x512xf32>
    %c0_254 = arith.constant 0 : index
    %c0_255 = arith.constant 0 : index
    %608 = vector.load %arg25[%c0_254, %c0_255] : memref<8x128xf32, #tpu.memory_space<vmem>>, vector<8x128xf32>
    %cst_256 = arith.constant 1.000000e+00 : f32
    %609 = vector.broadcast %cst_256 : f32 to vector<8x128xf32>
    %610 = arith.cmpf ogt, %608, %609 : vector<8x128xf32>
    %611 = arith.extui %610 : vector<8x128xi1> to vector<8x128xi32>
    %612 = arith.sitofp %611 : vector<8x128xi32> to vector<8x128xf32>
    %c0_257 = arith.constant 0 : index
    %c0_258 = arith.constant 0 : index
    %613 = vector.load %arg26[%c0_257, %c0_258] : memref<8x512xf32, #tpu.memory_space<vmem>>, vector<8x512xf32>
    %614 = vector.broadcast %3 : vector<1x512xf32> to vector<8x512xf32>
    %615 = arith.mulf %614, %613 : vector<8x512xf32>
    %616 = vector.broadcast %4 : vector<1x512xf32> to vector<8x512xf32>
    %617 = arith.mulf %616, %607 : vector<8x512xf32>
    %618 = arith.addf %615, %617 : vector<8x512xf32>
    %c0_259 = arith.constant 0 : index
    %c0_260 = arith.constant 0 : index
    %619 = vector.load %arg26[%c0_259, %c0_260] : memref<8x512xf32, #tpu.memory_space<vmem>>, vector<8x512xf32>
    tpu.vector_store %arg26[%c0_259, %c0_260], %618 {strides = array<i32>} : memref<8x512xf32, #tpu.memory_space<vmem>>, vector<8x512xf32>,
    %620 = vector.extract_strided_slice %618 {offsets = [0, 0], sizes = [8, 128], strides = [1, 1]} : vector<8x512xf32> to vector<8x128xf32>
    %621 = vector.extract_strided_slice %618 {offsets = [0, 128], sizes = [8, 128], strides = [1, 1]} : vector<8x512xf32> to vector<8x128xf32>
    %622 = arith.addf %620, %621 : vector<8x128xf32>
    %623 = vector.extract_strided_slice %618 {offsets = [0, 256], sizes = [8, 128], strides = [1, 1]} : vector<8x512xf32> to vector<8x128xf32>
    %624 = arith.addf %622, %623 : vector<8x128xf32>
    %625 = vector.extract_strided_slice %618 {offsets = [0, 384], sizes = [8, 128], strides = [1, 1]} : vector<8x512xf32> to vector<8x128xf32>
    %626 = arith.addf %624, %625 : vector<8x128xf32>
    %cst_261 = arith.constant 1.000000e+00 : f32
    %627 = vector.broadcast %cst_261 : f32 to vector<8x128xf32>
    %628 = arith.mulf %612, %627 : vector<8x128xf32>
    %629 = arith.subf %608, %628 : vector<8x128xf32>
    %630 = vector.broadcast %5 : vector<1x128xf32> to vector<8x128xf32>
    %631 = arith.mulf %629, %630 : vector<8x128xf32>
    %cst_262 = arith.constant 1.000000e+00 : f32
    %632 = vector.broadcast %cst_262 : f32 to vector<1x128xf32>
    %633 = arith.mulf %6, %632 : vector<1x128xf32>
    %634 = vector.broadcast %633 : vector<1x128xf32> to vector<8x128xf32>
    %635 = arith.mulf %634, %626 : vector<8x128xf32>
    %636 = arith.addf %631, %635 : vector<8x128xf32>
    %c0_263 = arith.constant 0 : index
    %c0_264 = arith.constant 0 : index
    %637 = vector.load %arg25[%c0_263, %c0_264] : memref<8x128xf32, #tpu.memory_space<vmem>>, vector<8x128xf32>
    tpu.vector_store %arg25[%c0_263, %c0_264], %636 {strides = array<i32>} : memref<8x128xf32, #tpu.memory_space<vmem>>, vector<8x128xf32>,
    %cst_265 = arith.constant 1.000000e+00 : f32
    %638 = vector.broadcast %cst_265 : f32 to vector<8x128xf32>
    %639 = arith.cmpf ogt, %636, %638 : vector<8x128xf32>
    %640 = arith.extui %639 : vector<8x128xi1> to vector<8x128xi32>
    %641 = arith.sitofp %640 : vector<8x128xi32> to vector<8x128xf32>
    %642 = arith.truncf %641 : vector<8x128xf32> to vector<8x128xbf16>
    %cst_266 = arith.constant dense<0.000000e+00> : vector<8x512xf32>
    %643 = tpu.matmul %642, %15, %cst_266 {dimension_numbers = #tpu.dot_dimension_numbers<[1], [0], [0], [1], [0, 0, 1, 1], [], []>} : vector<8x128xbf16>, vector<128x512xbf16>, vector<8x512xf32> -> vector<8x512xf32>
    %644 = vector.broadcast %16 : vector<1x512xf32> to vector<8x512xf32>
    %645 = arith.addf %643, %644 : vector<8x512xf32>
    %c0_267 = arith.constant 0 : index
    %c0_268 = arith.constant 0 : index
    %646 = vector.load %arg27[%c0_267, %c0_268] : memref<8x128xf32, #tpu.memory_space<vmem>>, vector<8x128xf32>
    %cst_269 = arith.constant 1.000000e+00 : f32
    %647 = vector.broadcast %cst_269 : f32 to vector<8x128xf32>
    %648 = arith.cmpf ogt, %646, %647 : vector<8x128xf32>
    %649 = arith.extui %648 : vector<8x128xi1> to vector<8x128xi32>
    %650 = arith.sitofp %649 : vector<8x128xi32> to vector<8x128xf32>
    %c0_270 = arith.constant 0 : index
    %c0_271 = arith.constant 0 : index
    %651 = vector.load %arg28[%c0_270, %c0_271] : memref<8x512xf32, #tpu.memory_space<vmem>>, vector<8x512xf32>
    %652 = vector.broadcast %7 : vector<1x512xf32> to vector<8x512xf32>
    %653 = arith.mulf %652, %651 : vector<8x512xf32>
    %654 = vector.broadcast %8 : vector<1x512xf32> to vector<8x512xf32>
    %655 = arith.mulf %654, %645 : vector<8x512xf32>
    %656 = arith.addf %653, %655 : vector<8x512xf32>
    %c0_272 = arith.constant 0 : index
    %c0_273 = arith.constant 0 : index
    %657 = vector.load %arg28[%c0_272, %c0_273] : memref<8x512xf32, #tpu.memory_space<vmem>>, vector<8x512xf32>
    tpu.vector_store %arg28[%c0_272, %c0_273], %656 {strides = array<i32>} : memref<8x512xf32, #tpu.memory_space<vmem>>, vector<8x512xf32>,
    %658 = vector.extract_strided_slice %656 {offsets = [0, 0], sizes = [8, 128], strides = [1, 1]} : vector<8x512xf32> to vector<8x128xf32>
    %659 = vector.extract_strided_slice %656 {offsets = [0, 128], sizes = [8, 128], strides = [1, 1]} : vector<8x512xf32> to vector<8x128xf32>
    %660 = arith.addf %658, %659 : vector<8x128xf32>
    %661 = vector.extract_strided_slice %656 {offsets = [0, 256], sizes = [8, 128], strides = [1, 1]} : vector<8x512xf32> to vector<8x128xf32>
    %662 = arith.addf %660, %661 : vector<8x128xf32>
    %663 = vector.extract_strided_slice %656 {offsets = [0, 384], sizes = [8, 128], strides = [1, 1]} : vector<8x512xf32> to vector<8x128xf32>
    %664 = arith.addf %662, %663 : vector<8x128xf32>
    %cst_274 = arith.constant 1.000000e+00 : f32
    %665 = vector.broadcast %cst_274 : f32 to vector<8x128xf32>
    %666 = arith.mulf %650, %665 : vector<8x128xf32>
    %667 = arith.subf %646, %666 : vector<8x128xf32>
    %668 = vector.broadcast %9 : vector<1x128xf32> to vector<8x128xf32>
    %669 = arith.mulf %667, %668 : vector<8x128xf32>
    %cst_275 = arith.constant 1.000000e+00 : f32
    %670 = vector.broadcast %cst_275 : f32 to vector<1x128xf32>
    %671 = arith.mulf %10, %670 : vector<1x128xf32>
    %672 = vector.broadcast %671 : vector<1x128xf32> to vector<8x128xf32>
    %673 = arith.mulf %672, %664 : vector<8x128xf32>
    %674 = arith.addf %669, %673 : vector<8x128xf32>
    %c0_276 = arith.constant 0 : index
    %c0_277 = arith.constant 0 : index
    %675 = vector.load %arg27[%c0_276, %c0_277] : memref<8x128xf32, #tpu.memory_space<vmem>>, vector<8x128xf32>
    tpu.vector_store %arg27[%c0_276, %c0_277], %674 {strides = array<i32>} : memref<8x128xf32, #tpu.memory_space<vmem>>, vector<8x128xf32>,
    %cst_278 = arith.constant 1.000000e+00 : f32
    %676 = vector.broadcast %cst_278 : f32 to vector<8x128xf32>
    %677 = arith.cmpf ogt, %674, %676 : vector<8x128xf32>
    %678 = arith.extui %677 : vector<8x128xi1> to vector<8x128xi32>
    %679 = arith.sitofp %678 : vector<8x128xi32> to vector<8x128xf32>
    %680 = arith.truncf %679 : vector<8x128xf32> to vector<8x128xbf16>
    %cst_279 = arith.constant dense<0.000000e+00> : vector<8x512xf32>
    %681 = tpu.matmul %680, %17, %cst_279 {dimension_numbers = #tpu.dot_dimension_numbers<[1], [0], [0], [1], [0, 0, 1, 1], [], []>} : vector<8x128xbf16>, vector<128x512xbf16>, vector<8x512xf32> -> vector<8x512xf32>
    %682 = vector.broadcast %18 : vector<1x512xf32> to vector<8x512xf32>
    %683 = arith.addf %681, %682 : vector<8x512xf32>
    %c0_280 = arith.constant 0 : index
    %c0_281 = arith.constant 0 : index
    %684 = vector.load %arg29[%c0_280, %c0_281] : memref<8x128xf32, #tpu.memory_space<vmem>>, vector<8x128xf32>
    %cst_282 = arith.constant 1.000000e+00 : f32
    %685 = vector.broadcast %cst_282 : f32 to vector<8x128xf32>
    %686 = arith.cmpf ogt, %684, %685 : vector<8x128xf32>
    %687 = arith.extui %686 : vector<8x128xi1> to vector<8x128xi32>
    %688 = arith.sitofp %687 : vector<8x128xi32> to vector<8x128xf32>
    %c0_283 = arith.constant 0 : index
    %c0_284 = arith.constant 0 : index
    %689 = vector.load %arg30[%c0_283, %c0_284] : memref<8x512xf32, #tpu.memory_space<vmem>>, vector<8x512xf32>
    %690 = vector.broadcast %11 : vector<1x512xf32> to vector<8x512xf32>
    %691 = arith.mulf %690, %689 : vector<8x512xf32>
    %692 = vector.broadcast %12 : vector<1x512xf32> to vector<8x512xf32>
    %693 = arith.mulf %692, %683 : vector<8x512xf32>
    %694 = arith.addf %691, %693 : vector<8x512xf32>
    %c0_285 = arith.constant 0 : index
    %c0_286 = arith.constant 0 : index
    %695 = vector.load %arg30[%c0_285, %c0_286] : memref<8x512xf32, #tpu.memory_space<vmem>>, vector<8x512xf32>
    tpu.vector_store %arg30[%c0_285, %c0_286], %694 {strides = array<i32>} : memref<8x512xf32, #tpu.memory_space<vmem>>, vector<8x512xf32>,
    %696 = vector.extract_strided_slice %694 {offsets = [0, 0], sizes = [8, 128], strides = [1, 1]} : vector<8x512xf32> to vector<8x128xf32>
    %697 = vector.extract_strided_slice %694 {offsets = [0, 128], sizes = [8, 128], strides = [1, 1]} : vector<8x512xf32> to vector<8x128xf32>
    %698 = arith.addf %696, %697 : vector<8x128xf32>
    %699 = vector.extract_strided_slice %694 {offsets = [0, 256], sizes = [8, 128], strides = [1, 1]} : vector<8x512xf32> to vector<8x128xf32>
    %700 = arith.addf %698, %699 : vector<8x128xf32>
    %701 = vector.extract_strided_slice %694 {offsets = [0, 384], sizes = [8, 128], strides = [1, 1]} : vector<8x512xf32> to vector<8x128xf32>
    %702 = arith.addf %700, %701 : vector<8x128xf32>
    %cst_287 = arith.constant 1.000000e+00 : f32
    %703 = vector.broadcast %cst_287 : f32 to vector<8x128xf32>
    %704 = arith.mulf %688, %703 : vector<8x128xf32>
    %705 = arith.subf %684, %704 : vector<8x128xf32>
    %706 = vector.broadcast %13 : vector<1x128xf32> to vector<8x128xf32>
    %707 = arith.mulf %705, %706 : vector<8x128xf32>
    %cst_288 = arith.constant 1.000000e+00 : f32
    %708 = vector.broadcast %cst_288 : f32 to vector<1x128xf32>
    %709 = arith.mulf %14, %708 : vector<1x128xf32>
    %710 = vector.broadcast %709 : vector<1x128xf32> to vector<8x128xf32>
    %711 = arith.mulf %710, %702 : vector<8x128xf32>
    %712 = arith.addf %707, %711 : vector<8x128xf32>
    %c0_289 = arith.constant 0 : index
    %c0_290 = arith.constant 0 : index
    %713 = vector.load %arg29[%c0_289, %c0_290] : memref<8x128xf32, #tpu.memory_space<vmem>>, vector<8x128xf32>
    tpu.vector_store %arg29[%c0_289, %c0_290], %712 {strides = array<i32>} : memref<8x128xf32, #tpu.memory_space<vmem>>, vector<8x128xf32>,
    %cst_291 = arith.constant 1.000000e+00 : f32
    %714 = vector.broadcast %cst_291 : f32 to vector<8x128xf32>
    %715 = arith.cmpf ogt, %712, %714 : vector<8x128xf32>
    %716 = arith.extui %715 : vector<8x128xi1> to vector<8x128xi32>
    %717 = arith.sitofp %716 : vector<8x128xi32> to vector<8x128xf32>
    %c0_292 = arith.constant 0 : index
    %c0_293 = arith.constant 0 : index
    %718 = vector.load %arg31[%c0_292, %c0_293] : memref<8x128xf32, #tpu.memory_space<vmem>>, vector<8x128xf32>
    %719 = arith.addf %718, %717 : vector<8x128xf32>
    %c0_294 = arith.constant 0 : index
    %c0_295 = arith.constant 0 : index
    %720 = vector.load %arg31[%c0_294, %c0_295] : memref<8x128xf32, #tpu.memory_space<vmem>>, vector<8x128xf32>
    tpu.vector_store %arg31[%c0_294, %c0_295], %719 {strides = array<i32>} : memref<8x128xf32, #tpu.memory_space<vmem>>, vector<8x128xf32>,
    %c6_i32 = arith.constant 6 : i32
    %721 = arith.index_cast %c6_i32 : i32 to index
    %c0_296 = arith.constant 0 : index
    %c0_297 = arith.constant 0 : index
    %722 = vector.load %arg2[%721, %c0_296, %c0_297] : memref<8x8x512xbf16, #tpu.memory_space<vmem>>, vector<1x8x512xbf16>
    %723 = vector.shape_cast %722 : vector<1x8x512xbf16> to vector<8x512xbf16>
    %724 = arith.extf %723 : vector<8x512xbf16> to vector<8x512xf32>
    %c0_298 = arith.constant 0 : index
    %c0_299 = arith.constant 0 : index
    %725 = vector.load %arg25[%c0_298, %c0_299] : memref<8x128xf32, #tpu.memory_space<vmem>>, vector<8x128xf32>
    %cst_300 = arith.constant 1.000000e+00 : f32
    %726 = vector.broadcast %cst_300 : f32 to vector<8x128xf32>
    %727 = arith.cmpf ogt, %725, %726 : vector<8x128xf32>
    %728 = arith.extui %727 : vector<8x128xi1> to vector<8x128xi32>
    %729 = arith.sitofp %728 : vector<8x128xi32> to vector<8x128xf32>
    %c0_301 = arith.constant 0 : index
    %c0_302 = arith.constant 0 : index
    %730 = vector.load %arg26[%c0_301, %c0_302] : memref<8x512xf32, #tpu.memory_space<vmem>>, vector<8x512xf32>
    %731 = vector.broadcast %3 : vector<1x512xf32> to vector<8x512xf32>
    %732 = arith.mulf %731, %730 : vector<8x512xf32>
    %733 = vector.broadcast %4 : vector<1x512xf32> to vector<8x512xf32>
    %734 = arith.mulf %733, %724 : vector<8x512xf32>
    %735 = arith.addf %732, %734 : vector<8x512xf32>
    %c0_303 = arith.constant 0 : index
    %c0_304 = arith.constant 0 : index
    %736 = vector.load %arg26[%c0_303, %c0_304] : memref<8x512xf32, #tpu.memory_space<vmem>>, vector<8x512xf32>
    tpu.vector_store %arg26[%c0_303, %c0_304], %735 {strides = array<i32>} : memref<8x512xf32, #tpu.memory_space<vmem>>, vector<8x512xf32>,
    %737 = vector.extract_strided_slice %735 {offsets = [0, 0], sizes = [8, 128], strides = [1, 1]} : vector<8x512xf32> to vector<8x128xf32>
    %738 = vector.extract_strided_slice %735 {offsets = [0, 128], sizes = [8, 128], strides = [1, 1]} : vector<8x512xf32> to vector<8x128xf32>
    %739 = arith.addf %737, %738 : vector<8x128xf32>
    %740 = vector.extract_strided_slice %735 {offsets = [0, 256], sizes = [8, 128], strides = [1, 1]} : vector<8x512xf32> to vector<8x128xf32>
    %741 = arith.addf %739, %740 : vector<8x128xf32>
    %742 = vector.extract_strided_slice %735 {offsets = [0, 384], sizes = [8, 128], strides = [1, 1]} : vector<8x512xf32> to vector<8x128xf32>
    %743 = arith.addf %741, %742 : vector<8x128xf32>
    %cst_305 = arith.constant 1.000000e+00 : f32
    %744 = vector.broadcast %cst_305 : f32 to vector<8x128xf32>
    %745 = arith.mulf %729, %744 : vector<8x128xf32>
    %746 = arith.subf %725, %745 : vector<8x128xf32>
    %747 = vector.broadcast %5 : vector<1x128xf32> to vector<8x128xf32>
    %748 = arith.mulf %746, %747 : vector<8x128xf32>
    %cst_306 = arith.constant 1.000000e+00 : f32
    %749 = vector.broadcast %cst_306 : f32 to vector<1x128xf32>
    %750 = arith.mulf %6, %749 : vector<1x128xf32>
    %751 = vector.broadcast %750 : vector<1x128xf32> to vector<8x128xf32>
    %752 = arith.mulf %751, %743 : vector<8x128xf32>
    %753 = arith.addf %748, %752 : vector<8x128xf32>
    %c0_307 = arith.constant 0 : index
    %c0_308 = arith.constant 0 : index
    %754 = vector.load %arg25[%c0_307, %c0_308] : memref<8x128xf32, #tpu.memory_space<vmem>>, vector<8x128xf32>
    tpu.vector_store %arg25[%c0_307, %c0_308], %753 {strides = array<i32>} : memref<8x128xf32, #tpu.memory_space<vmem>>, vector<8x128xf32>,
    %cst_309 = arith.constant 1.000000e+00 : f32
    %755 = vector.broadcast %cst_309 : f32 to vector<8x128xf32>
    %756 = arith.cmpf ogt, %753, %755 : vector<8x128xf32>
    %757 = arith.extui %756 : vector<8x128xi1> to vector<8x128xi32>
    %758 = arith.sitofp %757 : vector<8x128xi32> to vector<8x128xf32>
    %759 = arith.truncf %758 : vector<8x128xf32> to vector<8x128xbf16>
    %cst_310 = arith.constant dense<0.000000e+00> : vector<8x512xf32>
    %760 = tpu.matmul %759, %15, %cst_310 {dimension_numbers = #tpu.dot_dimension_numbers<[1], [0], [0], [1], [0, 0, 1, 1], [], []>} : vector<8x128xbf16>, vector<128x512xbf16>, vector<8x512xf32> -> vector<8x512xf32>
    %761 = vector.broadcast %16 : vector<1x512xf32> to vector<8x512xf32>
    %762 = arith.addf %760, %761 : vector<8x512xf32>
    %c0_311 = arith.constant 0 : index
    %c0_312 = arith.constant 0 : index
    %763 = vector.load %arg27[%c0_311, %c0_312] : memref<8x128xf32, #tpu.memory_space<vmem>>, vector<8x128xf32>
    %cst_313 = arith.constant 1.000000e+00 : f32
    %764 = vector.broadcast %cst_313 : f32 to vector<8x128xf32>
    %765 = arith.cmpf ogt, %763, %764 : vector<8x128xf32>
    %766 = arith.extui %765 : vector<8x128xi1> to vector<8x128xi32>
    %767 = arith.sitofp %766 : vector<8x128xi32> to vector<8x128xf32>
    %c0_314 = arith.constant 0 : index
    %c0_315 = arith.constant 0 : index
    %768 = vector.load %arg28[%c0_314, %c0_315] : memref<8x512xf32, #tpu.memory_space<vmem>>, vector<8x512xf32>
    %769 = vector.broadcast %7 : vector<1x512xf32> to vector<8x512xf32>
    %770 = arith.mulf %769, %768 : vector<8x512xf32>
    %771 = vector.broadcast %8 : vector<1x512xf32> to vector<8x512xf32>
    %772 = arith.mulf %771, %762 : vector<8x512xf32>
    %773 = arith.addf %770, %772 : vector<8x512xf32>
    %c0_316 = arith.constant 0 : index
    %c0_317 = arith.constant 0 : index
    %774 = vector.load %arg28[%c0_316, %c0_317] : memref<8x512xf32, #tpu.memory_space<vmem>>, vector<8x512xf32>
    tpu.vector_store %arg28[%c0_316, %c0_317], %773 {strides = array<i32>} : memref<8x512xf32, #tpu.memory_space<vmem>>, vector<8x512xf32>,
    %775 = vector.extract_strided_slice %773 {offsets = [0, 0], sizes = [8, 128], strides = [1, 1]} : vector<8x512xf32> to vector<8x128xf32>
    %776 = vector.extract_strided_slice %773 {offsets = [0, 128], sizes = [8, 128], strides = [1, 1]} : vector<8x512xf32> to vector<8x128xf32>
    %777 = arith.addf %775, %776 : vector<8x128xf32>
    %778 = vector.extract_strided_slice %773 {offsets = [0, 256], sizes = [8, 128], strides = [1, 1]} : vector<8x512xf32> to vector<8x128xf32>
    %779 = arith.addf %777, %778 : vector<8x128xf32>
    %780 = vector.extract_strided_slice %773 {offsets = [0, 384], sizes = [8, 128], strides = [1, 1]} : vector<8x512xf32> to vector<8x128xf32>
    %781 = arith.addf %779, %780 : vector<8x128xf32>
    %cst_318 = arith.constant 1.000000e+00 : f32
    %782 = vector.broadcast %cst_318 : f32 to vector<8x128xf32>
    %783 = arith.mulf %767, %782 : vector<8x128xf32>
    %784 = arith.subf %763, %783 : vector<8x128xf32>
    %785 = vector.broadcast %9 : vector<1x128xf32> to vector<8x128xf32>
    %786 = arith.mulf %784, %785 : vector<8x128xf32>
    %cst_319 = arith.constant 1.000000e+00 : f32
    %787 = vector.broadcast %cst_319 : f32 to vector<1x128xf32>
    %788 = arith.mulf %10, %787 : vector<1x128xf32>
    %789 = vector.broadcast %788 : vector<1x128xf32> to vector<8x128xf32>
    %790 = arith.mulf %789, %781 : vector<8x128xf32>
    %791 = arith.addf %786, %790 : vector<8x128xf32>
    %c0_320 = arith.constant 0 : index
    %c0_321 = arith.constant 0 : index
    %792 = vector.load %arg27[%c0_320, %c0_321] : memref<8x128xf32, #tpu.memory_space<vmem>>, vector<8x128xf32>
    tpu.vector_store %arg27[%c0_320, %c0_321], %791 {strides = array<i32>} : memref<8x128xf32, #tpu.memory_space<vmem>>, vector<8x128xf32>,
    %cst_322 = arith.constant 1.000000e+00 : f32
    %793 = vector.broadcast %cst_322 : f32 to vector<8x128xf32>
    %794 = arith.cmpf ogt, %791, %793 : vector<8x128xf32>
    %795 = arith.extui %794 : vector<8x128xi1> to vector<8x128xi32>
    %796 = arith.sitofp %795 : vector<8x128xi32> to vector<8x128xf32>
    %797 = arith.truncf %796 : vector<8x128xf32> to vector<8x128xbf16>
    %cst_323 = arith.constant dense<0.000000e+00> : vector<8x512xf32>
    %798 = tpu.matmul %797, %17, %cst_323 {dimension_numbers = #tpu.dot_dimension_numbers<[1], [0], [0], [1], [0, 0, 1, 1], [], []>} : vector<8x128xbf16>, vector<128x512xbf16>, vector<8x512xf32> -> vector<8x512xf32>
    %799 = vector.broadcast %18 : vector<1x512xf32> to vector<8x512xf32>
    %800 = arith.addf %798, %799 : vector<8x512xf32>
    %c0_324 = arith.constant 0 : index
    %c0_325 = arith.constant 0 : index
    %801 = vector.load %arg29[%c0_324, %c0_325] : memref<8x128xf32, #tpu.memory_space<vmem>>, vector<8x128xf32>
    %cst_326 = arith.constant 1.000000e+00 : f32
    %802 = vector.broadcast %cst_326 : f32 to vector<8x128xf32>
    %803 = arith.cmpf ogt, %801, %802 : vector<8x128xf32>
    %804 = arith.extui %803 : vector<8x128xi1> to vector<8x128xi32>
    %805 = arith.sitofp %804 : vector<8x128xi32> to vector<8x128xf32>
    %c0_327 = arith.constant 0 : index
    %c0_328 = arith.constant 0 : index
    %806 = vector.load %arg30[%c0_327, %c0_328] : memref<8x512xf32, #tpu.memory_space<vmem>>, vector<8x512xf32>
    %807 = vector.broadcast %11 : vector<1x512xf32> to vector<8x512xf32>
    %808 = arith.mulf %807, %806 : vector<8x512xf32>
    %809 = vector.broadcast %12 : vector<1x512xf32> to vector<8x512xf32>
    %810 = arith.mulf %809, %800 : vector<8x512xf32>
    %811 = arith.addf %808, %810 : vector<8x512xf32>
    %c0_329 = arith.constant 0 : index
    %c0_330 = arith.constant 0 : index
    %812 = vector.load %arg30[%c0_329, %c0_330] : memref<8x512xf32, #tpu.memory_space<vmem>>, vector<8x512xf32>
    tpu.vector_store %arg30[%c0_329, %c0_330], %811 {strides = array<i32>} : memref<8x512xf32, #tpu.memory_space<vmem>>, vector<8x512xf32>,
    %813 = vector.extract_strided_slice %811 {offsets = [0, 0], sizes = [8, 128], strides = [1, 1]} : vector<8x512xf32> to vector<8x128xf32>
    %814 = vector.extract_strided_slice %811 {offsets = [0, 128], sizes = [8, 128], strides = [1, 1]} : vector<8x512xf32> to vector<8x128xf32>
    %815 = arith.addf %813, %814 : vector<8x128xf32>
    %816 = vector.extract_strided_slice %811 {offsets = [0, 256], sizes = [8, 128], strides = [1, 1]} : vector<8x512xf32> to vector<8x128xf32>
    %817 = arith.addf %815, %816 : vector<8x128xf32>
    %818 = vector.extract_strided_slice %811 {offsets = [0, 384], sizes = [8, 128], strides = [1, 1]} : vector<8x512xf32> to vector<8x128xf32>
    %819 = arith.addf %817, %818 : vector<8x128xf32>
    %cst_331 = arith.constant 1.000000e+00 : f32
    %820 = vector.broadcast %cst_331 : f32 to vector<8x128xf32>
    %821 = arith.mulf %805, %820 : vector<8x128xf32>
    %822 = arith.subf %801, %821 : vector<8x128xf32>
    %823 = vector.broadcast %13 : vector<1x128xf32> to vector<8x128xf32>
    %824 = arith.mulf %822, %823 : vector<8x128xf32>
    %cst_332 = arith.constant 1.000000e+00 : f32
    %825 = vector.broadcast %cst_332 : f32 to vector<1x128xf32>
    %826 = arith.mulf %14, %825 : vector<1x128xf32>
    %827 = vector.broadcast %826 : vector<1x128xf32> to vector<8x128xf32>
    %828 = arith.mulf %827, %819 : vector<8x128xf32>
    %829 = arith.addf %824, %828 : vector<8x128xf32>
    %c0_333 = arith.constant 0 : index
    %c0_334 = arith.constant 0 : index
    %830 = vector.load %arg29[%c0_333, %c0_334] : memref<8x128xf32, #tpu.memory_space<vmem>>, vector<8x128xf32>
    tpu.vector_store %arg29[%c0_333, %c0_334], %829 {strides = array<i32>} : memref<8x128xf32, #tpu.memory_space<vmem>>, vector<8x128xf32>,
    %cst_335 = arith.constant 1.000000e+00 : f32
    %831 = vector.broadcast %cst_335 : f32 to vector<8x128xf32>
    %832 = arith.cmpf ogt, %829, %831 : vector<8x128xf32>
    %833 = arith.extui %832 : vector<8x128xi1> to vector<8x128xi32>
    %834 = arith.sitofp %833 : vector<8x128xi32> to vector<8x128xf32>
    %c0_336 = arith.constant 0 : index
    %c0_337 = arith.constant 0 : index
    %835 = vector.load %arg31[%c0_336, %c0_337] : memref<8x128xf32, #tpu.memory_space<vmem>>, vector<8x128xf32>
    %836 = arith.addf %835, %834 : vector<8x128xf32>
    %c0_338 = arith.constant 0 : index
    %c0_339 = arith.constant 0 : index
    %837 = vector.load %arg31[%c0_338, %c0_339] : memref<8x128xf32, #tpu.memory_space<vmem>>, vector<8x128xf32>
    tpu.vector_store %arg31[%c0_338, %c0_339], %836 {strides = array<i32>} : memref<8x128xf32, #tpu.memory_space<vmem>>, vector<8x128xf32>,
    %c7_i32 = arith.constant 7 : i32
    %838 = arith.index_cast %c7_i32 : i32 to index
    %c0_340 = arith.constant 0 : index
    %c0_341 = arith.constant 0 : index
    %839 = vector.load %arg2[%838, %c0_340, %c0_341] : memref<8x8x512xbf16, #tpu.memory_space<vmem>>, vector<1x8x512xbf16>
    %840 = vector.shape_cast %839 : vector<1x8x512xbf16> to vector<8x512xbf16>
    %841 = arith.extf %840 : vector<8x512xbf16> to vector<8x512xf32>
    %c0_342 = arith.constant 0 : index
    %c0_343 = arith.constant 0 : index
    %842 = vector.load %arg25[%c0_342, %c0_343] : memref<8x128xf32, #tpu.memory_space<vmem>>, vector<8x128xf32>
    %cst_344 = arith.constant 1.000000e+00 : f32
    %843 = vector.broadcast %cst_344 : f32 to vector<8x128xf32>
    %844 = arith.cmpf ogt, %842, %843 : vector<8x128xf32>
    %845 = arith.extui %844 : vector<8x128xi1> to vector<8x128xi32>
    %846 = arith.sitofp %845 : vector<8x128xi32> to vector<8x128xf32>
    %c0_345 = arith.constant 0 : index
    %c0_346 = arith.constant 0 : index
    %847 = vector.load %arg26[%c0_345, %c0_346] : memref<8x512xf32, #tpu.memory_space<vmem>>, vector<8x512xf32>
    %848 = vector.broadcast %3 : vector<1x512xf32> to vector<8x512xf32>
    %849 = arith.mulf %848, %847 : vector<8x512xf32>
    %850 = vector.broadcast %4 : vector<1x512xf32> to vector<8x512xf32>
    %851 = arith.mulf %850, %841 : vector<8x512xf32>
    %852 = arith.addf %849, %851 : vector<8x512xf32>
    %c0_347 = arith.constant 0 : index
    %c0_348 = arith.constant 0 : index
    %853 = vector.load %arg26[%c0_347, %c0_348] : memref<8x512xf32, #tpu.memory_space<vmem>>, vector<8x512xf32>
    tpu.vector_store %arg26[%c0_347, %c0_348], %852 {strides = array<i32>} : memref<8x512xf32, #tpu.memory_space<vmem>>, vector<8x512xf32>,
    %854 = vector.extract_strided_slice %852 {offsets = [0, 0], sizes = [8, 128], strides = [1, 1]} : vector<8x512xf32> to vector<8x128xf32>
    %855 = vector.extract_strided_slice %852 {offsets = [0, 128], sizes = [8, 128], strides = [1, 1]} : vector<8x512xf32> to vector<8x128xf32>
    %856 = arith.addf %854, %855 : vector<8x128xf32>
    %857 = vector.extract_strided_slice %852 {offsets = [0, 256], sizes = [8, 128], strides = [1, 1]} : vector<8x512xf32> to vector<8x128xf32>
    %858 = arith.addf %856, %857 : vector<8x128xf32>
    %859 = vector.extract_strided_slice %852 {offsets = [0, 384], sizes = [8, 128], strides = [1, 1]} : vector<8x512xf32> to vector<8x128xf32>
    %860 = arith.addf %858, %859 : vector<8x128xf32>
    %cst_349 = arith.constant 1.000000e+00 : f32
    %861 = vector.broadcast %cst_349 : f32 to vector<8x128xf32>
    %862 = arith.mulf %846, %861 : vector<8x128xf32>
    %863 = arith.subf %842, %862 : vector<8x128xf32>
    %864 = vector.broadcast %5 : vector<1x128xf32> to vector<8x128xf32>
    %865 = arith.mulf %863, %864 : vector<8x128xf32>
    %cst_350 = arith.constant 1.000000e+00 : f32
    %866 = vector.broadcast %cst_350 : f32 to vector<1x128xf32>
    %867 = arith.mulf %6, %866 : vector<1x128xf32>
    %868 = vector.broadcast %867 : vector<1x128xf32> to vector<8x128xf32>
    %869 = arith.mulf %868, %860 : vector<8x128xf32>
    %870 = arith.addf %865, %869 : vector<8x128xf32>
    %c0_351 = arith.constant 0 : index
    %c0_352 = arith.constant 0 : index
    %871 = vector.load %arg25[%c0_351, %c0_352] : memref<8x128xf32, #tpu.memory_space<vmem>>, vector<8x128xf32>
    tpu.vector_store %arg25[%c0_351, %c0_352], %870 {strides = array<i32>} : memref<8x128xf32, #tpu.memory_space<vmem>>, vector<8x128xf32>,
    %cst_353 = arith.constant 1.000000e+00 : f32
    %872 = vector.broadcast %cst_353 : f32 to vector<8x128xf32>
    %873 = arith.cmpf ogt, %870, %872 : vector<8x128xf32>
    %874 = arith.extui %873 : vector<8x128xi1> to vector<8x128xi32>
    %875 = arith.sitofp %874 : vector<8x128xi32> to vector<8x128xf32>
    %876 = arith.truncf %875 : vector<8x128xf32> to vector<8x128xbf16>
    %cst_354 = arith.constant dense<0.000000e+00> : vector<8x512xf32>
    %877 = tpu.matmul %876, %15, %cst_354 {dimension_numbers = #tpu.dot_dimension_numbers<[1], [0], [0], [1], [0, 0, 1, 1], [], []>} : vector<8x128xbf16>, vector<128x512xbf16>, vector<8x512xf32> -> vector<8x512xf32>
    %878 = vector.broadcast %16 : vector<1x512xf32> to vector<8x512xf32>
    %879 = arith.addf %877, %878 : vector<8x512xf32>
    %c0_355 = arith.constant 0 : index
    %c0_356 = arith.constant 0 : index
    %880 = vector.load %arg27[%c0_355, %c0_356] : memref<8x128xf32, #tpu.memory_space<vmem>>, vector<8x128xf32>
    %cst_357 = arith.constant 1.000000e+00 : f32
    %881 = vector.broadcast %cst_357 : f32 to vector<8x128xf32>
    %882 = arith.cmpf ogt, %880, %881 : vector<8x128xf32>
    %883 = arith.extui %882 : vector<8x128xi1> to vector<8x128xi32>
    %884 = arith.sitofp %883 : vector<8x128xi32> to vector<8x128xf32>
    %c0_358 = arith.constant 0 : index
    %c0_359 = arith.constant 0 : index
    %885 = vector.load %arg28[%c0_358, %c0_359] : memref<8x512xf32, #tpu.memory_space<vmem>>, vector<8x512xf32>
    %886 = vector.broadcast %7 : vector<1x512xf32> to vector<8x512xf32>
    %887 = arith.mulf %886, %885 : vector<8x512xf32>
    %888 = vector.broadcast %8 : vector<1x512xf32> to vector<8x512xf32>
    %889 = arith.mulf %888, %879 : vector<8x512xf32>
    %890 = arith.addf %887, %889 : vector<8x512xf32>
    %c0_360 = arith.constant 0 : index
    %c0_361 = arith.constant 0 : index
    %891 = vector.load %arg28[%c0_360, %c0_361] : memref<8x512xf32, #tpu.memory_space<vmem>>, vector<8x512xf32>
    tpu.vector_store %arg28[%c0_360, %c0_361], %890 {strides = array<i32>} : memref<8x512xf32, #tpu.memory_space<vmem>>, vector<8x512xf32>,
    %892 = vector.extract_strided_slice %890 {offsets = [0, 0], sizes = [8, 128], strides = [1, 1]} : vector<8x512xf32> to vector<8x128xf32>
    %893 = vector.extract_strided_slice %890 {offsets = [0, 128], sizes = [8, 128], strides = [1, 1]} : vector<8x512xf32> to vector<8x128xf32>
    %894 = arith.addf %892, %893 : vector<8x128xf32>
    %895 = vector.extract_strided_slice %890 {offsets = [0, 256], sizes = [8, 128], strides = [1, 1]} : vector<8x512xf32> to vector<8x128xf32>
    %896 = arith.addf %894, %895 : vector<8x128xf32>
    %897 = vector.extract_strided_slice %890 {offsets = [0, 384], sizes = [8, 128], strides = [1, 1]} : vector<8x512xf32> to vector<8x128xf32>
    %898 = arith.addf %896, %897 : vector<8x128xf32>
    %cst_362 = arith.constant 1.000000e+00 : f32
    %899 = vector.broadcast %cst_362 : f32 to vector<8x128xf32>
    %900 = arith.mulf %884, %899 : vector<8x128xf32>
    %901 = arith.subf %880, %900 : vector<8x128xf32>
    %902 = vector.broadcast %9 : vector<1x128xf32> to vector<8x128xf32>
    %903 = arith.mulf %901, %902 : vector<8x128xf32>
    %cst_363 = arith.constant 1.000000e+00 : f32
    %904 = vector.broadcast %cst_363 : f32 to vector<1x128xf32>
    %905 = arith.mulf %10, %904 : vector<1x128xf32>
    %906 = vector.broadcast %905 : vector<1x128xf32> to vector<8x128xf32>
    %907 = arith.mulf %906, %898 : vector<8x128xf32>
    %908 = arith.addf %903, %907 : vector<8x128xf32>
    %c0_364 = arith.constant 0 : index
    %c0_365 = arith.constant 0 : index
    %909 = vector.load %arg27[%c0_364, %c0_365] : memref<8x128xf32, #tpu.memory_space<vmem>>, vector<8x128xf32>
    tpu.vector_store %arg27[%c0_364, %c0_365], %908 {strides = array<i32>} : memref<8x128xf32, #tpu.memory_space<vmem>>, vector<8x128xf32>,
    %cst_366 = arith.constant 1.000000e+00 : f32
    %910 = vector.broadcast %cst_366 : f32 to vector<8x128xf32>
    %911 = arith.cmpf ogt, %908, %910 : vector<8x128xf32>
    %912 = arith.extui %911 : vector<8x128xi1> to vector<8x128xi32>
    %913 = arith.sitofp %912 : vector<8x128xi32> to vector<8x128xf32>
    %914 = arith.truncf %913 : vector<8x128xf32> to vector<8x128xbf16>
    %cst_367 = arith.constant dense<0.000000e+00> : vector<8x512xf32>
    %915 = tpu.matmul %914, %17, %cst_367 {dimension_numbers = #tpu.dot_dimension_numbers<[1], [0], [0], [1], [0, 0, 1, 1], [], []>} : vector<8x128xbf16>, vector<128x512xbf16>, vector<8x512xf32> -> vector<8x512xf32>
    %916 = vector.broadcast %18 : vector<1x512xf32> to vector<8x512xf32>
    %917 = arith.addf %915, %916 : vector<8x512xf32>
    %c0_368 = arith.constant 0 : index
    %c0_369 = arith.constant 0 : index
    %918 = vector.load %arg29[%c0_368, %c0_369] : memref<8x128xf32, #tpu.memory_space<vmem>>, vector<8x128xf32>
    %cst_370 = arith.constant 1.000000e+00 : f32
    %919 = vector.broadcast %cst_370 : f32 to vector<8x128xf32>
    %920 = arith.cmpf ogt, %918, %919 : vector<8x128xf32>
    %921 = arith.extui %920 : vector<8x128xi1> to vector<8x128xi32>
    %922 = arith.sitofp %921 : vector<8x128xi32> to vector<8x128xf32>
    %c0_371 = arith.constant 0 : index
    %c0_372 = arith.constant 0 : index
    %923 = vector.load %arg30[%c0_371, %c0_372] : memref<8x512xf32, #tpu.memory_space<vmem>>, vector<8x512xf32>
    %924 = vector.broadcast %11 : vector<1x512xf32> to vector<8x512xf32>
    %925 = arith.mulf %924, %923 : vector<8x512xf32>
    %926 = vector.broadcast %12 : vector<1x512xf32> to vector<8x512xf32>
    %927 = arith.mulf %926, %917 : vector<8x512xf32>
    %928 = arith.addf %925, %927 : vector<8x512xf32>
    %c0_373 = arith.constant 0 : index
    %c0_374 = arith.constant 0 : index
    %929 = vector.load %arg30[%c0_373, %c0_374] : memref<8x512xf32, #tpu.memory_space<vmem>>, vector<8x512xf32>
    tpu.vector_store %arg30[%c0_373, %c0_374], %928 {strides = array<i32>} : memref<8x512xf32, #tpu.memory_space<vmem>>, vector<8x512xf32>,
    %930 = vector.extract_strided_slice %928 {offsets = [0, 0], sizes = [8, 128], strides = [1, 1]} : vector<8x512xf32> to vector<8x128xf32>
    %931 = vector.extract_strided_slice %928 {offsets = [0, 128], sizes = [8, 128], strides = [1, 1]} : vector<8x512xf32> to vector<8x128xf32>
    %932 = arith.addf %930, %931 : vector<8x128xf32>
    %933 = vector.extract_strided_slice %928 {offsets = [0, 256], sizes = [8, 128], strides = [1, 1]} : vector<8x512xf32> to vector<8x128xf32>
    %934 = arith.addf %932, %933 : vector<8x128xf32>
    %935 = vector.extract_strided_slice %928 {offsets = [0, 384], sizes = [8, 128], strides = [1, 1]} : vector<8x512xf32> to vector<8x128xf32>
    %936 = arith.addf %934, %935 : vector<8x128xf32>
    %cst_375 = arith.constant 1.000000e+00 : f32
    %937 = vector.broadcast %cst_375 : f32 to vector<8x128xf32>
    %938 = arith.mulf %922, %937 : vector<8x128xf32>
    %939 = arith.subf %918, %938 : vector<8x128xf32>
    %940 = vector.broadcast %13 : vector<1x128xf32> to vector<8x128xf32>
    %941 = arith.mulf %939, %940 : vector<8x128xf32>
    %cst_376 = arith.constant 1.000000e+00 : f32
    %942 = vector.broadcast %cst_376 : f32 to vector<1x128xf32>
    %943 = arith.mulf %14, %942 : vector<1x128xf32>
    %944 = vector.broadcast %943 : vector<1x128xf32> to vector<8x128xf32>
    %945 = arith.mulf %944, %936 : vector<8x128xf32>
    %946 = arith.addf %941, %945 : vector<8x128xf32>
    %c0_377 = arith.constant 0 : index
    %c0_378 = arith.constant 0 : index
    %947 = vector.load %arg29[%c0_377, %c0_378] : memref<8x128xf32, #tpu.memory_space<vmem>>, vector<8x128xf32>
    tpu.vector_store %arg29[%c0_377, %c0_378], %946 {strides = array<i32>} : memref<8x128xf32, #tpu.memory_space<vmem>>, vector<8x128xf32>,
    %cst_379 = arith.constant 1.000000e+00 : f32
    %948 = vector.broadcast %cst_379 : f32 to vector<8x128xf32>
    %949 = arith.cmpf ogt, %946, %948 : vector<8x128xf32>
    %950 = arith.extui %949 : vector<8x128xi1> to vector<8x128xi32>
    %951 = arith.sitofp %950 : vector<8x128xi32> to vector<8x128xf32>
    %c0_380 = arith.constant 0 : index
    %c0_381 = arith.constant 0 : index
    %952 = vector.load %arg31[%c0_380, %c0_381] : memref<8x128xf32, #tpu.memory_space<vmem>>, vector<8x128xf32>
    %953 = arith.addf %952, %951 : vector<8x128xf32>
    %c0_382 = arith.constant 0 : index
    %c0_383 = arith.constant 0 : index
    %954 = vector.load %arg31[%c0_382, %c0_383] : memref<8x128xf32, #tpu.memory_space<vmem>>, vector<8x128xf32>
    tpu.vector_store %arg31[%c0_382, %c0_383], %953 {strides = array<i32>} : memref<8x128xf32, #tpu.memory_space<vmem>>, vector<8x128xf32>,
    %c8_i32 = arith.constant 8 : i32
    %c0_i32_384 = arith.constant 0 : i32
    %955 = arith.cmpi eq, %arg1, %c0_i32_384 : i32
    %956 = arith.extui %955 : i1 to i32
    %c0_i32_385 = arith.constant 0 : i32
    %957 = arith.cmpi ne, %956, %c0_i32_385 : i32
    scf.if %957 {
      %c0_386 = arith.constant 0 : index
      %c0_387 = arith.constant 0 : index
      %958 = vector.load %arg31[%c0_386, %c0_387] : memref<8x128xf32, #tpu.memory_space<vmem>>, vector<8x128xf32>
      %959 = arith.truncf %958 : vector<8x128xf32> to vector<8x128xbf16>
      %c0_388 = arith.constant 0 : index
      %c0_389 = arith.constant 0 : index
      %960 = vector.load %arg19[%c0_388, %c0_389] : memref<128x128xbf16, #tpu.memory_space<vmem>>, vector<128x128xbf16>
      %cst_390 = arith.constant dense<0.000000e+00> : vector<8x128xf32>
      %961 = tpu.matmul %959, %960, %cst_390 {dimension_numbers = #tpu.dot_dimension_numbers<[1], [0], [0], [1], [0, 0, 1, 1], [], []>} : vector<8x128xbf16>, vector<128x128xbf16>, vector<8x128xf32> -> vector<8x128xf32>
      %c0_391 = arith.constant 0 : index
      %c0_392 = arith.constant 0 : index
      %962 = vector.load %arg20[%c0_391, %c0_392] : memref<1x128xf32, #tpu.memory_space<vmem>>, vector<1x128xf32>
      %963 = vector.broadcast %962 : vector<1x128xf32> to vector<8x128xf32>
      %964 = arith.addf %961, %963 : vector<8x128xf32>
      %c0_393 = arith.constant 0 : index
      %c0_394 = arith.constant 0 : index
      %965 = vector.load %arg24[%c0_393, %c0_394] : memref<8x128xf32, #tpu.memory_space<vmem>>, vector<8x128xf32>
      tpu.vector_store %arg24[%c0_393, %c0_394], %964 {strides = array<i32>} : memref<8x128xf32, #tpu.memory_space<vmem>>, vector<8x128xf32>,
    } else {
    }
    return
  }
  func.func @transform_0(%arg0: i32, %arg1: i32) -> (i32, i32, i32) {
    %c0_i32 = arith.constant 0 : i32
    %c0_i32_0 = arith.constant 0 : i32
    return %arg1, %arg0, %c0_i32 : i32, i32, i32
  }
  func.func @transform_1(%arg0: i32, %arg1: i32) -> (i32, i32) {
    %c0_i32 = arith.constant 0 : i32
    %c0_i32_0 = arith.constant 0 : i32
    %c0_i32_1 = arith.constant 0 : i32
    return %c0_i32, %c0_i32_0 : i32, i32
  }
  func.func @transform_2(%arg0: i32, %arg1: i32) -> (i32, i32) {
    %c0_i32 = arith.constant 0 : i32
    %c0_i32_0 = arith.constant 0 : i32
    %c0_i32_1 = arith.constant 0 : i32
    return %c0_i32, %c0_i32_0 : i32, i32
  }
  func.func @transform_3(%arg0: i32, %arg1: i32) -> (i32, i32) {
    %c0_i32 = arith.constant 0 : i32
    %c0_i32_0 = arith.constant 0 : i32
    %c0_i32_1 = arith.constant 0 : i32
    return %c0_i32, %c0_i32_0 : i32, i32
  }
  func.func @transform_4(%arg0: i32, %arg1: i32) -> (i32, i32) {
    %c0_i32 = arith.constant 0 : i32
    %c0_i32_0 = arith.constant 0 : i32
    %c0_i32_1 = arith.constant 0 : i32
    return %c0_i32, %c0_i32_0 : i32, i32
  }
  func.func @transform_5(%arg0: i32, %arg1: i32) -> (i32, i32) {
    %c0_i32 = arith.constant 0 : i32
    %c0_i32_0 = arith.constant 0 : i32
    %c0_i32_1 = arith.constant 0 : i32
    return %c0_i32, %c0_i32_0 : i32, i32
  }
  func.func @transform_6(%arg0: i32, %arg1: i32) -> (i32, i32) {
    %c0_i32 = arith.constant 0 : i32
    %c0_i32_0 = arith.constant 0 : i32
    %c0_i32_1 = arith.constant 0 : i32
    return %c0_i32, %c0_i32_0 : i32, i32
  }
  func.func @transform_7(%arg0: i32, %arg1: i32) -> (i32, i32) {
    %c0_i32 = arith.constant 0 : i32
    %c0_i32_0 = arith.constant 0 : i32
    %c0_i32_1 = arith.constant 0 : i32
    return %c0_i32, %c0_i32_0 : i32, i32
  }
  func.func @transform_8(%arg0: i32, %arg1: i32) -> (i32, i32) {
    %c0_i32 = arith.constant 0 : i32
    %c0_i32_0 = arith.constant 0 : i32
    %c0_i32_1 = arith.constant 0 : i32
    return %c0_i32, %c0_i32_0 : i32, i32
  }
  func.func @transform_9(%arg0: i32, %arg1: i32) -> (i32, i32) {
    %c0_i32 = arith.constant 0 : i32
    %c0_i32_0 = arith.constant 0 : i32
    %c0_i32_1 = arith.constant 0 : i32
    return %c0_i32, %c0_i32_0 : i32, i32
  }
  func.func @transform_10(%arg0: i32, %arg1: i32) -> (i32, i32) {
    %c0_i32 = arith.constant 0 : i32
    %c0_i32_0 = arith.constant 0 : i32
    %c0_i32_1 = arith.constant 0 : i32
    return %c0_i32, %c0_i32_0 : i32, i32
  }
  func.func @transform_11(%arg0: i32, %arg1: i32) -> (i32, i32) {
    %c0_i32 = arith.constant 0 : i32
    %c0_i32_0 = arith.constant 0 : i32
    %c0_i32_1 = arith.constant 0 : i32
    return %c0_i32, %c0_i32_0 : i32, i32
  }
  func.func @transform_12(%arg0: i32, %arg1: i32) -> (i32, i32) {
    %c0_i32 = arith.constant 0 : i32
    %c0_i32_0 = arith.constant 0 : i32
    %c0_i32_1 = arith.constant 0 : i32
    return %c0_i32, %c0_i32_0 : i32, i32
  }
  func.func @transform_13(%arg0: i32, %arg1: i32) -> (i32, i32) {
    %c0_i32 = arith.constant 0 : i32
    %c0_i32_0 = arith.constant 0 : i32
    %c0_i32_1 = arith.constant 0 : i32
    return %c0_i32, %c0_i32_0 : i32, i32
  }
  func.func @transform_14(%arg0: i32, %arg1: i32) -> (i32, i32) {
    %c0_i32 = arith.constant 0 : i32
    %c0_i32_0 = arith.constant 0 : i32
    %c0_i32_1 = arith.constant 0 : i32
    return %c0_i32, %c0_i32_0 : i32, i32
  }
  func.func @transform_15(%arg0: i32, %arg1: i32) -> (i32, i32) {
    %c0_i32 = arith.constant 0 : i32
    %c0_i32_0 = arith.constant 0 : i32
    %c0_i32_1 = arith.constant 0 : i32
    return %c0_i32, %c0_i32_0 : i32, i32
  }
  func.func @transform_16(%arg0: i32, %arg1: i32) -> (i32, i32) {
    %c0_i32 = arith.constant 0 : i32
    %c0_i32_0 = arith.constant 0 : i32
    %c0_i32_1 = arith.constant 0 : i32
    return %c0_i32, %c0_i32_0 : i32, i32
  }
  func.func @transform_17(%arg0: i32, %arg1: i32) -> (i32, i32) {
    %c0_i32 = arith.constant 0 : i32
    %c0_i32_0 = arith.constant 0 : i32
    %c0_i32_1 = arith.constant 0 : i32
    return %c0_i32, %c0_i32_0 : i32, i32
  }
  func.func @transform_18(%arg0: i32, %arg1: i32) -> (i32, i32) {
    %c0_i32 = arith.constant 0 : i32
    %c0_i32_0 = arith.constant 0 : i32
    %c0_i32_1 = arith.constant 0 : i32
    return %c0_i32, %c0_i32_0 : i32, i32
  }
  func.func @transform_19(%arg0: i32, %arg1: i32) -> (i32, i32) {
    %c0_i32 = arith.constant 0 : i32
    %c0_i32_0 = arith.constant 0 : i32
    return %arg0, %c0_i32 : i32, i32
  }
  func.func @transform_20(%arg0: i32, %arg1: i32) -> (i32, i32) {
    %c0_i32 = arith.constant 0 : i32
    %c0_i32_0 = arith.constant 0 : i32
    return %arg0, %c0_i32 : i32, i32
  }
  func.func @transform_21(%arg0: i32, %arg1: i32) -> (i32, i32) {
    %c0_i32 = arith.constant 0 : i32
    %c0_i32_0 = arith.constant 0 : i32
    return %arg0, %c0_i32 : i32, i32
  }
  func.func @transform_22(%arg0: i32, %arg1: i32) -> (i32, i32) {
    %c0_i32 = arith.constant 0 : i32
    %c0_i32_0 = arith.constant 0 : i32
    return %arg0, %c0_i32 : i32, i32
  }
}

</mosaic_0001>

<llo_original>
// kernel: dense_test_4layer_forward.1
$region0: #{dense_test_4layer_forward.1}
  #allocation0 [shape = 'u32[]', space=smem, size = 0x4, offset = 0x4, fixed_abs, tag = 'smem constant byte address 0x4 - core index']
  #allocation1 [shape = 'u32[144,128]{1,0:T(1,128)}', space=vmem, size = 0x12000, scoped, tag = 'internal scratch']
  #allocation2 [shape = 'f32[8,128]{1,0:T(8,128)}', space=vmem, size = 0x1000, scoped, tag = 'scratch operand']
  #allocation3 [shape = 'f32[8,512]{1,0:T(8,128)}', space=vmem, size = 0x4000, scoped, tag = 'scratch operand']
  #allocation4 [shape = 'f32[8,128]{1,0:T(8,128)}', space=vmem, size = 0x1000, scoped, tag = 'scratch operand']
  #allocation5 [shape = 'f32[8,512]{1,0:T(8,128)}', space=vmem, size = 0x4000, scoped, tag = 'scratch operand']
  #allocation6 [shape = 'f32[8,128]{1,0:T(8,128)}', space=vmem, size = 0x1000, scoped, tag = 'scratch operand']
  #allocation7 [shape = 'f32[8,512]{1,0:T(8,128)}', space=vmem, size = 0x4000, scoped, tag = 'scratch operand']
  #allocation8 [shape = 'f32[8,128]{1,0:T(8,128)}', space=vmem, size = 0x1000, scoped, tag = 'scratch operand']
  %s0 = inlined_call_operand.vmem [shape: bf16[8,8,512], index: 0, kind: input, shape index: {}]
  %s1 = inlined_call_operand.vmem [shape: f32[1,512], index: 1, kind: input, shape index: {}]
  %s2 = inlined_call_operand.vmem [shape: f32[1,512], index: 2, kind: input, shape index: {}]
  %s3 = inlined_call_operand.vmem [shape: f32[1,128], index: 3, kind: input, shape index: {}]
  %s4 = inlined_call_operand.vmem [shape: f32[1,128], index: 4, kind: input, shape index: {}]
  %s5 = inlined_call_operand.vmem [shape: bf16[128,512], index: 5, kind: input, shape index: {}]
  %s6 = inlined_call_operand.vmem [shape: f32[1,512], index: 6, kind: input, shape index: {}]
  %s7 = inlined_call_operand.vmem [shape: f32[1,512], index: 7, kind: input, shape index: {}]
  %s8 = inlined_call_operand.vmem [shape: f32[1,512], index: 8, kind: input, shape index: {}]
  %s9 = inlined_call_operand.vmem [shape: f32[1,128], index: 9, kind: input, shape index: {}]
  %s10 = inlined_call_operand.vmem [shape: f32[1,128], index: 10, kind: input, shape index: {}]
  %s11 = inlined_call_operand.vmem [shape: bf16[128,512], index: 11, kind: input, shape index: {}]
  %s12 = inlined_call_operand.vmem [shape: f32[1,512], index: 12, kind: input, shape index: {}]
  %s13 = inlined_call_operand.vmem [shape: f32[1,512], index: 13, kind: input, shape index: {}]
  %s14 = inlined_call_operand.vmem [shape: f32[1,512], index: 14, kind: input, shape index: {}]
  %s15 = inlined_call_operand.vmem [shape: f32[1,128], index: 15, kind: input, shape index: {}]
  %s16 = inlined_call_operand.vmem [shape: f32[1,128], index: 16, kind: input, shape index: {}]
  %s17 = inlined_call_operand.vmem [shape: bf16[128,128], index: 17, kind: input, shape index: {}]
  %s18 = inlined_call_operand.vmem [shape: f32[1,128], index: 18, kind: input, shape index: {}]
  %s19 = inlined_call_operand.vmem [shape: f32[8,128], index: 19, kind: input, shape index: {}]
  %s20 = inlined_call_operand.vmem [shape: f32[8,128], index: 20, kind: input, shape index: {}]
  %s21 = inlined_call_operand.vmem [shape: f32[8,128], index: 21, kind: input, shape index: {}]
  %s22 = inlined_call_operand.hbm [shape: f32[8,128], index: 22, kind: output, shape index: {}]
  %s23 = sld [smem:[#allocation0]]
  $region106: #{dense_test_4layer_forward.1} parent=0
    _
  %s25 = ssub.s32 1, %s23
  %s26 = scalar_select 0, %s25, %s23
  $region1: #{dense_test_4layer_forward.1} parent=0
    #allocation9 [shape = 'u8[4096]{0}', space=vmem, size = 0x1000, scoped, tag = 'output window, operand 0, single buffered']
    #allocation10 [shape = 's32[1]{0}', space=sflag, size = 0x4, scoped, tag = 'scoped memory for dense_test_4layer_forward.1']
    %27 = vsyncpa [#allocation10], 0
    // Predicated region
    $region2: #{dense_test_4layer_forward.1} parent=1 // pred_check
      _
    $region3: #{dense_test_4layer_forward.1} parent=1 // pred_check_branch
      %29 = sbr.rel (0) target = $region5
    $region4: #{dense_test_4layer_forward.1} parent=1 // pred_region
      _
    $region5: #{dense_test_4layer_forward.1} parent=1 // pred_fallthru
      _
    // Predicated region
    $region6: #{dense_test_4layer_forward.1} parent=1 // pred_check
      _
    $region7: #{dense_test_4layer_forward.1} parent=1 // pred_check_branch
      %31 = sbr.rel (0) target = $region9
    $region8: #{dense_test_4layer_forward.1} parent=1 // pred_region
      _
    $region9: #{dense_test_4layer_forward.1} parent=1 // pred_fallthru
      _
    // Predicated region
    $region10: #{dense_test_4layer_forward.1} parent=1 // pred_check
      _
    $region11: #{dense_test_4layer_forward.1} parent=1 // pred_check_branch
      %33 = sbr.rel (0) target = $region13
    $region12: #{dense_test_4layer_forward.1} parent=1 // pred_region
      _
    $region13: #{dense_test_4layer_forward.1} parent=1 // pred_fallthru
      _
    // Predicated region
    $region14: #{dense_test_4layer_forward.1} parent=1 // pred_check
      _
    $region15: #{dense_test_4layer_forward.1} parent=1 // pred_check_branch
      %35 = sbr.rel (0) target = $region17
    $region16: #{dense_test_4layer_forward.1} parent=1 // pred_region
      _
    $region17: #{dense_test_4layer_forward.1} parent=1 // pred_fallthru
      _
    // Predicated region
    $region18: #{dense_test_4layer_forward.1} parent=1 // pred_check
      _
    $region19: #{dense_test_4layer_forward.1} parent=1 // pred_check_branch
      %37 = sbr.rel (0) target = $region21
    $region20: #{dense_test_4layer_forward.1} parent=1 // pred_region
      _
    $region21: #{dense_test_4layer_forward.1} parent=1 // pred_fallthru
      _
    // Predicated region
    $region22: #{dense_test_4layer_forward.1} parent=1 // pred_check
      _
    $region23: #{dense_test_4layer_forward.1} parent=1 // pred_check_branch
      %39 = sbr.rel (0) target = $region25
    $region24: #{dense_test_4layer_forward.1} parent=1 // pred_region
      _
    $region25: #{dense_test_4layer_forward.1} parent=1 // pred_fallthru
      _
    // Predicated region
    $region26: #{dense_test_4layer_forward.1} parent=1 // pred_check
      _
    $region27: #{dense_test_4layer_forward.1} parent=1 // pred_check_branch
      %41 = sbr.rel (0) target = $region29
    $region28: #{dense_test_4layer_forward.1} parent=1 // pred_region
      _
    $region29: #{dense_test_4layer_forward.1} parent=1 // pred_fallthru
      _
    // Predicated region
    $region30: #{dense_test_4layer_forward.1} parent=1 // pred_check
      _
    $region31: #{dense_test_4layer_forward.1} parent=1 // pred_check_branch
      %43 = sbr.rel (0) target = $region33
    $region32: #{dense_test_4layer_forward.1} parent=1 // pred_region
      _
    $region33: #{dense_test_4layer_forward.1} parent=1 // pred_fallthru
      _
    // Predicated region
    $region34: #{dense_test_4layer_forward.1} parent=1 // pred_check
      _
    $region35: #{dense_test_4layer_forward.1} parent=1 // pred_check_branch
      %45 = sbr.rel (0) target = $region37
    $region36: #{dense_test_4layer_forward.1} parent=1 // pred_region
      _
    $region37: #{dense_test_4layer_forward.1} parent=1 // pred_fallthru
      _
    // Predicated region
    $region38: #{dense_test_4layer_forward.1} parent=1 // pred_check
      _
    $region39: #{dense_test_4layer_forward.1} parent=1 // pred_check_branch
      %47 = sbr.rel (0) target = $region41
    $region40: #{dense_test_4layer_forward.1} parent=1 // pred_region
      _
    $region41: #{dense_test_4layer_forward.1} parent=1 // pred_fallthru
      _
    // Predicated region
    $region42: #{dense_test_4layer_forward.1} parent=1 // pred_check
      _
    $region43: #{dense_test_4layer_forward.1} parent=1 // pred_check_branch
      %49 = sbr.rel (0) target = $region45
    $region44: #{dense_test_4layer_forward.1} parent=1 // pred_region
      _
    $region45: #{dense_test_4layer_forward.1} parent=1 // pred_fallthru
      _
    // Predicated region
    $region46: #{dense_test_4layer_forward.1} parent=1 // pred_check
      _
    $region47: #{dense_test_4layer_forward.1} parent=1 // pred_check_branch
      %51 = sbr.rel (0) target = $region49
    $region48: #{dense_test_4layer_forward.1} parent=1 // pred_region
      _
    $region49: #{dense_test_4layer_forward.1} parent=1 // pred_fallthru
      _
    // Predicated region
    $region50: #{dense_test_4layer_forward.1} parent=1 // pred_check
      _
    $region51: #{dense_test_4layer_forward.1} parent=1 // pred_check_branch
      %53 = sbr.rel (0) target = $region53
    $region52: #{dense_test_4layer_forward.1} parent=1 // pred_region
      _
    $region53: #{dense_test_4layer_forward.1} parent=1 // pred_fallthru
      _
    // Predicated region
    $region54: #{dense_test_4layer_forward.1} parent=1 // pred_check
      _
    $region55: #{dense_test_4layer_forward.1} parent=1 // pred_check_branch
      %55 = sbr.rel (0) target = $region57
    $region56: #{dense_test_4layer_forward.1} parent=1 // pred_region
      _
    $region57: #{dense_test_4layer_forward.1} parent=1 // pred_fallthru
      _
    // Predicated region
    $region58: #{dense_test_4layer_forward.1} parent=1 // pred_check
      _
    $region59: #{dense_test_4layer_forward.1} parent=1 // pred_check_branch
      %57 = sbr.rel (0) target = $region61
    $region60: #{dense_test_4layer_forward.1} parent=1 // pred_region
      _
    $region61: #{dense_test_4layer_forward.1} parent=1 // pred_fallthru
      _
    // Predicated region
    $region62: #{dense_test_4layer_forward.1} parent=1 // pred_check
      _
    $region63: #{dense_test_4layer_forward.1} parent=1 // pred_check_branch
      %59 = sbr.rel (0) target = $region65
    $region64: #{dense_test_4layer_forward.1} parent=1 // pred_region
      _
    $region65: #{dense_test_4layer_forward.1} parent=1 // pred_fallthru
      _
    // Predicated region
    $region66: #{dense_test_4layer_forward.1} parent=1 // pred_check
      _
    $region67: #{dense_test_4layer_forward.1} parent=1 // pred_check_branch
      %61 = sbr.rel (0) target = $region69
    $region68: #{dense_test_4layer_forward.1} parent=1 // pred_region
      _
    $region69: #{dense_test_4layer_forward.1} parent=1 // pred_fallthru
      _
    // Predicated region
    $region70: #{dense_test_4layer_forward.1} parent=1 // pred_check
      _
    $region71: #{dense_test_4layer_forward.1} parent=1 // pred_check_branch
      %63 = sbr.rel (0) target = $region73
    $region72: #{dense_test_4layer_forward.1} parent=1 // pred_region
      _
    $region73: #{dense_test_4layer_forward.1} parent=1 // pred_fallthru
      _
    // Predicated region
    $region74: #{dense_test_4layer_forward.1} parent=1 // pred_check
      _
    $region75: #{dense_test_4layer_forward.1} parent=1 // pred_check_branch
      %65 = sbr.rel (0) target = $region77
    $region76: #{dense_test_4layer_forward.1} parent=1 // pred_region
      _
    $region77: #{dense_test_4layer_forward.1} parent=1 // pred_fallthru
      _
    // Predicated region
    $region78: #{dense_test_4layer_forward.1} parent=1 // pred_check
      _
    $region79: #{dense_test_4layer_forward.1} parent=1 // pred_check_branch
      %67 = sbr.rel (0) target = $region81
    $region80: #{dense_test_4layer_forward.1} parent=1 // pred_region
      _
    $region81: #{dense_test_4layer_forward.1} parent=1 // pred_fallthru
      _
    // Predicated region
    $region82: #{dense_test_4layer_forward.1} parent=1 // pred_check
      _
    $region83: #{dense_test_4layer_forward.1} parent=1 // pred_check_branch
      %69 = sbr.rel (0) target = $region85
    $region84: #{dense_test_4layer_forward.1} parent=1 // pred_region
      _
    $region85: #{dense_test_4layer_forward.1} parent=1 // pred_fallthru
      _
    // Predicated region
    $region86: #{dense_test_4layer_forward.1} parent=1 // pred_check
      _
    $region87: #{dense_test_4layer_forward.1} parent=1 // pred_check_branch
      %71 = sbr.rel (0) target = $region89
    $region88: #{dense_test_4layer_forward.1} parent=1 // pred_region
      _
    $region89: #{dense_test_4layer_forward.1} parent=1 // pred_fallthru
      _
    %p73 = scmp.eq.s32.totalorder 0, 0
    // Predicated region
    $region90: #{dense_test_4layer_forward.1} parent=1 // pred_check
      %p74 = pneg %p73
    $region91: #{dense_test_4layer_forward.1} parent=1 // pred_check_branch
      %76 = sbr.rel (%p74) target = $region93
    $region92: #{dense_test_4layer_forward.1} parent=1 // pred_region
      %v77 = vld [vmem:[%s19] sm:$0xff]
      %78 = vst [vmem:[#allocation2] sm:$0xff] %v77
      %v79 = vld [vmem:[%s20] sm:$0xff]
      %80 = vst [vmem:[#allocation4] sm:$0xff] %v79
      %v81 = vld [vmem:[%s21] sm:$0xff]
      %82 = vst [vmem:[#allocation6] sm:$0xff] %v81
      %83 = vst [vmem:[#allocation3] sm:$0xff] 0.0
      %84 = vst [vmem:[#allocation3 + $0x8] sm:$0xff] 0.0
      %85 = vst [vmem:[#allocation3 + $0x10] sm:$0xff] 0.0
      %86 = vst [vmem:[#allocation3 + $0x18] sm:$0xff] 0.0
      %87 = vst [vmem:[#allocation5] sm:$0xff] 0.0
      %88 = vst [vmem:[#allocation5 + $0x8] sm:$0xff] 0.0
      %89 = vst [vmem:[#allocation5 + $0x10] sm:$0xff] 0.0
      %90 = vst [vmem:[#allocation5 + $0x18] sm:$0xff] 0.0
      %91 = vst [vmem:[#allocation7] sm:$0xff] 0.0
      %92 = vst [vmem:[#allocation7 + $0x8] sm:$0xff] 0.0
      %93 = vst [vmem:[#allocation7 + $0x10] sm:$0xff] 0.0
      %94 = vst [vmem:[#allocation7 + $0x18] sm:$0xff] 0.0
      %95 = vst [vmem:[#allocation8] sm:$0xff] 0.0
      %96 = vst [vmem:[#allocation9] sm:$0xff] 0.0
    $region93: #{dense_test_4layer_forward.1} parent=1 // pred_fallthru
      _
    %v97 = vld [vmem:[%s1] sm:$0xf]
    %v98 = vld [vmem:[%s2] sm:$0xf]
    %v99 = vld [vmem:[%s3] sm:$0x1]
    %v100 = vld [vmem:[%s4] sm:$0x1]
    %v101 = vld [vmem:[%s7] sm:$0xf]
    %v102 = vld [vmem:[%s8] sm:$0xf]
    %v103 = vld [vmem:[%s9] sm:$0x1]
    %v104 = vld [vmem:[%s10] sm:$0x1]
    %v105 = vld [vmem:[%s13] sm:$0xf]
    %v106 = vld [vmem:[%s14] sm:$0xf]
    %v107 = vld [vmem:[%s15] sm:$0x1]
    %v108 = vld [vmem:[%s16] sm:$0x1]
    %v109 = vld [vmem:[%s5] sm:$0xff]
    %v110 = vld [vmem:[%s5 + $0x8] sm:$0xff]
    %v111 = vld [vmem:[%s5 + $0x10] sm:$0xff]
    %v112 = vld [vmem:[%s5 + $0x18] sm:$0xff]
    %v113 = vld [vmem:[%s5 + $0x20] sm:$0xff]
    %v114 = vld [vmem:[%s5 + $0x28] sm:$0xff]
    %v115 = vld [vmem:[%s5 + $0x30] sm:$0xff]
    %v116 = vld [vmem:[%s5 + $0x38] sm:$0xff]
    %v117 = vld [vmem:[%s5 + $0x40] sm:$0xff]
    %v118 = vld [vmem:[%s5 + $0x48] sm:$0xff]
    %v119 = vld [vmem:[%s5 + $0x50] sm:$0xff]
    %v120 = vld [vmem:[%s5 + $0x58] sm:$0xff]
    %v121 = vld [vmem:[%s5 + $0x60] sm:$0xff]
    %v122 = vld [vmem:[%s5 + $0x68] sm:$0xff]
    %v123 = vld [vmem:[%s5 + $0x70] sm:$0xff]
    %v124 = vld [vmem:[%s5 + $0x78] sm:$0xff]
    %v125 = vld [vmem:[%s5 + $0x80] sm:$0xff]
    %v126 = vld [vmem:[%s5 + $0x88] sm:$0xff]
    %v127 = vld [vmem:[%s5 + $0x90] sm:$0xff]
    %v128 = vld [vmem:[%s5 + $0x98] sm:$0xff]
    %v129 = vld [vmem:[%s5 + $0xa0] sm:$0xff]
    %v130 = vld [vmem:[%s5 + $0xa8] sm:$0xff]
    %v131 = vld [vmem:[%s5 + $0xb0] sm:$0xff]
    %v132 = vld [vmem:[%s5 + $0xb8] sm:$0xff]
    %v133 = vld [vmem:[%s5 + $0xc0] sm:$0xff]
    %v134 = vld [vmem:[%s5 + $0xc8] sm:$0xff]
    %v135 = vld [vmem:[%s5 + $0xd0] sm:$0xff]
    %v136 = vld [vmem:[%s5 + $0xd8] sm:$0xff]
    %v137 = vld [vmem:[%s5 + $0xe0] sm:$0xff]
    %v138 = vld [vmem:[%s5 + $0xe8] sm:$0xff]
    %v139 = vld [vmem:[%s5 + $0xf0] sm:$0xff]
    %v140 = vld [vmem:[%s5 + $0xf8] sm:$0xff]
    %v141 = vld [vmem:[%s6] sm:$0xf]
    %v142 = vld [vmem:[%s11] sm:$0xff]
    %v143 = vld [vmem:[%s11 + $0x8] sm:$0xff]
    %v144 = vld [vmem:[%s11 + $0x10] sm:$0xff]
    %v145 = vld [vmem:[%s11 + $0x18] sm:$0xff]
    %v146 = vld [vmem:[%s11 + $0x20] sm:$0xff]
    %v147 = vld [vmem:[%s11 + $0x28] sm:$0xff]
    %v148 = vld [vmem:[%s11 + $0x30] sm:$0xff]
    %v149 = vld [vmem:[%s11 + $0x38] sm:$0xff]
    %v150 = vld [vmem:[%s11 + $0x40] sm:$0xff]
    %v151 = vld [vmem:[%s11 + $0x48] sm:$0xff]
    %v152 = vld [vmem:[%s11 + $0x50] sm:$0xff]
    %v153 = vld [vmem:[%s11 + $0x58] sm:$0xff]
    %v154 = vld [vmem:[%s11 + $0x60] sm:$0xff]
    %v155 = vld [vmem:[%s11 + $0x68] sm:$0xff]
    %v156 = vld [vmem:[%s11 + $0x70] sm:$0xff]
    %v157 = vld [vmem:[%s11 + $0x78] sm:$0xff]
    %v158 = vld [vmem:[%s11 + $0x80] sm:$0xff]
    %v159 = vld [vmem:[%s11 + $0x88] sm:$0xff]
    %v160 = vld [vmem:[%s11 + $0x90] sm:$0xff]
    %v161 = vld [vmem:[%s11 + $0x98] sm:$0xff]
    %v162 = vld [vmem:[%s11 + $0xa0] sm:$0xff]
    %v163 = vld [vmem:[%s11 + $0xa8] sm:$0xff]
    %v164 = vld [vmem:[%s11 + $0xb0] sm:$0xff]
    %v165 = vld [vmem:[%s11 + $0xb8] sm:$0xff]
    %v166 = vld [vmem:[%s11 + $0xc0] sm:$0xff]
    %v167 = vld [vmem:[%s11 + $0xc8] sm:$0xff]
    %v168 = vld [vmem:[%s11 + $0xd0] sm:$0xff]
    %v169 = vld [vmem:[%s11 + $0xd8] sm:$0xff]
    %v170 = vld [vmem:[%s11 + $0xe0] sm:$0xff]
    %v171 = vld [vmem:[%s11 + $0xe8] sm:$0xff]
    %v172 = vld [vmem:[%s11 + $0xf0] sm:$0xff]
    %v173 = vld [vmem:[%s11 + $0xf8] sm:$0xff]
    %v174 = vld [vmem:[%s12] sm:$0xf]
    %v175 = vld [vmem:[%s0] sm:$0xff]
    %v176 = vld [vmem:[%s0 + $0x8] sm:$0xff]
    %v177 = vunpack.c.l.bf16 %v175
    %v178 = vunpack.c.h.bf16 %v175
    %v179 = vunpack.c.l.bf16 %v176
    %v180 = vunpack.c.h.bf16 %v176
    %v181 = vld [vmem:[#allocation2] sm:$0xff]
    %vm182 = vcmp.gt.f32.partialorder %v181, 1.0
    %v183 = vsel %vm182, 1, 0
    %v184 = vcvt.s32.f32 %v183
    %v185 = vld [vmem:[#allocation3] sm:$0xff]
    %v186 = vld [vmem:[#allocation3 + $0x8] sm:$0xff]
    %v187 = vld [vmem:[#allocation3 + $0x10] sm:$0xff]
    %v188 = vld [vmem:[#allocation3 + $0x18] sm:$0xff]
    %v190 = vlaneseq
    %v191 = vshrl.u32 %v190, 7
    %v192 = vsub.s32 0, %v191
    %v193 = vrot.slane %v97, %v192
    %v194 = vlaneseq
    %v195 = vshrl.u32 %v194, 7
    %v196 = vsub.s32 1, %v195
    %v197 = vrot.slane %v97, %v196
    %v198 = vlaneseq
    %v199 = vshrl.u32 %v198, 7
    %v200 = vsub.s32 2, %v199
    %v201 = vrot.slane %v97, %v200
    %v202 = vlaneseq
    %v203 = vshrl.u32 %v202, 7
    %v204 = vsub.s32 3, %v203
    %v205 = vrot.slane %v97, %v204
    %v210 = vmul.f32 %v193, %v185
    %v211 = vmul.f32 %v197, %v186
    %v212 = vmul.f32 %v201, %v187
    %v213 = vmul.f32 %v205, %v188
    %v215 = vlaneseq
    %v216 = vshrl.u32 %v215, 7
    %v217 = vsub.s32 0, %v216
    %v218 = vrot.slane %v98, %v217
    %v219 = vlaneseq
    %v220 = vshrl.u32 %v219, 7
    %v221 = vsub.s32 1, %v220
    %v222 = vrot.slane %v98, %v221
    %v223 = vlaneseq
    %v224 = vshrl.u32 %v223, 7
    %v225 = vsub.s32 2, %v224
    %v226 = vrot.slane %v98, %v225
    %v227 = vlaneseq
    %v228 = vshrl.u32 %v227, 7
    %v229 = vsub.s32 3, %v228
    %v230 = vrot.slane %v98, %v229
    %v235 = vmul.f32 %v218, %v177
    %v236 = vmul.f32 %v222, %v178
    %v237 = vmul.f32 %v226, %v179
    %v238 = vmul.f32 %v230, %v180
    %v239 = vadd.f32 %v210, %v235
    %v240 = vadd.f32 %v211, %v236
    %v241 = vadd.f32 %v212, %v237
    %v242 = vadd.f32 %v213, %v238
    %243 = vst [vmem:[#allocation3] sm:$0xff] %v239
    %244 = vst [vmem:[#allocation3 + $0x8] sm:$0xff] %v240
    %245 = vst [vmem:[#allocation3 + $0x10] sm:$0xff] %v241
    %246 = vst [vmem:[#allocation3 + $0x18] sm:$0xff] %v242
    %v247 = vadd.f32 %v239, %v240
    %v248 = vadd.f32 %v247, %v241
    %v249 = vadd.f32 %v248, %v242
    %v250 = vsub.f32 %v181, %v184
    %v252 = vlaneseq
    %v253 = vshrl.u32 %v252, 7
    %v254 = vsub.s32 0, %v253
    %v255 = vrot.slane %v99, %v254
    %v257 = vmul.f32 %v250, %v255
    %v259 = vlaneseq
    %v260 = vshrl.u32 %v259, 7
    %v261 = vsub.s32 0, %v260
    %v262 = vrot.slane %v100, %v261
    %v264 = vmul.f32 %v262, %v249
    %v265 = vadd.f32 %v257, %v264
    %266 = vst [vmem:[#allocation2] sm:$0xff] %v265
    %vm267 = vcmp.gt.f32.partialorder %v265, 1.0
    %v268 = vsel %vm267, 1, 0
    %v269 = vcvt.s32.f32 %v268
    %v270 = vpack.c.bf16 %v269, %v269
    %v272 = vlaneseq
    %v273 = vshrl.u32 %v272, 7
    %v274 = vsub.s32 0, %v273
    %v275 = vrot.slane %v141, %v274
    %v276 = vlaneseq
    %v277 = vshrl.u32 %v276, 7
    %v278 = vsub.s32 1, %v277
    %v279 = vrot.slane %v141, %v278
    %v280 = vlaneseq
    %v281 = vshrl.u32 %v280, 7
    %v282 = vsub.s32 2, %v281
    %v283 = vrot.slane %v141, %v282
    %v284 = vlaneseq
    %v285 = vshrl.u32 %v284, 7
    %v286 = vsub.s32 3, %v285
    %v287 = vrot.slane %v141, %v286
    %v324 = vunpack.c.l.b16 %v109
    %v325 = vunpack.c.h.b16 %v109
    %v326 = vunpack.c.l.b16 %v110
    %v327 = vunpack.c.h.b16 %v110
    %v328 = vunpack.c.l.b16 %v111
    %v329 = vunpack.c.h.b16 %v111
    %v330 = vunpack.c.l.b16 %v112
    %v331 = vunpack.c.h.b16 %v112
    %v332 = vunpack.c.l.b16 %v113
    %v333 = vunpack.c.h.b16 %v113
    %v334 = vunpack.c.l.b16 %v114
    %v335 = vunpack.c.h.b16 %v114
    %v336 = vunpack.c.l.b16 %v115
    %v337 = vunpack.c.h.b16 %v115
    %v338 = vunpack.c.l.b16 %v116
    %v339 = vunpack.c.h.b16 %v116
    %v340 = vunpack.c.l.b16 %v117
    %v341 = vunpack.c.h.b16 %v117
    %v342 = vunpack.c.l.b16 %v118
    %v343 = vunpack.c.h.b16 %v118
    %v344 = vunpack.c.l.b16 %v119
    %v345 = vunpack.c.h.b16 %v119
    %v346 = vunpack.c.l.b16 %v120
    %v347 = vunpack.c.h.b16 %v120
    %v348 = vunpack.c.l.b16 %v121
    %v349 = vunpack.c.h.b16 %v121
    %v350 = vunpack.c.l.b16 %v122
    %v351 = vunpack.c.h.b16 %v122
    %v352 = vunpack.c.l.b16 %v123
    %v353 = vunpack.c.h.b16 %v123
    %v354 = vunpack.c.l.b16 %v124
    %v355 = vunpack.c.h.b16 %v124
    %v356 = vunpack.c.l.b16 %v125
    %v357 = vunpack.c.h.b16 %v125
    %v358 = vunpack.c.l.b16 %v126
    %v359 = vunpack.c.h.b16 %v126
    %v360 = vunpack.c.l.b16 %v127
    %v361 = vunpack.c.h.b16 %v127
    %v362 = vunpack.c.l.b16 %v128
    %v363 = vunpack.c.h.b16 %v128
    %v364 = vunpack.c.l.b16 %v129
    %v365 = vunpack.c.h.b16 %v129
    %v366 = vunpack.c.l.b16 %v130
    %v367 = vunpack.c.h.b16 %v130
    %v368 = vunpack.c.l.b16 %v131
    %v369 = vunpack.c.h.b16 %v131
    %v370 = vunpack.c.l.b16 %v132
    %v371 = vunpack.c.h.b16 %v132
    %v372 = vunpack.c.l.b16 %v133
    %v373 = vunpack.c.h.b16 %v133
    %v374 = vunpack.c.l.b16 %v134
    %v375 = vunpack.c.h.b16 %v134
    %v376 = vunpack.c.l.b16 %v135
    %v377 = vunpack.c.h.b16 %v135
    %v378 = vunpack.c.l.b16 %v136
    %v379 = vunpack.c.h.b16 %v136
    %v380 = vunpack.c.l.b16 %v137
    %v381 = vunpack.c.h.b16 %v137
    %v382 = vunpack.c.l.b16 %v138
    %v383 = vunpack.c.h.b16 %v138
    %v384 = vunpack.c.l.b16 %v139
    %v385 = vunpack.c.h.b16 %v139
    %v386 = vunpack.c.l.b16 %v140
    %v387 = vunpack.c.h.b16 %v140
    %v388 = vpack.c.b16 %v328, %v324
    %v389 = vpack.c.b16 %v329, %v325
    %v390 = vpack.c.b16 %v330, %v326
    %v391 = vpack.c.b16 %v331, %v327
    %v392 = vpack.c.b16 %v336, %v332
    %v393 = vpack.c.b16 %v337, %v333
    %v394 = vpack.c.b16 %v338, %v334
    %v395 = vpack.c.b16 %v339, %v335
    %v396 = vpack.c.b16 %v344, %v340
    %v397 = vpack.c.b16 %v345, %v341
    %v398 = vpack.c.b16 %v346, %v342
    %v399 = vpack.c.b16 %v347, %v343
    %v400 = vpack.c.b16 %v352, %v348
    %v401 = vpack.c.b16 %v353, %v349
    %v402 = vpack.c.b16 %v354, %v350
    %v403 = vpack.c.b16 %v355, %v351
    %v404 = vpack.c.b16 %v360, %v356
    %v405 = vpack.c.b16 %v361, %v357
    %v406 = vpack.c.b16 %v362, %v358
    %v407 = vpack.c.b16 %v363, %v359
    %v408 = vpack.c.b16 %v368, %v364
    %v409 = vpack.c.b16 %v369, %v365
    %v410 = vpack.c.b16 %v370, %v366
    %v411 = vpack.c.b16 %v371, %v367
    %v412 = vpack.c.b16 %v376, %v372
    %v413 = vpack.c.b16 %v377, %v373
    %v414 = vpack.c.b16 %v378, %v374
    %v415 = vpack.c.b16 %v379, %v375
    %v416 = vpack.c.b16 %v384, %v380
    %v417 = vpack.c.b16 %v385, %v381
    %v418 = vpack.c.b16 %v386, %v382
    %v419 = vpack.c.b16 %v387, %v383
    %452 = vmatprep.subr.bf16.mxu0 %v417
    %453 = vmatpush1.bf16.msra.mxu0 %v416
    %454 = vmatprep.subr.bf16.mxu0 %v413
    %455 = vmatpush1.bf16.msra.mxu0 %v412
    %456 = vmatprep.subr.bf16.mxu0 %v409
    %457 = vmatpush1.bf16.msra.mxu0 %v408
    %458 = vmatprep.subr.bf16.mxu0 %v405
    %459 = vmatpush1.bf16.msra.mxu0 %v404
    %460 = vmatprep.subr.bf16.mxu0 %v401
    %461 = vmatpush1.bf16.msra.mxu0 %v400
    %462 = vmatprep.subr.bf16.mxu0 %v397
    %463 = vmatpush1.bf16.msra.mxu0 %v396
    %464 = vmatprep.subr.bf16.mxu0 %v393
    %465 = vmatpush1.bf16.msra.mxu0 %v392
    %466 = vmatprep.subr.bf16.mxu0 %v389
    %467 = vmatpush1.bf16.msra.mxu0 %v388
    %468 = vmatprep.subr.bf16.mxu0 0
    %469 = vmatpush2.bf16.msra.mxu0 0
    %470 = vmatprep.subr.bf16.mxu0 0
    %471 = vmatpush2.bf16.msra.mxu0 0
    %472 = vmatprep.subr.bf16.mxu0 0
    %473 = vmatpush2.bf16.msra.mxu0 0
    %474 = vmatprep.subr.bf16.mxu0 0
    %475 = vmatpush2.bf16.msra.mxu0 0
    %476 = vmatprep.subr.bf16.mxu0 0
    %477 = vmatpush2.bf16.msra.mxu0 0
    %478 = vmatprep.subr.bf16.mxu0 0
    %479 = vmatpush2.bf16.msra.mxu0 0
    %480 = vmatprep.subr.bf16.mxu0 0
    %481 = vmatpush2.bf16.msra.mxu0 0
    %482 = vmatprep.subr.bf16.mxu0 0
    %483 = vmatpush2.bf16.msra.mxu0 0
    %484 = vmatprep.mubr.bf16.mxu0 0
    %485 = vmatmul.mubr.bf16.gmra.mxu0 %v270
    %v486 = vpop.f32.mrf.mxu0
    %v487 = vadd.f32 %v275, %v486
    %v488 = vpop.f32.mrf.mxu0
    %v489 = vadd.f32 %v279, %v488
    %v490 = vpop.f32.mrf.mxu0
    %v491 = vpop.f32.mrf.mxu0
    %492 = vdwg.mxu0
    %493 = vmatprep.subr.bf16.mxu0 %v419
    %494 = vmatpush1.bf16.msra.mxu0 %v418
    %495 = vmatprep.subr.bf16.mxu0 %v415
    %496 = vmatpush1.bf16.msra.mxu0 %v414
    %497 = vmatprep.subr.bf16.mxu0 %v411
    %498 = vmatpush1.bf16.msra.mxu0 %v410
    %499 = vmatprep.subr.bf16.mxu0 %v407
    %500 = vmatpush1.bf16.msra.mxu0 %v406
    %501 = vmatprep.subr.bf16.mxu0 %v403
    %502 = vmatpush1.bf16.msra.mxu0 %v402
    %503 = vmatprep.subr.bf16.mxu0 %v399
    %504 = vmatpush1.bf16.msra.mxu0 %v398
    %505 = vmatprep.subr.bf16.mxu0 %v395
    %506 = vmatpush1.bf16.msra.mxu0 %v394
    %507 = vmatprep.subr.bf16.mxu0 %v391
    %508 = vmatpush1.bf16.msra.mxu0 %v390
    %509 = vmatprep.subr.bf16.mxu0 0
    %510 = vmatpush2.bf16.msra.mxu0 0
    %511 = vmatprep.subr.bf16.mxu0 0
    %512 = vmatpush2.bf16.msra.mxu0 0
    %513 = vmatprep.subr.bf16.mxu0 0
    %514 = vmatpush2.bf16.msra.mxu0 0
    %515 = vmatprep.subr.bf16.mxu0 0
    %516 = vmatpush2.bf16.msra.mxu0 0
    %517 = vmatprep.subr.bf16.mxu0 0
    %518 = vmatpush2.bf16.msra.mxu0 0
    %519 = vmatprep.subr.bf16.mxu0 0
    %520 = vmatpush2.bf16.msra.mxu0 0
    %521 = vmatprep.subr.bf16.mxu0 0
    %522 = vmatpush2.bf16.msra.mxu0 0
    %523 = vmatprep.subr.bf16.mxu0 0
    %524 = vmatpush2.bf16.msra.mxu0 0
    %525 = vmatprep.mubr.bf16.mxu0 0
    %526 = vmatmul.mubr.bf16.gmra.mxu0 %v270
    %v527 = vpop.f32.mrf.mxu0
    %v528 = vadd.f32 %v283, %v527
    %v529 = vpop.f32.mrf.mxu0
    %v530 = vadd.f32 %v287, %v529
    %v531 = vpop.f32.mrf.mxu0
    %v532 = vpop.f32.mrf.mxu0
    %533 = vdwg.mxu0
    %v534 = vld [vmem:[#allocation4] sm:$0xff]
    %vm535 = vcmp.gt.f32.partialorder %v534, 1.0
    %v536 = vsel %vm535, 1, 0
    %v537 = vcvt.s32.f32 %v536
    %v538 = vld [vmem:[#allocation5] sm:$0xff]
    %v539 = vld [vmem:[#allocation5 + $0x8] sm:$0xff]
    %v540 = vld [vmem:[#allocation5 + $0x10] sm:$0xff]
    %v541 = vld [vmem:[#allocation5 + $0x18] sm:$0xff]
    %v543 = vlaneseq
    %v544 = vshrl.u32 %v543, 7
    %v545 = vsub.s32 0, %v544
    %v546 = vrot.slane %v101, %v545
    %v547 = vlaneseq
    %v548 = vshrl.u32 %v547, 7
    %v549 = vsub.s32 1, %v548
    %v550 = vrot.slane %v101, %v549
    %v551 = vlaneseq
    %v552 = vshrl.u32 %v551, 7
    %v553 = vsub.s32 2, %v552
    %v554 = vrot.slane %v101, %v553
    %v555 = vlaneseq
    %v556 = vshrl.u32 %v555, 7
    %v557 = vsub.s32 3, %v556
    %v558 = vrot.slane %v101, %v557
    %v563 = vmul.f32 %v546, %v538
    %v564 = vmul.f32 %v550, %v539
    %v565 = vmul.f32 %v554, %v540
    %v566 = vmul.f32 %v558, %v541
    %v568 = vlaneseq
    %v569 = vshrl.u32 %v568, 7
    %v570 = vsub.s32 0, %v569
    %v571 = vrot.slane %v102, %v570
    %v572 = vlaneseq
    %v573 = vshrl.u32 %v572, 7
    %v574 = vsub.s32 1, %v573
    %v575 = vrot.slane %v102, %v574
    %v576 = vlaneseq
    %v577 = vshrl.u32 %v576, 7
    %v578 = vsub.s32 2, %v577
    %v579 = vrot.slane %v102, %v578
    %v580 = vlaneseq
    %v581 = vshrl.u32 %v580, 7
    %v582 = vsub.s32 3, %v581
    %v583 = vrot.slane %v102, %v582
    %v588 = vmul.f32 %v571, %v487
    %v589 = vmul.f32 %v575, %v489
    %v590 = vmul.f32 %v579, %v528
    %v591 = vmul.f32 %v583, %v530
    %v592 = vadd.f32 %v563, %v588
    %v593 = vadd.f32 %v564, %v589
    %v594 = vadd.f32 %v565, %v590
    %v595 = vadd.f32 %v566, %v591
    %596 = vst [vmem:[#allocation5] sm:$0xff] %v592
    %597 = vst [vmem:[#allocation5 + $0x8] sm:$0xff] %v593
    %598 = vst [vmem:[#allocation5 + $0x10] sm:$0xff] %v594
    %599 = vst [vmem:[#allocation5 + $0x18] sm:$0xff] %v595
    %v600 = vadd.f32 %v592, %v593
    %v601 = vadd.f32 %v600, %v594
    %v602 = vadd.f32 %v601, %v595
    %v603 = vsub.f32 %v534, %v537
    %v605 = vlaneseq
    %v606 = vshrl.u32 %v605, 7
    %v607 = vsub.s32 0, %v606
    %v608 = vrot.slane %v103, %v607
    %v610 = vmul.f32 %v603, %v608
    %v612 = vlaneseq
    %v613 = vshrl.u32 %v612, 7
    %v614 = vsub.s32 0, %v613
    %v615 = vrot.slane %v104, %v614
    %v617 = vmul.f32 %v615, %v602
    %v618 = vadd.f32 %v610, %v617
    %619 = vst [vmem:[#allocation4] sm:$0xff] %v618
    %vm620 = vcmp.gt.f32.partialorder %v618, 1.0
    %v621 = vsel %vm620, 1, 0
    %v622 = vcvt.s32.f32 %v621
    %v623 = vpack.c.bf16 %v622, %v622
    %v625 = vlaneseq
    %v626 = vshrl.u32 %v625, 7
    %v627 = vsub.s32 0, %v626
    %v628 = vrot.slane %v174, %v627
    %v629 = vlaneseq
    %v630 = vshrl.u32 %v629, 7
    %v631 = vsub.s32 1, %v630
    %v632 = vrot.slane %v174, %v631
    %v633 = vlaneseq
    %v634 = vshrl.u32 %v633, 7
    %v635 = vsub.s32 2, %v634
    %v636 = vrot.slane %v174, %v635
    %v637 = vlaneseq
    %v638 = vshrl.u32 %v637, 7
    %v639 = vsub.s32 3, %v638
    %v640 = vrot.slane %v174, %v639
    %v677 = vunpack.c.l.b16 %v142
    %v678 = vunpack.c.h.b16 %v142
    %v679 = vunpack.c.l.b16 %v143
    %v680 = vunpack.c.h.b16 %v143
    %v681 = vunpack.c.l.b16 %v144
    %v682 = vunpack.c.h.b16 %v144
    %v683 = vunpack.c.l.b16 %v145
    %v684 = vunpack.c.h.b16 %v145
    %v685 = vunpack.c.l.b16 %v146
    %v686 = vunpack.c.h.b16 %v146
    %v687 = vunpack.c.l.b16 %v147
    %v688 = vunpack.c.h.b16 %v147
    %v689 = vunpack.c.l.b16 %v148
    %v690 = vunpack.c.h.b16 %v148
    %v691 = vunpack.c.l.b16 %v149
    %v692 = vunpack.c.h.b16 %v149
    %v693 = vunpack.c.l.b16 %v150
    %v694 = vunpack.c.h.b16 %v150
    %v695 = vunpack.c.l.b16 %v151
    %v696 = vunpack.c.h.b16 %v151
    %v697 = vunpack.c.l.b16 %v152
    %v698 = vunpack.c.h.b16 %v152
    %v699 = vunpack.c.l.b16 %v153
    %v700 = vunpack.c.h.b16 %v153
    %v701 = vunpack.c.l.b16 %v154
    %v702 = vunpack.c.h.b16 %v154
    %v703 = vunpack.c.l.b16 %v155
    %v704 = vunpack.c.h.b16 %v155
    %v705 = vunpack.c.l.b16 %v156
    %v706 = vunpack.c.h.b16 %v156
    %v707 = vunpack.c.l.b16 %v157
    %v708 = vunpack.c.h.b16 %v157
    %v709 = vunpack.c.l.b16 %v158
    %v710 = vunpack.c.h.b16 %v158
    %v711 = vunpack.c.l.b16 %v159
    %v712 = vunpack.c.h.b16 %v159
    %v713 = vunpack.c.l.b16 %v160
    %v714 = vunpack.c.h.b16 %v160
    %v715 = vunpack.c.l.b16 %v161
    %v716 = vunpack.c.h.b16 %v161
    %v717 = vunpack.c.l.b16 %v162
    %v718 = vunpack.c.h.b16 %v162
    %v719 = vunpack.c.l.b16 %v163
    %v720 = vunpack.c.h.b16 %v163
    %v721 = vunpack.c.l.b16 %v164
    %v722 = vunpack.c.h.b16 %v164
    %v723 = vunpack.c.l.b16 %v165
    %v724 = vunpack.c.h.b16 %v165
    %v725 = vunpack.c.l.b16 %v166
    %v726 = vunpack.c.h.b16 %v166
    %v727 = vunpack.c.l.b16 %v167
    %v728 = vunpack.c.h.b16 %v167
    %v729 = vunpack.c.l.b16 %v168
    %v730 = vunpack.c.h.b16 %v168
    %v731 = vunpack.c.l.b16 %v169
    %v732 = vunpack.c.h.b16 %v169
    %v733 = vunpack.c.l.b16 %v170
    %v734 = vunpack.c.h.b16 %v170
    %v735 = vunpack.c.l.b16 %v171
    %v736 = vunpack.c.h.b16 %v171
    %v737 = vunpack.c.l.b16 %v172
    %v738 = vunpack.c.h.b16 %v172
    %v739 = vunpack.c.l.b16 %v173
    %v740 = vunpack.c.h.b16 %v173
    %v741 = vpack.c.b16 %v681, %v677
    %v742 = vpack.c.b16 %v682, %v678
    %v743 = vpack.c.b16 %v683, %v679
    %v744 = vpack.c.b16 %v684, %v680
    %v745 = vpack.c.b16 %v689, %v685
    %v746 = vpack.c.b16 %v690, %v686
    %v747 = vpack.c.b16 %v691, %v687
    %v748 = vpack.c.b16 %v692, %v688
    %v749 = vpack.c.b16 %v697, %v693
    %v750 = vpack.c.b16 %v698, %v694
    %v751 = vpack.c.b16 %v699, %v695
    %v752 = vpack.c.b16 %v700, %v696
    %v753 = vpack.c.b16 %v705, %v701
    %v754 = vpack.c.b16 %v706, %v702
    %v755 = vpack.c.b16 %v707, %v703
    %v756 = vpack.c.b16 %v708, %v704
    %v757 = vpack.c.b16 %v713, %v709
    %v758 = vpack.c.b16 %v714, %v710
    %v759 = vpack.c.b16 %v715, %v711
    %v760 = vpack.c.b16 %v716, %v712
    %v761 = vpack.c.b16 %v721, %v717
    %v762 = vpack.c.b16 %v722, %v718
    %v763 = vpack.c.b16 %v723, %v719
    %v764 = vpack.c.b16 %v724, %v720
    %v765 = vpack.c.b16 %v729, %v725
    %v766 = vpack.c.b16 %v730, %v726
    %v767 = vpack.c.b16 %v731, %v727
    %v768 = vpack.c.b16 %v732, %v728
    %v769 = vpack.c.b16 %v737, %v733
    %v770 = vpack.c.b16 %v738, %v734
    %v771 = vpack.c.b16 %v739, %v735
    %v772 = vpack.c.b16 %v740, %v736
    %805 = vmatprep.subr.bf16.mxu0 %v770
    %806 = vmatpush1.bf16.msra.mxu0 %v769
    %807 = vmatprep.subr.bf16.mxu0 %v766
    %808 = vmatpush1.bf16.msra.mxu0 %v765
    %809 = vmatprep.subr.bf16.mxu0 %v762
    %810 = vmatpush1.bf16.msra.mxu0 %v761
    %811 = vmatprep.subr.bf16.mxu0 %v758
    %812 = vmatpush1.bf16.msra.mxu0 %v757
    %813 = vmatprep.subr.bf16.mxu0 %v754
    %814 = vmatpush1.bf16.msra.mxu0 %v753
    %815 = vmatprep.subr.bf16.mxu0 %v750
    %816 = vmatpush1.bf16.msra.mxu0 %v749
    %817 = vmatprep.subr.bf16.mxu0 %v746
    %818 = vmatpush1.bf16.msra.mxu0 %v745
    %819 = vmatprep.subr.bf16.mxu0 %v742
    %820 = vmatpush1.bf16.msra.mxu0 %v741
    %821 = vmatprep.subr.bf16.mxu0 0
    %822 = vmatpush2.bf16.msra.mxu0 0
    %823 = vmatprep.subr.bf16.mxu0 0
    %824 = vmatpush2.bf16.msra.mxu0 0
    %825 = vmatprep.subr.bf16.mxu0 0
    %826 = vmatpush2.bf16.msra.mxu0 0
    %827 = vmatprep.subr.bf16.mxu0 0
    %828 = vmatpush2.bf16.msra.mxu0 0
    %829 = vmatprep.subr.bf16.mxu0 0
    %830 = vmatpush2.bf16.msra.mxu0 0
    %831 = vmatprep.subr.bf16.mxu0 0
    %832 = vmatpush2.bf16.msra.mxu0 0
    %833 = vmatprep.subr.bf16.mxu0 0
    %834 = vmatpush2.bf16.msra.mxu0 0
    %835 = vmatprep.subr.bf16.mxu0 0
    %836 = vmatpush2.bf16.msra.mxu0 0
    %837 = vmatprep.mubr.bf16.mxu0 0
    %838 = vmatmul.mubr.bf16.gmra.mxu0 %v623
    %v839 = vpop.f32.mrf.mxu0
    %v840 = vadd.f32 %v628, %v839
    %v841 = vpop.f32.mrf.mxu0
    %v842 = vadd.f32 %v632, %v841
    %v843 = vpop.f32.mrf.mxu0
    %v844 = vpop.f32.mrf.mxu0
    %845 = vdwg.mxu0
    %846 = vmatprep.subr.bf16.mxu0 %v772
    %847 = vmatpush1.bf16.msra.mxu0 %v771
    %848 = vmatprep.subr.bf16.mxu0 %v768
    %849 = vmatpush1.bf16.msra.mxu0 %v767
    %850 = vmatprep.subr.bf16.mxu0 %v764
    %851 = vmatpush1.bf16.msra.mxu0 %v763
    %852 = vmatprep.subr.bf16.mxu0 %v760
    %853 = vmatpush1.bf16.msra.mxu0 %v759
    %854 = vmatprep.subr.bf16.mxu0 %v756
    %855 = vmatpush1.bf16.msra.mxu0 %v755
    %856 = vmatprep.subr.bf16.mxu0 %v752
    %857 = vmatpush1.bf16.msra.mxu0 %v751
    %858 = vmatprep.subr.bf16.mxu0 %v748
    %859 = vmatpush1.bf16.msra.mxu0 %v747
    %860 = vmatprep.subr.bf16.mxu0 %v744
    %861 = vmatpush1.bf16.msra.mxu0 %v743
    %862 = vmatprep.subr.bf16.mxu0 0
    %863 = vmatpush2.bf16.msra.mxu0 0
    %864 = vmatprep.subr.bf16.mxu0 0
    %865 = vmatpush2.bf16.msra.mxu0 0
    %866 = vmatprep.subr.bf16.mxu0 0
    %867 = vmatpush2.bf16.msra.mxu0 0
    %868 = vmatprep.subr.bf16.mxu0 0
    %869 = vmatpush2.bf16.msra.mxu0 0
    %870 = vmatprep.subr.bf16.mxu0 0
    %871 = vmatpush2.bf16.msra.mxu0 0
    %872 = vmatprep.subr.bf16.mxu0 0
    %873 = vmatpush2.bf16.msra.mxu0 0
    %874 = vmatprep.subr.bf16.mxu0 0
    %875 = vmatpush2.bf16.msra.mxu0 0
    %876 = vmatprep.subr.bf16.mxu0 0
    %877 = vmatpush2.bf16.msra.mxu0 0
    %878 = vmatprep.mubr.bf16.mxu0 0
    %879 = vmatmul.mubr.bf16.gmra.mxu0 %v623
    %v880 = vpop.f32.mrf.mxu0
    %v881 = vadd.f32 %v636, %v880
    %v882 = vpop.f32.mrf.mxu0
    %v883 = vadd.f32 %v640, %v882
    %v884 = vpop.f32.mrf.mxu0
    %v885 = vpop.f32.mrf.mxu0
    %886 = vdwg.mxu0
    %v887 = vld [vmem:[#allocation6] sm:$0xff]
    %vm888 = vcmp.gt.f32.partialorder %v887, 1.0
    %v889 = vsel %vm888, 1, 0
    %v890 = vcvt.s32.f32 %v889
    %v891 = vld [vmem:[#allocation7] sm:$0xff]
    %v892 = vld [vmem:[#allocation7 + $0x8] sm:$0xff]
    %v893 = vld [vmem:[#allocation7 + $0x10] sm:$0xff]
    %v894 = vld [vmem:[#allocation7 + $0x18] sm:$0xff]
    %v896 = vlaneseq
    %v897 = vshrl.u32 %v896, 7
    %v898 = vsub.s32 0, %v897
    %v899 = vrot.slane %v105, %v898
    %v900 = vlaneseq
    %v901 = vshrl.u32 %v900, 7
    %v902 = vsub.s32 1, %v901
    %v903 = vrot.slane %v105, %v902
    %v904 = vlaneseq
    %v905 = vshrl.u32 %v904, 7
    %v906 = vsub.s32 2, %v905
    %v907 = vrot.slane %v105, %v906
    %v908 = vlaneseq
    %v909 = vshrl.u32 %v908, 7
    %v910 = vsub.s32 3, %v909
    %v911 = vrot.slane %v105, %v910
    %v916 = vmul.f32 %v899, %v891
    %v917 = vmul.f32 %v903, %v892
    %v918 = vmul.f32 %v907, %v893
    %v919 = vmul.f32 %v911, %v894
    %v921 = vlaneseq
    %v922 = vshrl.u32 %v921, 7
    %v923 = vsub.s32 0, %v922
    %v924 = vrot.slane %v106, %v923
    %v925 = vlaneseq
    %v926 = vshrl.u32 %v925, 7
    %v927 = vsub.s32 1, %v926
    %v928 = vrot.slane %v106, %v927
    %v929 = vlaneseq
    %v930 = vshrl.u32 %v929, 7
    %v931 = vsub.s32 2, %v930
    %v932 = vrot.slane %v106, %v931
    %v933 = vlaneseq
    %v934 = vshrl.u32 %v933, 7
    %v935 = vsub.s32 3, %v934
    %v936 = vrot.slane %v106, %v935
    %v941 = vmul.f32 %v924, %v840
    %v942 = vmul.f32 %v928, %v842
    %v943 = vmul.f32 %v932, %v881
    %v944 = vmul.f32 %v936, %v883
    %v945 = vadd.f32 %v916, %v941
    %v946 = vadd.f32 %v917, %v942
    %v947 = vadd.f32 %v918, %v943
    %v948 = vadd.f32 %v919, %v944
    %949 = vst [vmem:[#allocation7] sm:$0xff] %v945
    %950 = vst [vmem:[#allocation7 + $0x8] sm:$0xff] %v946
    %951 = vst [vmem:[#allocation7 + $0x10] sm:$0xff] %v947
    %952 = vst [vmem:[#allocation7 + $0x18] sm:$0xff] %v948
    %v953 = vadd.f32 %v945, %v946
    %v954 = vadd.f32 %v953, %v947
    %v955 = vadd.f32 %v954, %v948
    %v956 = vsub.f32 %v887, %v890
    %v958 = vlaneseq
    %v959 = vshrl.u32 %v958, 7
    %v960 = vsub.s32 0, %v959
    %v961 = vrot.slane %v107, %v960
    %v963 = vmul.f32 %v956, %v961
    %v965 = vlaneseq
    %v966 = vshrl.u32 %v965, 7
    %v967 = vsub.s32 0, %v966
    %v968 = vrot.slane %v108, %v967
    %v970 = vmul.f32 %v968, %v955
    %v971 = vadd.f32 %v963, %v970
    %972 = vst [vmem:[#allocation6] sm:$0xff] %v971
    %vm973 = vcmp.gt.f32.partialorder %v971, 1.0
    %v974 = vsel %vm973, 1, 0
    %v975 = vcvt.s32.f32 %v974
    %v976 = vld [vmem:[#allocation8] sm:$0xff]
    %v977 = vadd.f32 %v976, %v975
    %978 = vst [vmem:[#allocation8] sm:$0xff] %v977
    %s979 = scalar_lea.vmem %s0, 16
    %v980 = vld [vmem:[%s979] sm:$0xff]
    %v981 = vld [vmem:[%s979 + $0x8] sm:$0xff]
    %v982 = vunpack.c.l.bf16 %v980
    %v983 = vunpack.c.h.bf16 %v980
    %v984 = vunpack.c.l.bf16 %v981
    %v985 = vunpack.c.h.bf16 %v981
    %v986 = vld [vmem:[#allocation2] sm:$0xff]
    %vm987 = vcmp.gt.f32.partialorder %v986, 1.0
    %v988 = vsel %vm987, 1, 0
    %v989 = vcvt.s32.f32 %v988
    %v990 = vld [vmem:[#allocation3] sm:$0xff]
    %v991 = vld [vmem:[#allocation3 + $0x8] sm:$0xff]
    %v992 = vld [vmem:[#allocation3 + $0x10] sm:$0xff]
    %v993 = vld [vmem:[#allocation3 + $0x18] sm:$0xff]
    %v994 = vmul.f32 %v193, %v990
    %v995 = vmul.f32 %v197, %v991
    %v996 = vmul.f32 %v201, %v992
    %v997 = vmul.f32 %v205, %v993
    %v998 = vmul.f32 %v218, %v982
    %v999 = vmul.f32 %v222, %v983
    %v1000 = vmul.f32 %v226, %v984
    %v1001 = vmul.f32 %v230, %v985
    %v1002 = vadd.f32 %v994, %v998
    %v1003 = vadd.f32 %v995, %v999
    %v1004 = vadd.f32 %v996, %v1000
    %v1005 = vadd.f32 %v997, %v1001
    %1006 = vst [vmem:[#allocation3] sm:$0xff] %v1002
    %1007 = vst [vmem:[#allocation3 + $0x8] sm:$0xff] %v1003
    %1008 = vst [vmem:[#allocation3 + $0x10] sm:$0xff] %v1004
    %1009 = vst [vmem:[#allocation3 + $0x18] sm:$0xff] %v1005
    %v1010 = vadd.f32 %v1002, %v1003
    %v1011 = vadd.f32 %v1010, %v1004
    %v1012 = vadd.f32 %v1011, %v1005
    %v1013 = vsub.f32 %v986, %v989
    %v1014 = vmul.f32 %v1013, %v255
    %v1015 = vmul.f32 %v262, %v1012
    %v1016 = vadd.f32 %v1014, %v1015
    %1017 = vst [vmem:[#allocation2] sm:$0xff] %v1016
    %vm1018 = vcmp.gt.f32.partialorder %v1016, 1.0
    %v1019 = vsel %vm1018, 1, 0
    %v1020 = vcvt.s32.f32 %v1019
    %v1021 = vpack.c.bf16 %v1020, %v1020
    %1022 = vmatprep.subr.bf16.mxu0 %v417
    %1023 = vmatpush1.bf16.msra.mxu0 %v416
    %1024 = vmatprep.subr.bf16.mxu0 %v413
    %1025 = vmatpush1.bf16.msra.mxu0 %v412
    %1026 = vmatprep.subr.bf16.mxu0 %v409
    %1027 = vmatpush1.bf16.msra.mxu0 %v408
    %1028 = vmatprep.subr.bf16.mxu0 %v405
    %1029 = vmatpush1.bf16.msra.mxu0 %v404
    %1030 = vmatprep.subr.bf16.mxu0 %v401
    %1031 = vmatpush1.bf16.msra.mxu0 %v400
    %1032 = vmatprep.subr.bf16.mxu0 %v397
    %1033 = vmatpush1.bf16.msra.mxu0 %v396
    %1034 = vmatprep.subr.bf16.mxu0 %v393
    %1035 = vmatpush1.bf16.msra.mxu0 %v392
    %1036 = vmatprep.subr.bf16.mxu0 %v389
    %1037 = vmatpush1.bf16.msra.mxu0 %v388
    %1038 = vmatprep.subr.bf16.mxu0 0
    %1039 = vmatpush2.bf16.msra.mxu0 0
    %1040 = vmatprep.subr.bf16.mxu0 0
    %1041 = vmatpush2.bf16.msra.mxu0 0
    %1042 = vmatprep.subr.bf16.mxu0 0
    %1043 = vmatpush2.bf16.msra.mxu0 0
    %1044 = vmatprep.subr.bf16.mxu0 0
    %1045 = vmatpush2.bf16.msra.mxu0 0
    %1046 = vmatprep.subr.bf16.mxu0 0
    %1047 = vmatpush2.bf16.msra.mxu0 0
    %1048 = vmatprep.subr.bf16.mxu0 0
    %1049 = vmatpush2.bf16.msra.mxu0 0
    %1050 = vmatprep.subr.bf16.mxu0 0
    %1051 = vmatpush2.bf16.msra.mxu0 0
    %1052 = vmatprep.subr.bf16.mxu0 0
    %1053 = vmatpush2.bf16.msra.mxu0 0
    %1054 = vmatprep.mubr.bf16.mxu0 0
    %1055 = vmatmul.mubr.bf16.gmra.mxu0 %v1021
    %v1056 = vpop.f32.mrf.mxu0
    %v1057 = vadd.f32 %v275, %v1056
    %v1058 = vpop.f32.mrf.mxu0
    %v1059 = vadd.f32 %v279, %v1058
    %v1060 = vpop.f32.mrf.mxu0
    %v1061 = vpop.f32.mrf.mxu0
    %1062 = vdwg.mxu0
    %1063 = vmatprep.subr.bf16.mxu0 %v419
    %1064 = vmatpush1.bf16.msra.mxu0 %v418
    %1065 = vmatprep.subr.bf16.mxu0 %v415
    %1066 = vmatpush1.bf16.msra.mxu0 %v414
    %1067 = vmatprep.subr.bf16.mxu0 %v411
    %1068 = vmatpush1.bf16.msra.mxu0 %v410
    %1069 = vmatprep.subr.bf16.mxu0 %v407
    %1070 = vmatpush1.bf16.msra.mxu0 %v406
    %1071 = vmatprep.subr.bf16.mxu0 %v403
    %1072 = vmatpush1.bf16.msra.mxu0 %v402
    %1073 = vmatprep.subr.bf16.mxu0 %v399
    %1074 = vmatpush1.bf16.msra.mxu0 %v398
    %1075 = vmatprep.subr.bf16.mxu0 %v395
    %1076 = vmatpush1.bf16.msra.mxu0 %v394
    %1077 = vmatprep.subr.bf16.mxu0 %v391
    %1078 = vmatpush1.bf16.msra.mxu0 %v390
    %1079 = vmatprep.subr.bf16.mxu0 0
    %1080 = vmatpush2.bf16.msra.mxu0 0
    %1081 = vmatprep.subr.bf16.mxu0 0
    %1082 = vmatpush2.bf16.msra.mxu0 0
    %1083 = vmatprep.subr.bf16.mxu0 0
    %1084 = vmatpush2.bf16.msra.mxu0 0
    %1085 = vmatprep.subr.bf16.mxu0 0
    %1086 = vmatpush2.bf16.msra.mxu0 0
    %1087 = vmatprep.subr.bf16.mxu0 0
    %1088 = vmatpush2.bf16.msra.mxu0 0
    %1089 = vmatprep.subr.bf16.mxu0 0
    %1090 = vmatpush2.bf16.msra.mxu0 0
    %1091 = vmatprep.subr.bf16.mxu0 0
    %1092 = vmatpush2.bf16.msra.mxu0 0
    %1093 = vmatprep.subr.bf16.mxu0 0
    %1094 = vmatpush2.bf16.msra.mxu0 0
    %1095 = vmatprep.mubr.bf16.mxu0 0
    %1096 = vmatmul.mubr.bf16.gmra.mxu0 %v1021
    %v1097 = vpop.f32.mrf.mxu0
    %v1098 = vadd.f32 %v283, %v1097
    %v1099 = vpop.f32.mrf.mxu0
    %v1100 = vadd.f32 %v287, %v1099
    %v1101 = vpop.f32.mrf.mxu0
    %v1102 = vpop.f32.mrf.mxu0
    %1103 = vdwg.mxu0
    %v1104 = vld [vmem:[#allocation4] sm:$0xff]
    %vm1105 = vcmp.gt.f32.partialorder %v1104, 1.0
    %v1106 = vsel %vm1105, 1, 0
    %v1107 = vcvt.s32.f32 %v1106
    %v1108 = vld [vmem:[#allocation5] sm:$0xff]
    %v1109 = vld [vmem:[#allocation5 + $0x8] sm:$0xff]
    %v1110 = vld [vmem:[#allocation5 + $0x10] sm:$0xff]
    %v1111 = vld [vmem:[#allocation5 + $0x18] sm:$0xff]
    %v1112 = vmul.f32 %v546, %v1108
    %v1113 = vmul.f32 %v550, %v1109
    %v1114 = vmul.f32 %v554, %v1110
    %v1115 = vmul.f32 %v558, %v1111
    %v1116 = vmul.f32 %v571, %v1057
    %v1117 = vmul.f32 %v575, %v1059
    %v1118 = vmul.f32 %v579, %v1098
    %v1119 = vmul.f32 %v583, %v1100
    %v1120 = vadd.f32 %v1112, %v1116
    %v1121 = vadd.f32 %v1113, %v1117
    %v1122 = vadd.f32 %v1114, %v1118
    %v1123 = vadd.f32 %v1115, %v1119
    %1124 = vst [vmem:[#allocation5] sm:$0xff] %v1120
    %1125 = vst [vmem:[#allocation5 + $0x8] sm:$0xff] %v1121
    %1126 = vst [vmem:[#allocation5 + $0x10] sm:$0xff] %v1122
    %1127 = vst [vmem:[#allocation5 + $0x18] sm:$0xff] %v1123
    %v1128 = vadd.f32 %v1120, %v1121
    %v1129 = vadd.f32 %v1128, %v1122
    %v1130 = vadd.f32 %v1129, %v1123
    %v1131 = vsub.f32 %v1104, %v1107
    %v1132 = vmul.f32 %v1131, %v608
    %v1133 = vmul.f32 %v615, %v1130
    %v1134 = vadd.f32 %v1132, %v1133
    %1135 = vst [vmem:[#allocation4] sm:$0xff] %v1134
    %vm1136 = vcmp.gt.f32.partialorder %v1134, 1.0
    %v1137 = vsel %vm1136, 1, 0
    %v1138 = vcvt.s32.f32 %v1137
    %v1139 = vpack.c.bf16 %v1138, %v1138
    %1140 = vmatprep.subr.bf16.mxu0 %v770
    %1141 = vmatpush1.bf16.msra.mxu0 %v769
    %1142 = vmatprep.subr.bf16.mxu0 %v766
    %1143 = vmatpush1.bf16.msra.mxu0 %v765
    %1144 = vmatprep.subr.bf16.mxu0 %v762
    %1145 = vmatpush1.bf16.msra.mxu0 %v761
    %1146 = vmatprep.subr.bf16.mxu0 %v758
    %1147 = vmatpush1.bf16.msra.mxu0 %v757
    %1148 = vmatprep.subr.bf16.mxu0 %v754
    %1149 = vmatpush1.bf16.msra.mxu0 %v753
    %1150 = vmatprep.subr.bf16.mxu0 %v750
    %1151 = vmatpush1.bf16.msra.mxu0 %v749
    %1152 = vmatprep.subr.bf16.mxu0 %v746
    %1153 = vmatpush1.bf16.msra.mxu0 %v745
    %1154 = vmatprep.subr.bf16.mxu0 %v742
    %1155 = vmatpush1.bf16.msra.mxu0 %v741
    %1156 = vmatprep.subr.bf16.mxu0 0
    %1157 = vmatpush2.bf16.msra.mxu0 0
    %1158 = vmatprep.subr.bf16.mxu0 0
    %1159 = vmatpush2.bf16.msra.mxu0 0
    %1160 = vmatprep.subr.bf16.mxu0 0
    %1161 = vmatpush2.bf16.msra.mxu0 0
    %1162 = vmatprep.subr.bf16.mxu0 0
    %1163 = vmatpush2.bf16.msra.mxu0 0
    %1164 = vmatprep.subr.bf16.mxu0 0
    %1165 = vmatpush2.bf16.msra.mxu0 0
    %1166 = vmatprep.subr.bf16.mxu0 0
    %1167 = vmatpush2.bf16.msra.mxu0 0
    %1168 = vmatprep.subr.bf16.mxu0 0
    %1169 = vmatpush2.bf16.msra.mxu0 0
    %1170 = vmatprep.subr.bf16.mxu0 0
    %1171 = vmatpush2.bf16.msra.mxu0 0
    %1172 = vmatprep.mubr.bf16.mxu0 0
    %1173 = vmatmul.mubr.bf16.gmra.mxu0 %v1139
    %v1174 = vpop.f32.mrf.mxu0
    %v1175 = vadd.f32 %v628, %v1174
    %v1176 = vpop.f32.mrf.mxu0
    %v1177 = vadd.f32 %v632, %v1176
    %v1178 = vpop.f32.mrf.mxu0
    %v1179 = vpop.f32.mrf.mxu0
    %1180 = vdwg.mxu0
    %1181 = vmatprep.subr.bf16.mxu0 %v772
    %1182 = vmatpush1.bf16.msra.mxu0 %v771
    %1183 = vmatprep.subr.bf16.mxu0 %v768
    %1184 = vmatpush1.bf16.msra.mxu0 %v767
    %1185 = vmatprep.subr.bf16.mxu0 %v764
    %1186 = vmatpush1.bf16.msra.mxu0 %v763
    %1187 = vmatprep.subr.bf16.mxu0 %v760
    %1188 = vmatpush1.bf16.msra.mxu0 %v759
    %1189 = vmatprep.subr.bf16.mxu0 %v756
    %1190 = vmatpush1.bf16.msra.mxu0 %v755
    %1191 = vmatprep.subr.bf16.mxu0 %v752
    %1192 = vmatpush1.bf16.msra.mxu0 %v751
    %1193 = vmatprep.subr.bf16.mxu0 %v748
    %1194 = vmatpush1.bf16.msra.mxu0 %v747
    %1195 = vmatprep.subr.bf16.mxu0 %v744
    %1196 = vmatpush1.bf16.msra.mxu0 %v743
    %1197 = vmatprep.subr.bf16.mxu0 0
    %1198 = vmatpush2.bf16.msra.mxu0 0
    %1199 = vmatprep.subr.bf16.mxu0 0
    %1200 = vmatpush2.bf16.msra.mxu0 0
    %1201 = vmatprep.subr.bf16.mxu0 0
    %1202 = vmatpush2.bf16.msra.mxu0 0
    %1203 = vmatprep.subr.bf16.mxu0 0
    %1204 = vmatpush2.bf16.msra.mxu0 0
    %1205 = vmatprep.subr.bf16.mxu0 0
    %1206 = vmatpush2.bf16.msra.mxu0 0
    %1207 = vmatprep.subr.bf16.mxu0 0
    %1208 = vmatpush2.bf16.msra.mxu0 0
    %1209 = vmatprep.subr.bf16.mxu0 0
    %1210 = vmatpush2.bf16.msra.mxu0 0
    %1211 = vmatprep.subr.bf16.mxu0 0
    %1212 = vmatpush2.bf16.msra.mxu0 0
    %1213 = vmatprep.mubr.bf16.mxu0 0
    %1214 = vmatmul.mubr.bf16.gmra.mxu0 %v1139
    %v1215 = vpop.f32.mrf.mxu0
    %v1216 = vadd.f32 %v636, %v1215
    %v1217 = vpop.f32.mrf.mxu0
    %v1218 = vadd.f32 %v640, %v1217
    %v1219 = vpop.f32.mrf.mxu0
    %v1220 = vpop.f32.mrf.mxu0
    %1221 = vdwg.mxu0
    %v1222 = vld [vmem:[#allocation6] sm:$0xff]
    %vm1223 = vcmp.gt.f32.partialorder %v1222, 1.0
    %v1224 = vsel %vm1223, 1, 0
    %v1225 = vcvt.s32.f32 %v1224
    %v1226 = vld [vmem:[#allocation7] sm:$0xff]
    %v1227 = vld [vmem:[#allocation7 + $0x8] sm:$0xff]
    %v1228 = vld [vmem:[#allocation7 + $0x10] sm:$0xff]
    %v1229 = vld [vmem:[#allocation7 + $0x18] sm:$0xff]
    %v1230 = vmul.f32 %v899, %v1226
    %v1231 = vmul.f32 %v903, %v1227
    %v1232 = vmul.f32 %v907, %v1228
    %v1233 = vmul.f32 %v911, %v1229
    %v1234 = vmul.f32 %v924, %v1175
    %v1235 = vmul.f32 %v928, %v1177
    %v1236 = vmul.f32 %v932, %v1216
    %v1237 = vmul.f32 %v936, %v1218
    %v1238 = vadd.f32 %v1230, %v1234
    %v1239 = vadd.f32 %v1231, %v1235
    %v1240 = vadd.f32 %v1232, %v1236
    %v1241 = vadd.f32 %v1233, %v1237
    %1242 = vst [vmem:[#allocation7] sm:$0xff] %v1238
    %1243 = vst [vmem:[#allocation7 + $0x8] sm:$0xff] %v1239
    %1244 = vst [vmem:[#allocation7 + $0x10] sm:$0xff] %v1240
    %1245 = vst [vmem:[#allocation7 + $0x18] sm:$0xff] %v1241
    %v1246 = vadd.f32 %v1238, %v1239
    %v1247 = vadd.f32 %v1246, %v1240
    %v1248 = vadd.f32 %v1247, %v1241
    %v1249 = vsub.f32 %v1222, %v1225
    %v1250 = vmul.f32 %v1249, %v961
    %v1251 = vmul.f32 %v968, %v1248
    %v1252 = vadd.f32 %v1250, %v1251
    %1253 = vst [vmem:[#allocation6] sm:$0xff] %v1252
    %vm1254 = vcmp.gt.f32.partialorder %v1252, 1.0
    %v1255 = vsel %vm1254, 1, 0
    %v1256 = vcvt.s32.f32 %v1255
    %v1257 = vld [vmem:[#allocation8] sm:$0xff]
    %v1258 = vadd.f32 %v1257, %v1256
    %1259 = vst [vmem:[#allocation8] sm:$0xff] %v1258
    %s1260 = scalar_lea.vmem %s0, 32
    %v1261 = vld [vmem:[%s1260] sm:$0xff]
    %v1262 = vld [vmem:[%s1260 + $0x8] sm:$0xff]
    %v1263 = vunpack.c.l.bf16 %v1261
    %v1264 = vunpack.c.h.bf16 %v1261
    %v1265 = vunpack.c.l.bf16 %v1262
    %v1266 = vunpack.c.h.bf16 %v1262
    %v1267 = vld [vmem:[#allocation2] sm:$0xff]
    %vm1268 = vcmp.gt.f32.partialorder %v1267, 1.0
    %v1269 = vsel %vm1268, 1, 0
    %v1270 = vcvt.s32.f32 %v1269
    %v1271 = vld [vmem:[#allocation3] sm:$0xff]
    %v1272 = vld [vmem:[#allocation3 + $0x8] sm:$0xff]
    %v1273 = vld [vmem:[#allocation3 + $0x10] sm:$0xff]
    %v1274 = vld [vmem:[#allocation3 + $0x18] sm:$0xff]
    %v1275 = vmul.f32 %v193, %v1271
    %v1276 = vmul.f32 %v197, %v1272
    %v1277 = vmul.f32 %v201, %v1273
    %v1278 = vmul.f32 %v205, %v1274
    %v1279 = vmul.f32 %v218, %v1263
    %v1280 = vmul.f32 %v222, %v1264
    %v1281 = vmul.f32 %v226, %v1265
    %v1282 = vmul.f32 %v230, %v1266
    %v1283 = vadd.f32 %v1275, %v1279
    %v1284 = vadd.f32 %v1276, %v1280
    %v1285 = vadd.f32 %v1277, %v1281
    %v1286 = vadd.f32 %v1278, %v1282
    %1287 = vst [vmem:[#allocation3] sm:$0xff] %v1283
    %1288 = vst [vmem:[#allocation3 + $0x8] sm:$0xff] %v1284
    %1289 = vst [vmem:[#allocation3 + $0x10] sm:$0xff] %v1285
    %1290 = vst [vmem:[#allocation3 + $0x18] sm:$0xff] %v1286
    %v1291 = vadd.f32 %v1283, %v1284
    %v1292 = vadd.f32 %v1291, %v1285
    %v1293 = vadd.f32 %v1292, %v1286
    %v1294 = vsub.f32 %v1267, %v1270
    %v1295 = vmul.f32 %v1294, %v255
    %v1296 = vmul.f32 %v262, %v1293
    %v1297 = vadd.f32 %v1295, %v1296
    %1298 = vst [vmem:[#allocation2] sm:$0xff] %v1297
    %vm1299 = vcmp.gt.f32.partialorder %v1297, 1.0
    %v1300 = vsel %vm1299, 1, 0
    %v1301 = vcvt.s32.f32 %v1300
    %v1302 = vpack.c.bf16 %v1301, %v1301
    %1303 = vmatprep.subr.bf16.mxu0 %v417
    %1304 = vmatpush1.bf16.msra.mxu0 %v416
    %1305 = vmatprep.subr.bf16.mxu0 %v413
    %1306 = vmatpush1.bf16.msra.mxu0 %v412
    %1307 = vmatprep.subr.bf16.mxu0 %v409
    %1308 = vmatpush1.bf16.msra.mxu0 %v408
    %1309 = vmatprep.subr.bf16.mxu0 %v405
    %1310 = vmatpush1.bf16.msra.mxu0 %v404
    %1311 = vmatprep.subr.bf16.mxu0 %v401
    %1312 = vmatpush1.bf16.msra.mxu0 %v400
    %1313 = vmatprep.subr.bf16.mxu0 %v397
    %1314 = vmatpush1.bf16.msra.mxu0 %v396
    %1315 = vmatprep.subr.bf16.mxu0 %v393
    %1316 = vmatpush1.bf16.msra.mxu0 %v392
    %1317 = vmatprep.subr.bf16.mxu0 %v389
    %1318 = vmatpush1.bf16.msra.mxu0 %v388
    %1319 = vmatprep.subr.bf16.mxu0 0
    %1320 = vmatpush2.bf16.msra.mxu0 0
    %1321 = vmatprep.subr.bf16.mxu0 0
    %1322 = vmatpush2.bf16.msra.mxu0 0
    %1323 = vmatprep.subr.bf16.mxu0 0
    %1324 = vmatpush2.bf16.msra.mxu0 0
    %1325 = vmatprep.subr.bf16.mxu0 0
    %1326 = vmatpush2.bf16.msra.mxu0 0
    %1327 = vmatprep.subr.bf16.mxu0 0
    %1328 = vmatpush2.bf16.msra.mxu0 0
    %1329 = vmatprep.subr.bf16.mxu0 0
    %1330 = vmatpush2.bf16.msra.mxu0 0
    %1331 = vmatprep.subr.bf16.mxu0 0
    %1332 = vmatpush2.bf16.msra.mxu0 0
    %1333 = vmatprep.subr.bf16.mxu0 0
    %1334 = vmatpush2.bf16.msra.mxu0 0
    %1335 = vmatprep.mubr.bf16.mxu0 0
    %1336 = vmatmul.mubr.bf16.gmra.mxu0 %v1302
    %v1337 = vpop.f32.mrf.mxu0
    %v1338 = vadd.f32 %v275, %v1337
    %v1339 = vpop.f32.mrf.mxu0
    %v1340 = vadd.f32 %v279, %v1339
    %v1341 = vpop.f32.mrf.mxu0
    %v1342 = vpop.f32.mrf.mxu0
    %1343 = vdwg.mxu0
    %1344 = vmatprep.subr.bf16.mxu0 %v419
    %1345 = vmatpush1.bf16.msra.mxu0 %v418
    %1346 = vmatprep.subr.bf16.mxu0 %v415
    %1347 = vmatpush1.bf16.msra.mxu0 %v414
    %1348 = vmatprep.subr.bf16.mxu0 %v411
    %1349 = vmatpush1.bf16.msra.mxu0 %v410
    %1350 = vmatprep.subr.bf16.mxu0 %v407
    %1351 = vmatpush1.bf16.msra.mxu0 %v406
    %1352 = vmatprep.subr.bf16.mxu0 %v403
    %1353 = vmatpush1.bf16.msra.mxu0 %v402
    %1354 = vmatprep.subr.bf16.mxu0 %v399
    %1355 = vmatpush1.bf16.msra.mxu0 %v398
    %1356 = vmatprep.subr.bf16.mxu0 %v395
    %1357 = vmatpush1.bf16.msra.mxu0 %v394
    %1358 = vmatprep.subr.bf16.mxu0 %v391
    %1359 = vmatpush1.bf16.msra.mxu0 %v390
    %1360 = vmatprep.subr.bf16.mxu0 0
    %1361 = vmatpush2.bf16.msra.mxu0 0
    %1362 = vmatprep.subr.bf16.mxu0 0
    %1363 = vmatpush2.bf16.msra.mxu0 0
    %1364 = vmatprep.subr.bf16.mxu0 0
    %1365 = vmatpush2.bf16.msra.mxu0 0
    %1366 = vmatprep.subr.bf16.mxu0 0
    %1367 = vmatpush2.bf16.msra.mxu0 0
    %1368 = vmatprep.subr.bf16.mxu0 0
    %1369 = vmatpush2.bf16.msra.mxu0 0
    %1370 = vmatprep.subr.bf16.mxu0 0
    %1371 = vmatpush2.bf16.msra.mxu0 0
    %1372 = vmatprep.subr.bf16.mxu0 0
    %1373 = vmatpush2.bf16.msra.mxu0 0
    %1374 = vmatprep.subr.bf16.mxu0 0
    %1375 = vmatpush2.bf16.msra.mxu0 0
    %1376 = vmatprep.mubr.bf16.mxu0 0
    %1377 = vmatmul.mubr.bf16.gmra.mxu0 %v1302
    %v1378 = vpop.f32.mrf.mxu0
    %v1379 = vadd.f32 %v283, %v1378
    %v1380 = vpop.f32.mrf.mxu0
    %v1381 = vadd.f32 %v287, %v1380
    %v1382 = vpop.f32.mrf.mxu0
    %v1383 = vpop.f32.mrf.mxu0
    %1384 = vdwg.mxu0
    %v1385 = vld [vmem:[#allocation4] sm:$0xff]
    %vm1386 = vcmp.gt.f32.partialorder %v1385, 1.0
    %v1387 = vsel %vm1386, 1, 0
    %v1388 = vcvt.s32.f32 %v1387
    %v1389 = vld [vmem:[#allocation5] sm:$0xff]
    %v1390 = vld [vmem:[#allocation5 + $0x8] sm:$0xff]
    %v1391 = vld [vmem:[#allocation5 + $0x10] sm:$0xff]
    %v1392 = vld [vmem:[#allocation5 + $0x18] sm:$0xff]
    %v1393 = vmul.f32 %v546, %v1389
    %v1394 = vmul.f32 %v550, %v1390
    %v1395 = vmul.f32 %v554, %v1391
    %v1396 = vmul.f32 %v558, %v1392
    %v1397 = vmul.f32 %v571, %v1338
    %v1398 = vmul.f32 %v575, %v1340
    %v1399 = vmul.f32 %v579, %v1379
    %v1400 = vmul.f32 %v583, %v1381
    %v1401 = vadd.f32 %v1393, %v1397
    %v1402 = vadd.f32 %v1394, %v1398
    %v1403 = vadd.f32 %v1395, %v1399
    %v1404 = vadd.f32 %v1396, %v1400
    %1405 = vst [vmem:[#allocation5] sm:$0xff] %v1401
    %1406 = vst [vmem:[#allocation5 + $0x8] sm:$0xff] %v1402
    %1407 = vst [vmem:[#allocation5 + $0x10] sm:$0xff] %v1403
    %1408 = vst [vmem:[#allocation5 + $0x18] sm:$0xff] %v1404
    %v1409 = vadd.f32 %v1401, %v1402
    %v1410 = vadd.f32 %v1409, %v1403
    %v1411 = vadd.f32 %v1410, %v1404
    %v1412 = vsub.f32 %v1385, %v1388
    %v1413 = vmul.f32 %v1412, %v608
    %v1414 = vmul.f32 %v615, %v1411
    %v1415 = vadd.f32 %v1413, %v1414
    %1416 = vst [vmem:[#allocation4] sm:$0xff] %v1415
    %vm1417 = vcmp.gt.f32.partialorder %v1415, 1.0
    %v1418 = vsel %vm1417, 1, 0
    %v1419 = vcvt.s32.f32 %v1418
    %v1420 = vpack.c.bf16 %v1419, %v1419
    %1421 = vmatprep.subr.bf16.mxu0 %v770
    %1422 = vmatpush1.bf16.msra.mxu0 %v769
    %1423 = vmatprep.subr.bf16.mxu0 %v766
    %1424 = vmatpush1.bf16.msra.mxu0 %v765
    %1425 = vmatprep.subr.bf16.mxu0 %v762
    %1426 = vmatpush1.bf16.msra.mxu0 %v761
    %1427 = vmatprep.subr.bf16.mxu0 %v758
    %1428 = vmatpush1.bf16.msra.mxu0 %v757
    %1429 = vmatprep.subr.bf16.mxu0 %v754
    %1430 = vmatpush1.bf16.msra.mxu0 %v753
    %1431 = vmatprep.subr.bf16.mxu0 %v750
    %1432 = vmatpush1.bf16.msra.mxu0 %v749
    %1433 = vmatprep.subr.bf16.mxu0 %v746
    %1434 = vmatpush1.bf16.msra.mxu0 %v745
    %1435 = vmatprep.subr.bf16.mxu0 %v742
    %1436 = vmatpush1.bf16.msra.mxu0 %v741
    %1437 = vmatprep.subr.bf16.mxu0 0
    %1438 = vmatpush2.bf16.msra.mxu0 0
    %1439 = vmatprep.subr.bf16.mxu0 0
    %1440 = vmatpush2.bf16.msra.mxu0 0
    %1441 = vmatprep.subr.bf16.mxu0 0
    %1442 = vmatpush2.bf16.msra.mxu0 0
    %1443 = vmatprep.subr.bf16.mxu0 0
    %1444 = vmatpush2.bf16.msra.mxu0 0
    %1445 = vmatprep.subr.bf16.mxu0 0
    %1446 = vmatpush2.bf16.msra.mxu0 0
    %1447 = vmatprep.subr.bf16.mxu0 0
    %1448 = vmatpush2.bf16.msra.mxu0 0
    %1449 = vmatprep.subr.bf16.mxu0 0
    %1450 = vmatpush2.bf16.msra.mxu0 0
    %1451 = vmatprep.subr.bf16.mxu0 0
    %1452 = vmatpush2.bf16.msra.mxu0 0
    %1453 = vmatprep.mubr.bf16.mxu0 0
    %1454 = vmatmul.mubr.bf16.gmra.mxu0 %v1420
    %v1455 = vpop.f32.mrf.mxu0
    %v1456 = vadd.f32 %v628, %v1455
    %v1457 = vpop.f32.mrf.mxu0
    %v1458 = vadd.f32 %v632, %v1457
    %v1459 = vpop.f32.mrf.mxu0
    %v1460 = vpop.f32.mrf.mxu0
    %1461 = vdwg.mxu0
    %1462 = vmatprep.subr.bf16.mxu0 %v772
    %1463 = vmatpush1.bf16.msra.mxu0 %v771
    %1464 = vmatprep.subr.bf16.mxu0 %v768
    %1465 = vmatpush1.bf16.msra.mxu0 %v767
    %1466 = vmatprep.subr.bf16.mxu0 %v764
    %1467 = vmatpush1.bf16.msra.mxu0 %v763
    %1468 = vmatprep.subr.bf16.mxu0 %v760
    %1469 = vmatpush1.bf16.msra.mxu0 %v759
    %1470 = vmatprep.subr.bf16.mxu0 %v756
    %1471 = vmatpush1.bf16.msra.mxu0 %v755
    %1472 = vmatprep.subr.bf16.mxu0 %v752
    %1473 = vmatpush1.bf16.msra.mxu0 %v751
    %1474 = vmatprep.subr.bf16.mxu0 %v748
    %1475 = vmatpush1.bf16.msra.mxu0 %v747
    %1476 = vmatprep.subr.bf16.mxu0 %v744
    %1477 = vmatpush1.bf16.msra.mxu0 %v743
    %1478 = vmatprep.subr.bf16.mxu0 0
    %1479 = vmatpush2.bf16.msra.mxu0 0
    %1480 = vmatprep.subr.bf16.mxu0 0
    %1481 = vmatpush2.bf16.msra.mxu0 0
    %1482 = vmatprep.subr.bf16.mxu0 0
    %1483 = vmatpush2.bf16.msra.mxu0 0
    %1484 = vmatprep.subr.bf16.mxu0 0
    %1485 = vmatpush2.bf16.msra.mxu0 0
    %1486 = vmatprep.subr.bf16.mxu0 0
    %1487 = vmatpush2.bf16.msra.mxu0 0
    %1488 = vmatprep.subr.bf16.mxu0 0
    %1489 = vmatpush2.bf16.msra.mxu0 0
    %1490 = vmatprep.subr.bf16.mxu0 0
    %1491 = vmatpush2.bf16.msra.mxu0 0
    %1492 = vmatprep.subr.bf16.mxu0 0
    %1493 = vmatpush2.bf16.msra.mxu0 0
    %1494 = vmatprep.mubr.bf16.mxu0 0
    %1495 = vmatmul.mubr.bf16.gmra.mxu0 %v1420
    %v1496 = vpop.f32.mrf.mxu0
    %v1497 = vadd.f32 %v636, %v1496
    %v1498 = vpop.f32.mrf.mxu0
    %v1499 = vadd.f32 %v640, %v1498
    %v1500 = vpop.f32.mrf.mxu0
    %v1501 = vpop.f32.mrf.mxu0
    %1502 = vdwg.mxu0
    %v1503 = vld [vmem:[#allocation6] sm:$0xff]
    %vm1504 = vcmp.gt.f32.partialorder %v1503, 1.0
    %v1505 = vsel %vm1504, 1, 0
    %v1506 = vcvt.s32.f32 %v1505
    %v1507 = vld [vmem:[#allocation7] sm:$0xff]
    %v1508 = vld [vmem:[#allocation7 + $0x8] sm:$0xff]
    %v1509 = vld [vmem:[#allocation7 + $0x10] sm:$0xff]
    %v1510 = vld [vmem:[#allocation7 + $0x18] sm:$0xff]
    %v1511 = vmul.f32 %v899, %v1507
    %v1512 = vmul.f32 %v903, %v1508
    %v1513 = vmul.f32 %v907, %v1509
    %v1514 = vmul.f32 %v911, %v1510
    %v1515 = vmul.f32 %v924, %v1456
    %v1516 = vmul.f32 %v928, %v1458
    %v1517 = vmul.f32 %v932, %v1497
    %v1518 = vmul.f32 %v936, %v1499
    %v1519 = vadd.f32 %v1511, %v1515
    %v1520 = vadd.f32 %v1512, %v1516
    %v1521 = vadd.f32 %v1513, %v1517
    %v1522 = vadd.f32 %v1514, %v1518
    %1523 = vst [vmem:[#allocation7] sm:$0xff] %v1519
    %1524 = vst [vmem:[#allocation7 + $0x8] sm:$0xff] %v1520
    %1525 = vst [vmem:[#allocation7 + $0x10] sm:$0xff] %v1521
    %1526 = vst [vmem:[#allocation7 + $0x18] sm:$0xff] %v1522
    %v1527 = vadd.f32 %v1519, %v1520
    %v1528 = vadd.f32 %v1527, %v1521
    %v1529 = vadd.f32 %v1528, %v1522
    %v1530 = vsub.f32 %v1503, %v1506
    %v1531 = vmul.f32 %v1530, %v961
    %v1532 = vmul.f32 %v968, %v1529
    %v1533 = vadd.f32 %v1531, %v1532
    %1534 = vst [vmem:[#allocation6] sm:$0xff] %v1533
    %vm1535 = vcmp.gt.f32.partialorder %v1533, 1.0
    %v1536 = vsel %vm1535, 1, 0
    %v1537 = vcvt.s32.f32 %v1536
    %v1538 = vld [vmem:[#allocation8] sm:$0xff]
    %v1539 = vadd.f32 %v1538, %v1537
    %1540 = vst [vmem:[#allocation8] sm:$0xff] %v1539
    %s1541 = scalar_lea.vmem %s0, 48
    %v1542 = vld [vmem:[%s1541] sm:$0xff]
    %v1543 = vld [vmem:[%s1541 + $0x8] sm:$0xff]
    %v1544 = vunpack.c.l.bf16 %v1542
    %v1545 = vunpack.c.h.bf16 %v1542
    %v1546 = vunpack.c.l.bf16 %v1543
    %v1547 = vunpack.c.h.bf16 %v1543
    %v1548 = vld [vmem:[#allocation2] sm:$0xff]
    %vm1549 = vcmp.gt.f32.partialorder %v1548, 1.0
    %v1550 = vsel %vm1549, 1, 0
    %v1551 = vcvt.s32.f32 %v1550
    %v1552 = vld [vmem:[#allocation3] sm:$0xff]
    %v1553 = vld [vmem:[#allocation3 + $0x8] sm:$0xff]
    %v1554 = vld [vmem:[#allocation3 + $0x10] sm:$0xff]
    %v1555 = vld [vmem:[#allocation3 + $0x18] sm:$0xff]
    %v1556 = vmul.f32 %v193, %v1552
    %v1557 = vmul.f32 %v197, %v1553
    %v1558 = vmul.f32 %v201, %v1554
    %v1559 = vmul.f32 %v205, %v1555
    %v1560 = vmul.f32 %v218, %v1544
    %v1561 = vmul.f32 %v222, %v1545
    %v1562 = vmul.f32 %v226, %v1546
    %v1563 = vmul.f32 %v230, %v1547
    %v1564 = vadd.f32 %v1556, %v1560
    %v1565 = vadd.f32 %v1557, %v1561
    %v1566 = vadd.f32 %v1558, %v1562
    %v1567 = vadd.f32 %v1559, %v1563
    %1568 = vst [vmem:[#allocation3] sm:$0xff] %v1564
    %1569 = vst [vmem:[#allocation3 + $0x8] sm:$0xff] %v1565
    %1570 = vst [vmem:[#allocation3 + $0x10] sm:$0xff] %v1566
    %1571 = vst [vmem:[#allocation3 + $0x18] sm:$0xff] %v1567
    %v1572 = vadd.f32 %v1564, %v1565
    %v1573 = vadd.f32 %v1572, %v1566
    %v1574 = vadd.f32 %v1573, %v1567
    %v1575 = vsub.f32 %v1548, %v1551
    %v1576 = vmul.f32 %v1575, %v255
    %v1577 = vmul.f32 %v262, %v1574
    %v1578 = vadd.f32 %v1576, %v1577
    %1579 = vst [vmem:[#allocation2] sm:$0xff] %v1578
    %vm1580 = vcmp.gt.f32.partialorder %v1578, 1.0
    %v1581 = vsel %vm1580, 1, 0
    %v1582 = vcvt.s32.f32 %v1581
    %v1583 = vpack.c.bf16 %v1582, %v1582
    %1584 = vmatprep.subr.bf16.mxu0 %v417
    %1585 = vmatpush1.bf16.msra.mxu0 %v416
    %1586 = vmatprep.subr.bf16.mxu0 %v413
    %1587 = vmatpush1.bf16.msra.mxu0 %v412
    %1588 = vmatprep.subr.bf16.mxu0 %v409
    %1589 = vmatpush1.bf16.msra.mxu0 %v408
    %1590 = vmatprep.subr.bf16.mxu0 %v405
    %1591 = vmatpush1.bf16.msra.mxu0 %v404
    %1592 = vmatprep.subr.bf16.mxu0 %v401
    %1593 = vmatpush1.bf16.msra.mxu0 %v400
    %1594 = vmatprep.subr.bf16.mxu0 %v397
    %1595 = vmatpush1.bf16.msra.mxu0 %v396
    %1596 = vmatprep.subr.bf16.mxu0 %v393
    %1597 = vmatpush1.bf16.msra.mxu0 %v392
    %1598 = vmatprep.subr.bf16.mxu0 %v389
    %1599 = vmatpush1.bf16.msra.mxu0 %v388
    %1600 = vmatprep.subr.bf16.mxu0 0
    %1601 = vmatpush2.bf16.msra.mxu0 0
    %1602 = vmatprep.subr.bf16.mxu0 0
    %1603 = vmatpush2.bf16.msra.mxu0 0
    %1604 = vmatprep.subr.bf16.mxu0 0
    %1605 = vmatpush2.bf16.msra.mxu0 0
    %1606 = vmatprep.subr.bf16.mxu0 0
    %1607 = vmatpush2.bf16.msra.mxu0 0
    %1608 = vmatprep.subr.bf16.mxu0 0
    %1609 = vmatpush2.bf16.msra.mxu0 0
    %1610 = vmatprep.subr.bf16.mxu0 0
    %1611 = vmatpush2.bf16.msra.mxu0 0
    %1612 = vmatprep.subr.bf16.mxu0 0
    %1613 = vmatpush2.bf16.msra.mxu0 0
    %1614 = vmatprep.subr.bf16.mxu0 0
    %1615 = vmatpush2.bf16.msra.mxu0 0
    %1616 = vmatprep.mubr.bf16.mxu0 0
    %1617 = vmatmul.mubr.bf16.gmra.mxu0 %v1583
    %v1618 = vpop.f32.mrf.mxu0
    %v1619 = vadd.f32 %v275, %v1618
    %v1620 = vpop.f32.mrf.mxu0
    %v1621 = vadd.f32 %v279, %v1620
    %v1622 = vpop.f32.mrf.mxu0
    %v1623 = vpop.f32.mrf.mxu0
    %1624 = vdwg.mxu0
    %1625 = vmatprep.subr.bf16.mxu0 %v419
    %1626 = vmatpush1.bf16.msra.mxu0 %v418
    %1627 = vmatprep.subr.bf16.mxu0 %v415
    %1628 = vmatpush1.bf16.msra.mxu0 %v414
    %1629 = vmatprep.subr.bf16.mxu0 %v411
    %1630 = vmatpush1.bf16.msra.mxu0 %v410
    %1631 = vmatprep.subr.bf16.mxu0 %v407
    %1632 = vmatpush1.bf16.msra.mxu0 %v406
    %1633 = vmatprep.subr.bf16.mxu0 %v403
    %1634 = vmatpush1.bf16.msra.mxu0 %v402
    %1635 = vmatprep.subr.bf16.mxu0 %v399
    %1636 = vmatpush1.bf16.msra.mxu0 %v398
    %1637 = vmatprep.subr.bf16.mxu0 %v395
    %1638 = vmatpush1.bf16.msra.mxu0 %v394
    %1639 = vmatprep.subr.bf16.mxu0 %v391
    %1640 = vmatpush1.bf16.msra.mxu0 %v390
    %1641 = vmatprep.subr.bf16.mxu0 0
    %1642 = vmatpush2.bf16.msra.mxu0 0
    %1643 = vmatprep.subr.bf16.mxu0 0
    %1644 = vmatpush2.bf16.msra.mxu0 0
    %1645 = vmatprep.subr.bf16.mxu0 0
    %1646 = vmatpush2.bf16.msra.mxu0 0
    %1647 = vmatprep.subr.bf16.mxu0 0
    %1648 = vmatpush2.bf16.msra.mxu0 0
    %1649 = vmatprep.subr.bf16.mxu0 0
    %1650 = vmatpush2.bf16.msra.mxu0 0
    %1651 = vmatprep.subr.bf16.mxu0 0
    %1652 = vmatpush2.bf16.msra.mxu0 0
    %1653 = vmatprep.subr.bf16.mxu0 0
    %1654 = vmatpush2.bf16.msra.mxu0 0
    %1655 = vmatprep.subr.bf16.mxu0 0
    %1656 = vmatpush2.bf16.msra.mxu0 0
    %1657 = vmatprep.mubr.bf16.mxu0 0
    %1658 = vmatmul.mubr.bf16.gmra.mxu0 %v1583
    %v1659 = vpop.f32.mrf.mxu0
    %v1660 = vadd.f32 %v283, %v1659
    %v1661 = vpop.f32.mrf.mxu0
    %v1662 = vadd.f32 %v287, %v1661
    %v1663 = vpop.f32.mrf.mxu0
    %v1664 = vpop.f32.mrf.mxu0
    %1665 = vdwg.mxu0
    %v1666 = vld [vmem:[#allocation4] sm:$0xff]
    %vm1667 = vcmp.gt.f32.partialorder %v1666, 1.0
    %v1668 = vsel %vm1667, 1, 0
    %v1669 = vcvt.s32.f32 %v1668
    %v1670 = vld [vmem:[#allocation5] sm:$0xff]
    %v1671 = vld [vmem:[#allocation5 + $0x8] sm:$0xff]
    %v1672 = vld [vmem:[#allocation5 + $0x10] sm:$0xff]
    %v1673 = vld [vmem:[#allocation5 + $0x18] sm:$0xff]
    %v1674 = vmul.f32 %v546, %v1670
    %v1675 = vmul.f32 %v550, %v1671
    %v1676 = vmul.f32 %v554, %v1672
    %v1677 = vmul.f32 %v558, %v1673
    %v1678 = vmul.f32 %v571, %v1619
    %v1679 = vmul.f32 %v575, %v1621
    %v1680 = vmul.f32 %v579, %v1660
    %v1681 = vmul.f32 %v583, %v1662
    %v1682 = vadd.f32 %v1674, %v1678
    %v1683 = vadd.f32 %v1675, %v1679
    %v1684 = vadd.f32 %v1676, %v1680
    %v1685 = vadd.f32 %v1677, %v1681
    %1686 = vst [vmem:[#allocation5] sm:$0xff] %v1682
    %1687 = vst [vmem:[#allocation5 + $0x8] sm:$0xff] %v1683
    %1688 = vst [vmem:[#allocation5 + $0x10] sm:$0xff] %v1684
    %1689 = vst [vmem:[#allocation5 + $0x18] sm:$0xff] %v1685
    %v1690 = vadd.f32 %v1682, %v1683
    %v1691 = vadd.f32 %v1690, %v1684
    %v1692 = vadd.f32 %v1691, %v1685
    %v1693 = vsub.f32 %v1666, %v1669
    %v1694 = vmul.f32 %v1693, %v608
    %v1695 = vmul.f32 %v615, %v1692
    %v1696 = vadd.f32 %v1694, %v1695
    %1697 = vst [vmem:[#allocation4] sm:$0xff] %v1696
    %vm1698 = vcmp.gt.f32.partialorder %v1696, 1.0
    %v1699 = vsel %vm1698, 1, 0
    %v1700 = vcvt.s32.f32 %v1699
    %v1701 = vpack.c.bf16 %v1700, %v1700
    %1702 = vmatprep.subr.bf16.mxu0 %v770
    %1703 = vmatpush1.bf16.msra.mxu0 %v769
    %1704 = vmatprep.subr.bf16.mxu0 %v766
    %1705 = vmatpush1.bf16.msra.mxu0 %v765
    %1706 = vmatprep.subr.bf16.mxu0 %v762
    %1707 = vmatpush1.bf16.msra.mxu0 %v761
    %1708 = vmatprep.subr.bf16.mxu0 %v758
    %1709 = vmatpush1.bf16.msra.mxu0 %v757
    %1710 = vmatprep.subr.bf16.mxu0 %v754
    %1711 = vmatpush1.bf16.msra.mxu0 %v753
    %1712 = vmatprep.subr.bf16.mxu0 %v750
    %1713 = vmatpush1.bf16.msra.mxu0 %v749
    %1714 = vmatprep.subr.bf16.mxu0 %v746
    %1715 = vmatpush1.bf16.msra.mxu0 %v745
    %1716 = vmatprep.subr.bf16.mxu0 %v742
    %1717 = vmatpush1.bf16.msra.mxu0 %v741
    %1718 = vmatprep.subr.bf16.mxu0 0
    %1719 = vmatpush2.bf16.msra.mxu0 0
    %1720 = vmatprep.subr.bf16.mxu0 0
    %1721 = vmatpush2.bf16.msra.mxu0 0
    %1722 = vmatprep.subr.bf16.mxu0 0
    %1723 = vmatpush2.bf16.msra.mxu0 0
    %1724 = vmatprep.subr.bf16.mxu0 0
    %1725 = vmatpush2.bf16.msra.mxu0 0
    %1726 = vmatprep.subr.bf16.mxu0 0
    %1727 = vmatpush2.bf16.msra.mxu0 0
    %1728 = vmatprep.subr.bf16.mxu0 0
    %1729 = vmatpush2.bf16.msra.mxu0 0
    %1730 = vmatprep.subr.bf16.mxu0 0
    %1731 = vmatpush2.bf16.msra.mxu0 0
    %1732 = vmatprep.subr.bf16.mxu0 0
    %1733 = vmatpush2.bf16.msra.mxu0 0
    %1734 = vmatprep.mubr.bf16.mxu0 0
    %1735 = vmatmul.mubr.bf16.gmra.mxu0 %v1701
    %v1736 = vpop.f32.mrf.mxu0
    %v1737 = vadd.f32 %v628, %v1736
    %v1738 = vpop.f32.mrf.mxu0
    %v1739 = vadd.f32 %v632, %v1738
    %v1740 = vpop.f32.mrf.mxu0
    %v1741 = vpop.f32.mrf.mxu0
    %1742 = vdwg.mxu0
    %1743 = vmatprep.subr.bf16.mxu0 %v772
    %1744 = vmatpush1.bf16.msra.mxu0 %v771
    %1745 = vmatprep.subr.bf16.mxu0 %v768
    %1746 = vmatpush1.bf16.msra.mxu0 %v767
    %1747 = vmatprep.subr.bf16.mxu0 %v764
    %1748 = vmatpush1.bf16.msra.mxu0 %v763
    %1749 = vmatprep.subr.bf16.mxu0 %v760
    %1750 = vmatpush1.bf16.msra.mxu0 %v759
    %1751 = vmatprep.subr.bf16.mxu0 %v756
    %1752 = vmatpush1.bf16.msra.mxu0 %v755
    %1753 = vmatprep.subr.bf16.mxu0 %v752
    %1754 = vmatpush1.bf16.msra.mxu0 %v751
    %1755 = vmatprep.subr.bf16.mxu0 %v748
    %1756 = vmatpush1.bf16.msra.mxu0 %v747
    %1757 = vmatprep.subr.bf16.mxu0 %v744
    %1758 = vmatpush1.bf16.msra.mxu0 %v743
    %1759 = vmatprep.subr.bf16.mxu0 0
    %1760 = vmatpush2.bf16.msra.mxu0 0
    %1761 = vmatprep.subr.bf16.mxu0 0
    %1762 = vmatpush2.bf16.msra.mxu0 0
    %1763 = vmatprep.subr.bf16.mxu0 0
    %1764 = vmatpush2.bf16.msra.mxu0 0
    %1765 = vmatprep.subr.bf16.mxu0 0
    %1766 = vmatpush2.bf16.msra.mxu0 0
    %1767 = vmatprep.subr.bf16.mxu0 0
    %1768 = vmatpush2.bf16.msra.mxu0 0
    %1769 = vmatprep.subr.bf16.mxu0 0
    %1770 = vmatpush2.bf16.msra.mxu0 0
    %1771 = vmatprep.subr.bf16.mxu0 0
    %1772 = vmatpush2.bf16.msra.mxu0 0
    %1773 = vmatprep.subr.bf16.mxu0 0
    %1774 = vmatpush2.bf16.msra.mxu0 0
    %1775 = vmatprep.mubr.bf16.mxu0 0
    %1776 = vmatmul.mubr.bf16.gmra.mxu0 %v1701
    %v1777 = vpop.f32.mrf.mxu0
    %v1778 = vadd.f32 %v636, %v1777
    %v1779 = vpop.f32.mrf.mxu0
    %v1780 = vadd.f32 %v640, %v1779
    %v1781 = vpop.f32.mrf.mxu0
    %v1782 = vpop.f32.mrf.mxu0
    %1783 = vdwg.mxu0
    %v1784 = vld [vmem:[#allocation6] sm:$0xff]
    %vm1785 = vcmp.gt.f32.partialorder %v1784, 1.0
    %v1786 = vsel %vm1785, 1, 0
    %v1787 = vcvt.s32.f32 %v1786
    %v1788 = vld [vmem:[#allocation7] sm:$0xff]
    %v1789 = vld [vmem:[#allocation7 + $0x8] sm:$0xff]
    %v1790 = vld [vmem:[#allocation7 + $0x10] sm:$0xff]
    %v1791 = vld [vmem:[#allocation7 + $0x18] sm:$0xff]
    %v1792 = vmul.f32 %v899, %v1788
    %v1793 = vmul.f32 %v903, %v1789
    %v1794 = vmul.f32 %v907, %v1790
    %v1795 = vmul.f32 %v911, %v1791
    %v1796 = vmul.f32 %v924, %v1737
    %v1797 = vmul.f32 %v928, %v1739
    %v1798 = vmul.f32 %v932, %v1778
    %v1799 = vmul.f32 %v936, %v1780
    %v1800 = vadd.f32 %v1792, %v1796
    %v1801 = vadd.f32 %v1793, %v1797
    %v1802 = vadd.f32 %v1794, %v1798
    %v1803 = vadd.f32 %v1795, %v1799
    %1804 = vst [vmem:[#allocation7] sm:$0xff] %v1800
    %1805 = vst [vmem:[#allocation7 + $0x8] sm:$0xff] %v1801
    %1806 = vst [vmem:[#allocation7 + $0x10] sm:$0xff] %v1802
    %1807 = vst [vmem:[#allocation7 + $0x18] sm:$0xff] %v1803
    %v1808 = vadd.f32 %v1800, %v1801
    %v1809 = vadd.f32 %v1808, %v1802
    %v1810 = vadd.f32 %v1809, %v1803
    %v1811 = vsub.f32 %v1784, %v1787
    %v1812 = vmul.f32 %v1811, %v961
    %v1813 = vmul.f32 %v968, %v1810
    %v1814 = vadd.f32 %v1812, %v1813
    %1815 = vst [vmem:[#allocation6] sm:$0xff] %v1814
    %vm1816 = vcmp.gt.f32.partialorder %v1814, 1.0
    %v1817 = vsel %vm1816, 1, 0
    %v1818 = vcvt.s32.f32 %v1817
    %v1819 = vld [vmem:[#allocation8] sm:$0xff]
    %v1820 = vadd.f32 %v1819, %v1818
    %1821 = vst [vmem:[#allocation8] sm:$0xff] %v1820
    %s1822 = scalar_lea.vmem %s0, 64
    %v1823 = vld [vmem:[%s1822] sm:$0xff]
    %v1824 = vld [vmem:[%s1822 + $0x8] sm:$0xff]
    %v1825 = vunpack.c.l.bf16 %v1823
    %v1826 = vunpack.c.h.bf16 %v1823
    %v1827 = vunpack.c.l.bf16 %v1824
    %v1828 = vunpack.c.h.bf16 %v1824
    %v1829 = vld [vmem:[#allocation2] sm:$0xff]
    %vm1830 = vcmp.gt.f32.partialorder %v1829, 1.0
    %v1831 = vsel %vm1830, 1, 0
    %v1832 = vcvt.s32.f32 %v1831
    %v1833 = vld [vmem:[#allocation3] sm:$0xff]
    %v1834 = vld [vmem:[#allocation3 + $0x8] sm:$0xff]
    %v1835 = vld [vmem:[#allocation3 + $0x10] sm:$0xff]
    %v1836 = vld [vmem:[#allocation3 + $0x18] sm:$0xff]
    %v1837 = vmul.f32 %v193, %v1833
    %v1838 = vmul.f32 %v197, %v1834
    %v1839 = vmul.f32 %v201, %v1835
    %v1840 = vmul.f32 %v205, %v1836
    %v1841 = vmul.f32 %v218, %v1825
    %v1842 = vmul.f32 %v222, %v1826
    %v1843 = vmul.f32 %v226, %v1827
    %v1844 = vmul.f32 %v230, %v1828
    %v1845 = vadd.f32 %v1837, %v1841
    %v1846 = vadd.f32 %v1838, %v1842
    %v1847 = vadd.f32 %v1839, %v1843
    %v1848 = vadd.f32 %v1840, %v1844
    %1849 = vst [vmem:[#allocation3] sm:$0xff] %v1845
    %1850 = vst [vmem:[#allocation3 + $0x8] sm:$0xff] %v1846
    %1851 = vst [vmem:[#allocation3 + $0x10] sm:$0xff] %v1847
    %1852 = vst [vmem:[#allocation3 + $0x18] sm:$0xff] %v1848
    %v1853 = vadd.f32 %v1845, %v1846
    %v1854 = vadd.f32 %v1853, %v1847
    %v1855 = vadd.f32 %v1854, %v1848
    %v1856 = vsub.f32 %v1829, %v1832
    %v1857 = vmul.f32 %v1856, %v255
    %v1858 = vmul.f32 %v262, %v1855
    %v1859 = vadd.f32 %v1857, %v1858
    %1860 = vst [vmem:[#allocation2] sm:$0xff] %v1859
    %vm1861 = vcmp.gt.f32.partialorder %v1859, 1.0
    %v1862 = vsel %vm1861, 1, 0
    %v1863 = vcvt.s32.f32 %v1862
    %v1864 = vpack.c.bf16 %v1863, %v1863
    %1865 = vmatprep.subr.bf16.mxu0 %v417
    %1866 = vmatpush1.bf16.msra.mxu0 %v416
    %1867 = vmatprep.subr.bf16.mxu0 %v413
    %1868 = vmatpush1.bf16.msra.mxu0 %v412
    %1869 = vmatprep.subr.bf16.mxu0 %v409
    %1870 = vmatpush1.bf16.msra.mxu0 %v408
    %1871 = vmatprep.subr.bf16.mxu0 %v405
    %1872 = vmatpush1.bf16.msra.mxu0 %v404
    %1873 = vmatprep.subr.bf16.mxu0 %v401
    %1874 = vmatpush1.bf16.msra.mxu0 %v400
    %1875 = vmatprep.subr.bf16.mxu0 %v397
    %1876 = vmatpush1.bf16.msra.mxu0 %v396
    %1877 = vmatprep.subr.bf16.mxu0 %v393
    %1878 = vmatpush1.bf16.msra.mxu0 %v392
    %1879 = vmatprep.subr.bf16.mxu0 %v389
    %1880 = vmatpush1.bf16.msra.mxu0 %v388
    %1881 = vmatprep.subr.bf16.mxu0 0
    %1882 = vmatpush2.bf16.msra.mxu0 0
    %1883 = vmatprep.subr.bf16.mxu0 0
    %1884 = vmatpush2.bf16.msra.mxu0 0
    %1885 = vmatprep.subr.bf16.mxu0 0
    %1886 = vmatpush2.bf16.msra.mxu0 0
    %1887 = vmatprep.subr.bf16.mxu0 0
    %1888 = vmatpush2.bf16.msra.mxu0 0
    %1889 = vmatprep.subr.bf16.mxu0 0
    %1890 = vmatpush2.bf16.msra.mxu0 0
    %1891 = vmatprep.subr.bf16.mxu0 0
    %1892 = vmatpush2.bf16.msra.mxu0 0
    %1893 = vmatprep.subr.bf16.mxu0 0
    %1894 = vmatpush2.bf16.msra.mxu0 0
    %1895 = vmatprep.subr.bf16.mxu0 0
    %1896 = vmatpush2.bf16.msra.mxu0 0
    %1897 = vmatprep.mubr.bf16.mxu0 0
    %1898 = vmatmul.mubr.bf16.gmra.mxu0 %v1864
    %v1899 = vpop.f32.mrf.mxu0
    %v1900 = vadd.f32 %v275, %v1899
    %v1901 = vpop.f32.mrf.mxu0
    %v1902 = vadd.f32 %v279, %v1901
    %v1903 = vpop.f32.mrf.mxu0
    %v1904 = vpop.f32.mrf.mxu0
    %1905 = vdwg.mxu0
    %1906 = vmatprep.subr.bf16.mxu0 %v419
    %1907 = vmatpush1.bf16.msra.mxu0 %v418
    %1908 = vmatprep.subr.bf16.mxu0 %v415
    %1909 = vmatpush1.bf16.msra.mxu0 %v414
    %1910 = vmatprep.subr.bf16.mxu0 %v411
    %1911 = vmatpush1.bf16.msra.mxu0 %v410
    %1912 = vmatprep.subr.bf16.mxu0 %v407
    %1913 = vmatpush1.bf16.msra.mxu0 %v406
    %1914 = vmatprep.subr.bf16.mxu0 %v403
    %1915 = vmatpush1.bf16.msra.mxu0 %v402
    %1916 = vmatprep.subr.bf16.mxu0 %v399
    %1917 = vmatpush1.bf16.msra.mxu0 %v398
    %1918 = vmatprep.subr.bf16.mxu0 %v395
    %1919 = vmatpush1.bf16.msra.mxu0 %v394
    %1920 = vmatprep.subr.bf16.mxu0 %v391
    %1921 = vmatpush1.bf16.msra.mxu0 %v390
    %1922 = vmatprep.subr.bf16.mxu0 0
    %1923 = vmatpush2.bf16.msra.mxu0 0
    %1924 = vmatprep.subr.bf16.mxu0 0
    %1925 = vmatpush2.bf16.msra.mxu0 0
    %1926 = vmatprep.subr.bf16.mxu0 0
    %1927 = vmatpush2.bf16.msra.mxu0 0
    %1928 = vmatprep.subr.bf16.mxu0 0
    %1929 = vmatpush2.bf16.msra.mxu0 0
    %1930 = vmatprep.subr.bf16.mxu0 0
    %1931 = vmatpush2.bf16.msra.mxu0 0
    %1932 = vmatprep.subr.bf16.mxu0 0
    %1933 = vmatpush2.bf16.msra.mxu0 0
    %1934 = vmatprep.subr.bf16.mxu0 0
    %1935 = vmatpush2.bf16.msra.mxu0 0
    %1936 = vmatprep.subr.bf16.mxu0 0
    %1937 = vmatpush2.bf16.msra.mxu0 0
    %1938 = vmatprep.mubr.bf16.mxu0 0
    %1939 = vmatmul.mubr.bf16.gmra.mxu0 %v1864
    %v1940 = vpop.f32.mrf.mxu0
    %v1941 = vadd.f32 %v283, %v1940
    %v1942 = vpop.f32.mrf.mxu0
    %v1943 = vadd.f32 %v287, %v1942
    %v1944 = vpop.f32.mrf.mxu0
    %v1945 = vpop.f32.mrf.mxu0
    %1946 = vdwg.mxu0
    %v1947 = vld [vmem:[#allocation4] sm:$0xff]
    %vm1948 = vcmp.gt.f32.partialorder %v1947, 1.0
    %v1949 = vsel %vm1948, 1, 0
    %v1950 = vcvt.s32.f32 %v1949
    %v1951 = vld [vmem:[#allocation5] sm:$0xff]
    %v1952 = vld [vmem:[#allocation5 + $0x8] sm:$0xff]
    %v1953 = vld [vmem:[#allocation5 + $0x10] sm:$0xff]
    %v1954 = vld [vmem:[#allocation5 + $0x18] sm:$0xff]
    %v1955 = vmul.f32 %v546, %v1951
    %v1956 = vmul.f32 %v550, %v1952
    %v1957 = vmul.f32 %v554, %v1953
    %v1958 = vmul.f32 %v558, %v1954
    %v1959 = vmul.f32 %v571, %v1900
    %v1960 = vmul.f32 %v575, %v1902
    %v1961 = vmul.f32 %v579, %v1941
    %v1962 = vmul.f32 %v583, %v1943
    %v1963 = vadd.f32 %v1955, %v1959
    %v1964 = vadd.f32 %v1956, %v1960
    %v1965 = vadd.f32 %v1957, %v1961
    %v1966 = vadd.f32 %v1958, %v1962
    %1967 = vst [vmem:[#allocation5] sm:$0xff] %v1963
    %1968 = vst [vmem:[#allocation5 + $0x8] sm:$0xff] %v1964
    %1969 = vst [vmem:[#allocation5 + $0x10] sm:$0xff] %v1965
    %1970 = vst [vmem:[#allocation5 + $0x18] sm:$0xff] %v1966
    %v1971 = vadd.f32 %v1963, %v1964
    %v1972 = vadd.f32 %v1971, %v1965
    %v1973 = vadd.f32 %v1972, %v1966
    %v1974 = vsub.f32 %v1947, %v1950
    %v1975 = vmul.f32 %v1974, %v608
    %v1976 = vmul.f32 %v615, %v1973
    %v1977 = vadd.f32 %v1975, %v1976
    %1978 = vst [vmem:[#allocation4] sm:$0xff] %v1977
    %vm1979 = vcmp.gt.f32.partialorder %v1977, 1.0
    %v1980 = vsel %vm1979, 1, 0
    %v1981 = vcvt.s32.f32 %v1980
    %v1982 = vpack.c.bf16 %v1981, %v1981
    %1983 = vmatprep.subr.bf16.mxu0 %v770
    %1984 = vmatpush1.bf16.msra.mxu0 %v769
    %1985 = vmatprep.subr.bf16.mxu0 %v766
    %1986 = vmatpush1.bf16.msra.mxu0 %v765
    %1987 = vmatprep.subr.bf16.mxu0 %v762
    %1988 = vmatpush1.bf16.msra.mxu0 %v761
    %1989 = vmatprep.subr.bf16.mxu0 %v758
    %1990 = vmatpush1.bf16.msra.mxu0 %v757
    %1991 = vmatprep.subr.bf16.mxu0 %v754
    %1992 = vmatpush1.bf16.msra.mxu0 %v753
    %1993 = vmatprep.subr.bf16.mxu0 %v750
    %1994 = vmatpush1.bf16.msra.mxu0 %v749
    %1995 = vmatprep.subr.bf16.mxu0 %v746
    %1996 = vmatpush1.bf16.msra.mxu0 %v745
    %1997 = vmatprep.subr.bf16.mxu0 %v742
    %1998 = vmatpush1.bf16.msra.mxu0 %v741
    %1999 = vmatprep.subr.bf16.mxu0 0
    %2000 = vmatpush2.bf16.msra.mxu0 0
    %2001 = vmatprep.subr.bf16.mxu0 0
    %2002 = vmatpush2.bf16.msra.mxu0 0
    %2003 = vmatprep.subr.bf16.mxu0 0
    %2004 = vmatpush2.bf16.msra.mxu0 0
    %2005 = vmatprep.subr.bf16.mxu0 0
    %2006 = vmatpush2.bf16.msra.mxu0 0
    %2007 = vmatprep.subr.bf16.mxu0 0
    %2008 = vmatpush2.bf16.msra.mxu0 0
    %2009 = vmatprep.subr.bf16.mxu0 0
    %2010 = vmatpush2.bf16.msra.mxu0 0
    %2011 = vmatprep.subr.bf16.mxu0 0
    %2012 = vmatpush2.bf16.msra.mxu0 0
    %2013 = vmatprep.subr.bf16.mxu0 0
    %2014 = vmatpush2.bf16.msra.mxu0 0
    %2015 = vmatprep.mubr.bf16.mxu0 0
    %2016 = vmatmul.mubr.bf16.gmra.mxu0 %v1982
    %v2017 = vpop.f32.mrf.mxu0
    %v2018 = vadd.f32 %v628, %v2017
    %v2019 = vpop.f32.mrf.mxu0
    %v2020 = vadd.f32 %v632, %v2019
    %v2021 = vpop.f32.mrf.mxu0
    %v2022 = vpop.f32.mrf.mxu0
    %2023 = vdwg.mxu0
    %2024 = vmatprep.subr.bf16.mxu0 %v772
    %2025 = vmatpush1.bf16.msra.mxu0 %v771
    %2026 = vmatprep.subr.bf16.mxu0 %v768
    %2027 = vmatpush1.bf16.msra.mxu0 %v767
    %2028 = vmatprep.subr.bf16.mxu0 %v764
    %2029 = vmatpush1.bf16.msra.mxu0 %v763
    %2030 = vmatprep.subr.bf16.mxu0 %v760
    %2031 = vmatpush1.bf16.msra.mxu0 %v759
    %2032 = vmatprep.subr.bf16.mxu0 %v756
    %2033 = vmatpush1.bf16.msra.mxu0 %v755
    %2034 = vmatprep.subr.bf16.mxu0 %v752
    %2035 = vmatpush1.bf16.msra.mxu0 %v751
    %2036 = vmatprep.subr.bf16.mxu0 %v748
    %2037 = vmatpush1.bf16.msra.mxu0 %v747
    %2038 = vmatprep.subr.bf16.mxu0 %v744
    %2039 = vmatpush1.bf16.msra.mxu0 %v743
    %2040 = vmatprep.subr.bf16.mxu0 0
    %2041 = vmatpush2.bf16.msra.mxu0 0
    %2042 = vmatprep.subr.bf16.mxu0 0
    %2043 = vmatpush2.bf16.msra.mxu0 0
    %2044 = vmatprep.subr.bf16.mxu0 0
    %2045 = vmatpush2.bf16.msra.mxu0 0
    %2046 = vmatprep.subr.bf16.mxu0 0
    %2047 = vmatpush2.bf16.msra.mxu0 0
    %2048 = vmatprep.subr.bf16.mxu0 0
    %2049 = vmatpush2.bf16.msra.mxu0 0
    %2050 = vmatprep.subr.bf16.mxu0 0
    %2051 = vmatpush2.bf16.msra.mxu0 0
    %2052 = vmatprep.subr.bf16.mxu0 0
    %2053 = vmatpush2.bf16.msra.mxu0 0
    %2054 = vmatprep.subr.bf16.mxu0 0
    %2055 = vmatpush2.bf16.msra.mxu0 0
    %2056 = vmatprep.mubr.bf16.mxu0 0
    %2057 = vmatmul.mubr.bf16.gmra.mxu0 %v1982
    %v2058 = vpop.f32.mrf.mxu0
    %v2059 = vadd.f32 %v636, %v2058
    %v2060 = vpop.f32.mrf.mxu0
    %v2061 = vadd.f32 %v640, %v2060
    %v2062 = vpop.f32.mrf.mxu0
    %v2063 = vpop.f32.mrf.mxu0
    %2064 = vdwg.mxu0
    %v2065 = vld [vmem:[#allocation6] sm:$0xff]
    %vm2066 = vcmp.gt.f32.partialorder %v2065, 1.0
    %v2067 = vsel %vm2066, 1, 0
    %v2068 = vcvt.s32.f32 %v2067
    %v2069 = vld [vmem:[#allocation7] sm:$0xff]
    %v2070 = vld [vmem:[#allocation7 + $0x8] sm:$0xff]
    %v2071 = vld [vmem:[#allocation7 + $0x10] sm:$0xff]
    %v2072 = vld [vmem:[#allocation7 + $0x18] sm:$0xff]
    %v2073 = vmul.f32 %v899, %v2069
    %v2074 = vmul.f32 %v903, %v2070
    %v2075 = vmul.f32 %v907, %v2071
    %v2076 = vmul.f32 %v911, %v2072
    %v2077 = vmul.f32 %v924, %v2018
    %v2078 = vmul.f32 %v928, %v2020
    %v2079 = vmul.f32 %v932, %v2059
    %v2080 = vmul.f32 %v936, %v2061
    %v2081 = vadd.f32 %v2073, %v2077
    %v2082 = vadd.f32 %v2074, %v2078
    %v2083 = vadd.f32 %v2075, %v2079
    %v2084 = vadd.f32 %v2076, %v2080
    %2085 = vst [vmem:[#allocation7] sm:$0xff] %v2081
    %2086 = vst [vmem:[#allocation7 + $0x8] sm:$0xff] %v2082
    %2087 = vst [vmem:[#allocation7 + $0x10] sm:$0xff] %v2083
    %2088 = vst [vmem:[#allocation7 + $0x18] sm:$0xff] %v2084
    %v2089 = vadd.f32 %v2081, %v2082
    %v2090 = vadd.f32 %v2089, %v2083
    %v2091 = vadd.f32 %v2090, %v2084
    %v2092 = vsub.f32 %v2065, %v2068
    %v2093 = vmul.f32 %v2092, %v961
    %v2094 = vmul.f32 %v968, %v2091
    %v2095 = vadd.f32 %v2093, %v2094
    %2096 = vst [vmem:[#allocation6] sm:$0xff] %v2095
    %vm2097 = vcmp.gt.f32.partialorder %v2095, 1.0
    %v2098 = vsel %vm2097, 1, 0
    %v2099 = vcvt.s32.f32 %v2098
    %v2100 = vld [vmem:[#allocation8] sm:$0xff]
    %v2101 = vadd.f32 %v2100, %v2099
    %2102 = vst [vmem:[#allocation8] sm:$0xff] %v2101
    %s2103 = scalar_lea.vmem %s0, 80
    %v2104 = vld [vmem:[%s2103] sm:$0xff]
    %v2105 = vld [vmem:[%s2103 + $0x8] sm:$0xff]
    %v2106 = vunpack.c.l.bf16 %v2104
    %v2107 = vunpack.c.h.bf16 %v2104
    %v2108 = vunpack.c.l.bf16 %v2105
    %v2109 = vunpack.c.h.bf16 %v2105
    %v2110 = vld [vmem:[#allocation2] sm:$0xff]
    %vm2111 = vcmp.gt.f32.partialorder %v2110, 1.0
    %v2112 = vsel %vm2111, 1, 0
    %v2113 = vcvt.s32.f32 %v2112
    %v2114 = vld [vmem:[#allocation3] sm:$0xff]
    %v2115 = vld [vmem:[#allocation3 + $0x8] sm:$0xff]
    %v2116 = vld [vmem:[#allocation3 + $0x10] sm:$0xff]
    %v2117 = vld [vmem:[#allocation3 + $0x18] sm:$0xff]
    %v2118 = vmul.f32 %v193, %v2114
    %v2119 = vmul.f32 %v197, %v2115
    %v2120 = vmul.f32 %v201, %v2116
    %v2121 = vmul.f32 %v205, %v2117
    %v2122 = vmul.f32 %v218, %v2106
    %v2123 = vmul.f32 %v222, %v2107
    %v2124 = vmul.f32 %v226, %v2108
    %v2125 = vmul.f32 %v230, %v2109
    %v2126 = vadd.f32 %v2118, %v2122
    %v2127 = vadd.f32 %v2119, %v2123
    %v2128 = vadd.f32 %v2120, %v2124
    %v2129 = vadd.f32 %v2121, %v2125
    %2130 = vst [vmem:[#allocation3] sm:$0xff] %v2126
    %2131 = vst [vmem:[#allocation3 + $0x8] sm:$0xff] %v2127
    %2132 = vst [vmem:[#allocation3 + $0x10] sm:$0xff] %v2128
    %2133 = vst [vmem:[#allocation3 + $0x18] sm:$0xff] %v2129
    %v2134 = vadd.f32 %v2126, %v2127
    %v2135 = vadd.f32 %v2134, %v2128
    %v2136 = vadd.f32 %v2135, %v2129
    %v2137 = vsub.f32 %v2110, %v2113
    %v2138 = vmul.f32 %v2137, %v255
    %v2139 = vmul.f32 %v262, %v2136
    %v2140 = vadd.f32 %v2138, %v2139
    %2141 = vst [vmem:[#allocation2] sm:$0xff] %v2140
    %vm2142 = vcmp.gt.f32.partialorder %v2140, 1.0
    %v2143 = vsel %vm2142, 1, 0
    %v2144 = vcvt.s32.f32 %v2143
    %v2145 = vpack.c.bf16 %v2144, %v2144
    %2146 = vmatprep.subr.bf16.mxu0 %v417
    %2147 = vmatpush1.bf16.msra.mxu0 %v416
    %2148 = vmatprep.subr.bf16.mxu0 %v413
    %2149 = vmatpush1.bf16.msra.mxu0 %v412
    %2150 = vmatprep.subr.bf16.mxu0 %v409
    %2151 = vmatpush1.bf16.msra.mxu0 %v408
    %2152 = vmatprep.subr.bf16.mxu0 %v405
    %2153 = vmatpush1.bf16.msra.mxu0 %v404
    %2154 = vmatprep.subr.bf16.mxu0 %v401
    %2155 = vmatpush1.bf16.msra.mxu0 %v400
    %2156 = vmatprep.subr.bf16.mxu0 %v397
    %2157 = vmatpush1.bf16.msra.mxu0 %v396
    %2158 = vmatprep.subr.bf16.mxu0 %v393
    %2159 = vmatpush1.bf16.msra.mxu0 %v392
    %2160 = vmatprep.subr.bf16.mxu0 %v389
    %2161 = vmatpush1.bf16.msra.mxu0 %v388
    %2162 = vmatprep.subr.bf16.mxu0 0
    %2163 = vmatpush2.bf16.msra.mxu0 0
    %2164 = vmatprep.subr.bf16.mxu0 0
    %2165 = vmatpush2.bf16.msra.mxu0 0
    %2166 = vmatprep.subr.bf16.mxu0 0
    %2167 = vmatpush2.bf16.msra.mxu0 0
    %2168 = vmatprep.subr.bf16.mxu0 0
    %2169 = vmatpush2.bf16.msra.mxu0 0
    %2170 = vmatprep.subr.bf16.mxu0 0
    %2171 = vmatpush2.bf16.msra.mxu0 0
    %2172 = vmatprep.subr.bf16.mxu0 0
    %2173 = vmatpush2.bf16.msra.mxu0 0
    %2174 = vmatprep.subr.bf16.mxu0 0
    %2175 = vmatpush2.bf16.msra.mxu0 0
    %2176 = vmatprep.subr.bf16.mxu0 0
    %2177 = vmatpush2.bf16.msra.mxu0 0
    %2178 = vmatprep.mubr.bf16.mxu0 0
    %2179 = vmatmul.mubr.bf16.gmra.mxu0 %v2145
    %v2180 = vpop.f32.mrf.mxu0
    %v2181 = vadd.f32 %v275, %v2180
    %v2182 = vpop.f32.mrf.mxu0
    %v2183 = vadd.f32 %v279, %v2182
    %v2184 = vpop.f32.mrf.mxu0
    %v2185 = vpop.f32.mrf.mxu0
    %2186 = vdwg.mxu0
    %2187 = vmatprep.subr.bf16.mxu0 %v419
    %2188 = vmatpush1.bf16.msra.mxu0 %v418
    %2189 = vmatprep.subr.bf16.mxu0 %v415
    %2190 = vmatpush1.bf16.msra.mxu0 %v414
    %2191 = vmatprep.subr.bf16.mxu0 %v411
    %2192 = vmatpush1.bf16.msra.mxu0 %v410
    %2193 = vmatprep.subr.bf16.mxu0 %v407
    %2194 = vmatpush1.bf16.msra.mxu0 %v406
    %2195 = vmatprep.subr.bf16.mxu0 %v403
    %2196 = vmatpush1.bf16.msra.mxu0 %v402
    %2197 = vmatprep.subr.bf16.mxu0 %v399
    %2198 = vmatpush1.bf16.msra.mxu0 %v398
    %2199 = vmatprep.subr.bf16.mxu0 %v395
    %2200 = vmatpush1.bf16.msra.mxu0 %v394
    %2201 = vmatprep.subr.bf16.mxu0 %v391
    %2202 = vmatpush1.bf16.msra.mxu0 %v390
    %2203 = vmatprep.subr.bf16.mxu0 0
    %2204 = vmatpush2.bf16.msra.mxu0 0
    %2205 = vmatprep.subr.bf16.mxu0 0
    %2206 = vmatpush2.bf16.msra.mxu0 0
    %2207 = vmatprep.subr.bf16.mxu0 0
    %2208 = vmatpush2.bf16.msra.mxu0 0
    %2209 = vmatprep.subr.bf16.mxu0 0
    %2210 = vmatpush2.bf16.msra.mxu0 0
    %2211 = vmatprep.subr.bf16.mxu0 0
    %2212 = vmatpush2.bf16.msra.mxu0 0
    %2213 = vmatprep.subr.bf16.mxu0 0
    %2214 = vmatpush2.bf16.msra.mxu0 0
    %2215 = vmatprep.subr.bf16.mxu0 0
    %2216 = vmatpush2.bf16.msra.mxu0 0
    %2217 = vmatprep.subr.bf16.mxu0 0
    %2218 = vmatpush2.bf16.msra.mxu0 0
    %2219 = vmatprep.mubr.bf16.mxu0 0
    %2220 = vmatmul.mubr.bf16.gmra.mxu0 %v2145
    %v2221 = vpop.f32.mrf.mxu0
    %v2222 = vadd.f32 %v283, %v2221
    %v2223 = vpop.f32.mrf.mxu0
    %v2224 = vadd.f32 %v287, %v2223
    %v2225 = vpop.f32.mrf.mxu0
    %v2226 = vpop.f32.mrf.mxu0
    %2227 = vdwg.mxu0
    %v2228 = vld [vmem:[#allocation4] sm:$0xff]
    %vm2229 = vcmp.gt.f32.partialorder %v2228, 1.0
    %v2230 = vsel %vm2229, 1, 0
    %v2231 = vcvt.s32.f32 %v2230
    %v2232 = vld [vmem:[#allocation5] sm:$0xff]
    %v2233 = vld [vmem:[#allocation5 + $0x8] sm:$0xff]
    %v2234 = vld [vmem:[#allocation5 + $0x10] sm:$0xff]
    %v2235 = vld [vmem:[#allocation5 + $0x18] sm:$0xff]
    %v2236 = vmul.f32 %v546, %v2232
    %v2237 = vmul.f32 %v550, %v2233
    %v2238 = vmul.f32 %v554, %v2234
    %v2239 = vmul.f32 %v558, %v2235
    %v2240 = vmul.f32 %v571, %v2181
    %v2241 = vmul.f32 %v575, %v2183
    %v2242 = vmul.f32 %v579, %v2222
    %v2243 = vmul.f32 %v583, %v2224
    %v2244 = vadd.f32 %v2236, %v2240
    %v2245 = vadd.f32 %v2237, %v2241
    %v2246 = vadd.f32 %v2238, %v2242
    %v2247 = vadd.f32 %v2239, %v2243
    %2248 = vst [vmem:[#allocation5] sm:$0xff] %v2244
    %2249 = vst [vmem:[#allocation5 + $0x8] sm:$0xff] %v2245
    %2250 = vst [vmem:[#allocation5 + $0x10] sm:$0xff] %v2246
    %2251 = vst [vmem:[#allocation5 + $0x18] sm:$0xff] %v2247
    %v2252 = vadd.f32 %v2244, %v2245
    %v2253 = vadd.f32 %v2252, %v2246
    %v2254 = vadd.f32 %v2253, %v2247
    %v2255 = vsub.f32 %v2228, %v2231
    %v2256 = vmul.f32 %v2255, %v608
    %v2257 = vmul.f32 %v615, %v2254
    %v2258 = vadd.f32 %v2256, %v2257
    %2259 = vst [vmem:[#allocation4] sm:$0xff] %v2258
    %vm2260 = vcmp.gt.f32.partialorder %v2258, 1.0
    %v2261 = vsel %vm2260, 1, 0
    %v2262 = vcvt.s32.f32 %v2261
    %v2263 = vpack.c.bf16 %v2262, %v2262
    %2264 = vmatprep.subr.bf16.mxu0 %v770
    %2265 = vmatpush1.bf16.msra.mxu0 %v769
    %2266 = vmatprep.subr.bf16.mxu0 %v766
    %2267 = vmatpush1.bf16.msra.mxu0 %v765
    %2268 = vmatprep.subr.bf16.mxu0 %v762
    %2269 = vmatpush1.bf16.msra.mxu0 %v761
    %2270 = vmatprep.subr.bf16.mxu0 %v758
    %2271 = vmatpush1.bf16.msra.mxu0 %v757
    %2272 = vmatprep.subr.bf16.mxu0 %v754
    %2273 = vmatpush1.bf16.msra.mxu0 %v753
    %2274 = vmatprep.subr.bf16.mxu0 %v750
    %2275 = vmatpush1.bf16.msra.mxu0 %v749
    %2276 = vmatprep.subr.bf16.mxu0 %v746
    %2277 = vmatpush1.bf16.msra.mxu0 %v745
    %2278 = vmatprep.subr.bf16.mxu0 %v742
    %2279 = vmatpush1.bf16.msra.mxu0 %v741
    %2280 = vmatprep.subr.bf16.mxu0 0
    %2281 = vmatpush2.bf16.msra.mxu0 0
    %2282 = vmatprep.subr.bf16.mxu0 0
    %2283 = vmatpush2.bf16.msra.mxu0 0
    %2284 = vmatprep.subr.bf16.mxu0 0
    %2285 = vmatpush2.bf16.msra.mxu0 0
    %2286 = vmatprep.subr.bf16.mxu0 0
    %2287 = vmatpush2.bf16.msra.mxu0 0
    %2288 = vmatprep.subr.bf16.mxu0 0
    %2289 = vmatpush2.bf16.msra.mxu0 0
    %2290 = vmatprep.subr.bf16.mxu0 0
    %2291 = vmatpush2.bf16.msra.mxu0 0
    %2292 = vmatprep.subr.bf16.mxu0 0
    %2293 = vmatpush2.bf16.msra.mxu0 0
    %2294 = vmatprep.subr.bf16.mxu0 0
    %2295 = vmatpush2.bf16.msra.mxu0 0
    %2296 = vmatprep.mubr.bf16.mxu0 0
    %2297 = vmatmul.mubr.bf16.gmra.mxu0 %v2263
    %v2298 = vpop.f32.mrf.mxu0
    %v2299 = vadd.f32 %v628, %v2298
    %v2300 = vpop.f32.mrf.mxu0
    %v2301 = vadd.f32 %v632, %v2300
    %v2302 = vpop.f32.mrf.mxu0
    %v2303 = vpop.f32.mrf.mxu0
    %2304 = vdwg.mxu0
    %2305 = vmatprep.subr.bf16.mxu0 %v772
    %2306 = vmatpush1.bf16.msra.mxu0 %v771
    %2307 = vmatprep.subr.bf16.mxu0 %v768
    %2308 = vmatpush1.bf16.msra.mxu0 %v767
    %2309 = vmatprep.subr.bf16.mxu0 %v764
    %2310 = vmatpush1.bf16.msra.mxu0 %v763
    %2311 = vmatprep.subr.bf16.mxu0 %v760
    %2312 = vmatpush1.bf16.msra.mxu0 %v759
    %2313 = vmatprep.subr.bf16.mxu0 %v756
    %2314 = vmatpush1.bf16.msra.mxu0 %v755
    %2315 = vmatprep.subr.bf16.mxu0 %v752
    %2316 = vmatpush1.bf16.msra.mxu0 %v751
    %2317 = vmatprep.subr.bf16.mxu0 %v748
    %2318 = vmatpush1.bf16.msra.mxu0 %v747
    %2319 = vmatprep.subr.bf16.mxu0 %v744
    %2320 = vmatpush1.bf16.msra.mxu0 %v743
    %2321 = vmatprep.subr.bf16.mxu0 0
    %2322 = vmatpush2.bf16.msra.mxu0 0
    %2323 = vmatprep.subr.bf16.mxu0 0
    %2324 = vmatpush2.bf16.msra.mxu0 0
    %2325 = vmatprep.subr.bf16.mxu0 0
    %2326 = vmatpush2.bf16.msra.mxu0 0
    %2327 = vmatprep.subr.bf16.mxu0 0
    %2328 = vmatpush2.bf16.msra.mxu0 0
    %2329 = vmatprep.subr.bf16.mxu0 0
    %2330 = vmatpush2.bf16.msra.mxu0 0
    %2331 = vmatprep.subr.bf16.mxu0 0
    %2332 = vmatpush2.bf16.msra.mxu0 0
    %2333 = vmatprep.subr.bf16.mxu0 0
    %2334 = vmatpush2.bf16.msra.mxu0 0
    %2335 = vmatprep.subr.bf16.mxu0 0
    %2336 = vmatpush2.bf16.msra.mxu0 0
    %2337 = vmatprep.mubr.bf16.mxu0 0
    %2338 = vmatmul.mubr.bf16.gmra.mxu0 %v2263
    %v2339 = vpop.f32.mrf.mxu0
    %v2340 = vadd.f32 %v636, %v2339
    %v2341 = vpop.f32.mrf.mxu0
    %v2342 = vadd.f32 %v640, %v2341
    %v2343 = vpop.f32.mrf.mxu0
    %v2344 = vpop.f32.mrf.mxu0
    %2345 = vdwg.mxu0
    %v2346 = vld [vmem:[#allocation6] sm:$0xff]
    %vm2347 = vcmp.gt.f32.partialorder %v2346, 1.0
    %v2348 = vsel %vm2347, 1, 0
    %v2349 = vcvt.s32.f32 %v2348
    %v2350 = vld [vmem:[#allocation7] sm:$0xff]
    %v2351 = vld [vmem:[#allocation7 + $0x8] sm:$0xff]
    %v2352 = vld [vmem:[#allocation7 + $0x10] sm:$0xff]
    %v2353 = vld [vmem:[#allocation7 + $0x18] sm:$0xff]
    %v2354 = vmul.f32 %v899, %v2350
    %v2355 = vmul.f32 %v903, %v2351
    %v2356 = vmul.f32 %v907, %v2352
    %v2357 = vmul.f32 %v911, %v2353
    %v2358 = vmul.f32 %v924, %v2299
    %v2359 = vmul.f32 %v928, %v2301
    %v2360 = vmul.f32 %v932, %v2340
    %v2361 = vmul.f32 %v936, %v2342
    %v2362 = vadd.f32 %v2354, %v2358
    %v2363 = vadd.f32 %v2355, %v2359
    %v2364 = vadd.f32 %v2356, %v2360
    %v2365 = vadd.f32 %v2357, %v2361
    %2366 = vst [vmem:[#allocation7] sm:$0xff] %v2362
    %2367 = vst [vmem:[#allocation7 + $0x8] sm:$0xff] %v2363
    %2368 = vst [vmem:[#allocation7 + $0x10] sm:$0xff] %v2364
    %2369 = vst [vmem:[#allocation7 + $0x18] sm:$0xff] %v2365
    %v2370 = vadd.f32 %v2362, %v2363
    %v2371 = vadd.f32 %v2370, %v2364
    %v2372 = vadd.f32 %v2371, %v2365
    %v2373 = vsub.f32 %v2346, %v2349
    %v2374 = vmul.f32 %v2373, %v961
    %v2375 = vmul.f32 %v968, %v2372
    %v2376 = vadd.f32 %v2374, %v2375
    %2377 = vst [vmem:[#allocation6] sm:$0xff] %v2376
    %vm2378 = vcmp.gt.f32.partialorder %v2376, 1.0
    %v2379 = vsel %vm2378, 1, 0
    %v2380 = vcvt.s32.f32 %v2379
    %v2381 = vld [vmem:[#allocation8] sm:$0xff]
    %v2382 = vadd.f32 %v2381, %v2380
    %2383 = vst [vmem:[#allocation8] sm:$0xff] %v2382
    %s2384 = scalar_lea.vmem %s0, 96
    %v2385 = vld [vmem:[%s2384] sm:$0xff]
    %v2386 = vld [vmem:[%s2384 + $0x8] sm:$0xff]
    %v2387 = vunpack.c.l.bf16 %v2385
    %v2388 = vunpack.c.h.bf16 %v2385
    %v2389 = vunpack.c.l.bf16 %v2386
    %v2390 = vunpack.c.h.bf16 %v2386
    %v2391 = vld [vmem:[#allocation2] sm:$0xff]
    %vm2392 = vcmp.gt.f32.partialorder %v2391, 1.0
    %v2393 = vsel %vm2392, 1, 0
    %v2394 = vcvt.s32.f32 %v2393
    %v2395 = vld [vmem:[#allocation3] sm:$0xff]
    %v2396 = vld [vmem:[#allocation3 + $0x8] sm:$0xff]
    %v2397 = vld [vmem:[#allocation3 + $0x10] sm:$0xff]
    %v2398 = vld [vmem:[#allocation3 + $0x18] sm:$0xff]
    %v2399 = vmul.f32 %v193, %v2395
    %v2400 = vmul.f32 %v197, %v2396
    %v2401 = vmul.f32 %v201, %v2397
    %v2402 = vmul.f32 %v205, %v2398
    %v2403 = vmul.f32 %v218, %v2387
    %v2404 = vmul.f32 %v222, %v2388
    %v2405 = vmul.f32 %v226, %v2389
    %v2406 = vmul.f32 %v230, %v2390
    %v2407 = vadd.f32 %v2399, %v2403
    %v2408 = vadd.f32 %v2400, %v2404
    %v2409 = vadd.f32 %v2401, %v2405
    %v2410 = vadd.f32 %v2402, %v2406
    %2411 = vst [vmem:[#allocation3] sm:$0xff] %v2407
    %2412 = vst [vmem:[#allocation3 + $0x8] sm:$0xff] %v2408
    %2413 = vst [vmem:[#allocation3 + $0x10] sm:$0xff] %v2409
    %2414 = vst [vmem:[#allocation3 + $0x18] sm:$0xff] %v2410
    %v2415 = vadd.f32 %v2407, %v2408
    %v2416 = vadd.f32 %v2415, %v2409
    %v2417 = vadd.f32 %v2416, %v2410
    %v2418 = vsub.f32 %v2391, %v2394
    %v2419 = vmul.f32 %v2418, %v255
    %v2420 = vmul.f32 %v262, %v2417
    %v2421 = vadd.f32 %v2419, %v2420
    %2422 = vst [vmem:[#allocation2] sm:$0xff] %v2421
    %vm2423 = vcmp.gt.f32.partialorder %v2421, 1.0
    %v2424 = vsel %vm2423, 1, 0
    %v2425 = vcvt.s32.f32 %v2424
    %v2426 = vpack.c.bf16 %v2425, %v2425
    %2427 = vmatprep.subr.bf16.mxu0 %v417
    %2428 = vmatpush1.bf16.msra.mxu0 %v416
    %2429 = vmatprep.subr.bf16.mxu0 %v413
    %2430 = vmatpush1.bf16.msra.mxu0 %v412
    %2431 = vmatprep.subr.bf16.mxu0 %v409
    %2432 = vmatpush1.bf16.msra.mxu0 %v408
    %2433 = vmatprep.subr.bf16.mxu0 %v405
    %2434 = vmatpush1.bf16.msra.mxu0 %v404
    %2435 = vmatprep.subr.bf16.mxu0 %v401
    %2436 = vmatpush1.bf16.msra.mxu0 %v400
    %2437 = vmatprep.subr.bf16.mxu0 %v397
    %2438 = vmatpush1.bf16.msra.mxu0 %v396
    %2439 = vmatprep.subr.bf16.mxu0 %v393
    %2440 = vmatpush1.bf16.msra.mxu0 %v392
    %2441 = vmatprep.subr.bf16.mxu0 %v389
    %2442 = vmatpush1.bf16.msra.mxu0 %v388
    %2443 = vmatprep.subr.bf16.mxu0 0
    %2444 = vmatpush2.bf16.msra.mxu0 0
    %2445 = vmatprep.subr.bf16.mxu0 0
    %2446 = vmatpush2.bf16.msra.mxu0 0
    %2447 = vmatprep.subr.bf16.mxu0 0
    %2448 = vmatpush2.bf16.msra.mxu0 0
    %2449 = vmatprep.subr.bf16.mxu0 0
    %2450 = vmatpush2.bf16.msra.mxu0 0
    %2451 = vmatprep.subr.bf16.mxu0 0
    %2452 = vmatpush2.bf16.msra.mxu0 0
    %2453 = vmatprep.subr.bf16.mxu0 0
    %2454 = vmatpush2.bf16.msra.mxu0 0
    %2455 = vmatprep.subr.bf16.mxu0 0
    %2456 = vmatpush2.bf16.msra.mxu0 0
    %2457 = vmatprep.subr.bf16.mxu0 0
    %2458 = vmatpush2.bf16.msra.mxu0 0
    %2459 = vmatprep.mubr.bf16.mxu0 0
    %2460 = vmatmul.mubr.bf16.gmra.mxu0 %v2426
    %v2461 = vpop.f32.mrf.mxu0
    %v2462 = vadd.f32 %v275, %v2461
    %v2463 = vpop.f32.mrf.mxu0
    %v2464 = vadd.f32 %v279, %v2463
    %v2465 = vpop.f32.mrf.mxu0
    %v2466 = vpop.f32.mrf.mxu0
    %2467 = vdwg.mxu0
    %2468 = vmatprep.subr.bf16.mxu0 %v419
    %2469 = vmatpush1.bf16.msra.mxu0 %v418
    %2470 = vmatprep.subr.bf16.mxu0 %v415
    %2471 = vmatpush1.bf16.msra.mxu0 %v414
    %2472 = vmatprep.subr.bf16.mxu0 %v411
    %2473 = vmatpush1.bf16.msra.mxu0 %v410
    %2474 = vmatprep.subr.bf16.mxu0 %v407
    %2475 = vmatpush1.bf16.msra.mxu0 %v406
    %2476 = vmatprep.subr.bf16.mxu0 %v403
    %2477 = vmatpush1.bf16.msra.mxu0 %v402
    %2478 = vmatprep.subr.bf16.mxu0 %v399
    %2479 = vmatpush1.bf16.msra.mxu0 %v398
    %2480 = vmatprep.subr.bf16.mxu0 %v395
    %2481 = vmatpush1.bf16.msra.mxu0 %v394
    %2482 = vmatprep.subr.bf16.mxu0 %v391
    %2483 = vmatpush1.bf16.msra.mxu0 %v390
    %2484 = vmatprep.subr.bf16.mxu0 0
    %2485 = vmatpush2.bf16.msra.mxu0 0
    %2486 = vmatprep.subr.bf16.mxu0 0
    %2487 = vmatpush2.bf16.msra.mxu0 0
    %2488 = vmatprep.subr.bf16.mxu0 0
    %2489 = vmatpush2.bf16.msra.mxu0 0
    %2490 = vmatprep.subr.bf16.mxu0 0
    %2491 = vmatpush2.bf16.msra.mxu0 0
    %2492 = vmatprep.subr.bf16.mxu0 0
    %2493 = vmatpush2.bf16.msra.mxu0 0
    %2494 = vmatprep.subr.bf16.mxu0 0
    %2495 = vmatpush2.bf16.msra.mxu0 0
    %2496 = vmatprep.subr.bf16.mxu0 0
    %2497 = vmatpush2.bf16.msra.mxu0 0
    %2498 = vmatprep.subr.bf16.mxu0 0
    %2499 = vmatpush2.bf16.msra.mxu0 0
    %2500 = vmatprep.mubr.bf16.mxu0 0
    %2501 = vmatmul.mubr.bf16.gmra.mxu0 %v2426
    %v2502 = vpop.f32.mrf.mxu0
    %v2503 = vadd.f32 %v283, %v2502
    %v2504 = vpop.f32.mrf.mxu0
    %v2505 = vadd.f32 %v287, %v2504
    %v2506 = vpop.f32.mrf.mxu0
    %v2507 = vpop.f32.mrf.mxu0
    %2508 = vdwg.mxu0
    %v2509 = vld [vmem:[#allocation4] sm:$0xff]
    %vm2510 = vcmp.gt.f32.partialorder %v2509, 1.0
    %v2511 = vsel %vm2510, 1, 0
    %v2512 = vcvt.s32.f32 %v2511
    %v2513 = vld [vmem:[#allocation5] sm:$0xff]
    %v2514 = vld [vmem:[#allocation5 + $0x8] sm:$0xff]
    %v2515 = vld [vmem:[#allocation5 + $0x10] sm:$0xff]
    %v2516 = vld [vmem:[#allocation5 + $0x18] sm:$0xff]
    %v2517 = vmul.f32 %v546, %v2513
    %v2518 = vmul.f32 %v550, %v2514
    %v2519 = vmul.f32 %v554, %v2515
    %v2520 = vmul.f32 %v558, %v2516
    %v2521 = vmul.f32 %v571, %v2462
    %v2522 = vmul.f32 %v575, %v2464
    %v2523 = vmul.f32 %v579, %v2503
    %v2524 = vmul.f32 %v583, %v2505
    %v2525 = vadd.f32 %v2517, %v2521
    %v2526 = vadd.f32 %v2518, %v2522
    %v2527 = vadd.f32 %v2519, %v2523
    %v2528 = vadd.f32 %v2520, %v2524
    %2529 = vst [vmem:[#allocation5] sm:$0xff] %v2525
    %2530 = vst [vmem:[#allocation5 + $0x8] sm:$0xff] %v2526
    %2531 = vst [vmem:[#allocation5 + $0x10] sm:$0xff] %v2527
    %2532 = vst [vmem:[#allocation5 + $0x18] sm:$0xff] %v2528
    %v2533 = vadd.f32 %v2525, %v2526
    %v2534 = vadd.f32 %v2533, %v2527
    %v2535 = vadd.f32 %v2534, %v2528
    %v2536 = vsub.f32 %v2509, %v2512
    %v2537 = vmul.f32 %v2536, %v608
    %v2538 = vmul.f32 %v615, %v2535
    %v2539 = vadd.f32 %v2537, %v2538
    %2540 = vst [vmem:[#allocation4] sm:$0xff] %v2539
    %vm2541 = vcmp.gt.f32.partialorder %v2539, 1.0
    %v2542 = vsel %vm2541, 1, 0
    %v2543 = vcvt.s32.f32 %v2542
    %v2544 = vpack.c.bf16 %v2543, %v2543
    %2545 = vmatprep.subr.bf16.mxu0 %v770
    %2546 = vmatpush1.bf16.msra.mxu0 %v769
    %2547 = vmatprep.subr.bf16.mxu0 %v766
    %2548 = vmatpush1.bf16.msra.mxu0 %v765
    %2549 = vmatprep.subr.bf16.mxu0 %v762
    %2550 = vmatpush1.bf16.msra.mxu0 %v761
    %2551 = vmatprep.subr.bf16.mxu0 %v758
    %2552 = vmatpush1.bf16.msra.mxu0 %v757
    %2553 = vmatprep.subr.bf16.mxu0 %v754
    %2554 = vmatpush1.bf16.msra.mxu0 %v753
    %2555 = vmatprep.subr.bf16.mxu0 %v750
    %2556 = vmatpush1.bf16.msra.mxu0 %v749
    %2557 = vmatprep.subr.bf16.mxu0 %v746
    %2558 = vmatpush1.bf16.msra.mxu0 %v745
    %2559 = vmatprep.subr.bf16.mxu0 %v742
    %2560 = vmatpush1.bf16.msra.mxu0 %v741
    %2561 = vmatprep.subr.bf16.mxu0 0
    %2562 = vmatpush2.bf16.msra.mxu0 0
    %2563 = vmatprep.subr.bf16.mxu0 0
    %2564 = vmatpush2.bf16.msra.mxu0 0
    %2565 = vmatprep.subr.bf16.mxu0 0
    %2566 = vmatpush2.bf16.msra.mxu0 0
    %2567 = vmatprep.subr.bf16.mxu0 0
    %2568 = vmatpush2.bf16.msra.mxu0 0
    %2569 = vmatprep.subr.bf16.mxu0 0
    %2570 = vmatpush2.bf16.msra.mxu0 0
    %2571 = vmatprep.subr.bf16.mxu0 0
    %2572 = vmatpush2.bf16.msra.mxu0 0
    %2573 = vmatprep.subr.bf16.mxu0 0
    %2574 = vmatpush2.bf16.msra.mxu0 0
    %2575 = vmatprep.subr.bf16.mxu0 0
    %2576 = vmatpush2.bf16.msra.mxu0 0
    %2577 = vmatprep.mubr.bf16.mxu0 0
    %2578 = vmatmul.mubr.bf16.gmra.mxu0 %v2544
    %v2579 = vpop.f32.mrf.mxu0
    %v2580 = vadd.f32 %v628, %v2579
    %v2581 = vpop.f32.mrf.mxu0
    %v2582 = vadd.f32 %v632, %v2581
    %v2583 = vpop.f32.mrf.mxu0
    %v2584 = vpop.f32.mrf.mxu0
    %2585 = vdwg.mxu0
    %2586 = vmatprep.subr.bf16.mxu0 %v772
    %2587 = vmatpush1.bf16.msra.mxu0 %v771
    %2588 = vmatprep.subr.bf16.mxu0 %v768
    %2589 = vmatpush1.bf16.msra.mxu0 %v767
    %2590 = vmatprep.subr.bf16.mxu0 %v764
    %2591 = vmatpush1.bf16.msra.mxu0 %v763
    %2592 = vmatprep.subr.bf16.mxu0 %v760
    %2593 = vmatpush1.bf16.msra.mxu0 %v759
    %2594 = vmatprep.subr.bf16.mxu0 %v756
    %2595 = vmatpush1.bf16.msra.mxu0 %v755
    %2596 = vmatprep.subr.bf16.mxu0 %v752
    %2597 = vmatpush1.bf16.msra.mxu0 %v751
    %2598 = vmatprep.subr.bf16.mxu0 %v748
    %2599 = vmatpush1.bf16.msra.mxu0 %v747
    %2600 = vmatprep.subr.bf16.mxu0 %v744
    %2601 = vmatpush1.bf16.msra.mxu0 %v743
    %2602 = vmatprep.subr.bf16.mxu0 0
    %2603 = vmatpush2.bf16.msra.mxu0 0
    %2604 = vmatprep.subr.bf16.mxu0 0
    %2605 = vmatpush2.bf16.msra.mxu0 0
    %2606 = vmatprep.subr.bf16.mxu0 0
    %2607 = vmatpush2.bf16.msra.mxu0 0
    %2608 = vmatprep.subr.bf16.mxu0 0
    %2609 = vmatpush2.bf16.msra.mxu0 0
    %2610 = vmatprep.subr.bf16.mxu0 0
    %2611 = vmatpush2.bf16.msra.mxu0 0
    %2612 = vmatprep.subr.bf16.mxu0 0
    %2613 = vmatpush2.bf16.msra.mxu0 0
    %2614 = vmatprep.subr.bf16.mxu0 0
    %2615 = vmatpush2.bf16.msra.mxu0 0
    %2616 = vmatprep.subr.bf16.mxu0 0
    %2617 = vmatpush2.bf16.msra.mxu0 0
    %2618 = vmatprep.mubr.bf16.mxu0 0
    %2619 = vmatmul.mubr.bf16.gmra.mxu0 %v2544
    %v2620 = vpop.f32.mrf.mxu0
    %v2621 = vadd.f32 %v636, %v2620
    %v2622 = vpop.f32.mrf.mxu0
    %v2623 = vadd.f32 %v640, %v2622
    %v2624 = vpop.f32.mrf.mxu0
    %v2625 = vpop.f32.mrf.mxu0
    %2626 = vdwg.mxu0
    %v2627 = vld [vmem:[#allocation6] sm:$0xff]
    %vm2628 = vcmp.gt.f32.partialorder %v2627, 1.0
    %v2629 = vsel %vm2628, 1, 0
    %v2630 = vcvt.s32.f32 %v2629
    %v2631 = vld [vmem:[#allocation7] sm:$0xff]
    %v2632 = vld [vmem:[#allocation7 + $0x8] sm:$0xff]
    %v2633 = vld [vmem:[#allocation7 + $0x10] sm:$0xff]
    %v2634 = vld [vmem:[#allocation7 + $0x18] sm:$0xff]
    %v2635 = vmul.f32 %v899, %v2631
    %v2636 = vmul.f32 %v903, %v2632
    %v2637 = vmul.f32 %v907, %v2633
    %v2638 = vmul.f32 %v911, %v2634
    %v2639 = vmul.f32 %v924, %v2580
    %v2640 = vmul.f32 %v928, %v2582
    %v2641 = vmul.f32 %v932, %v2621
    %v2642 = vmul.f32 %v936, %v2623
    %v2643 = vadd.f32 %v2635, %v2639
    %v2644 = vadd.f32 %v2636, %v2640
    %v2645 = vadd.f32 %v2637, %v2641
    %v2646 = vadd.f32 %v2638, %v2642
    %2647 = vst [vmem:[#allocation7] sm:$0xff] %v2643
    %2648 = vst [vmem:[#allocation7 + $0x8] sm:$0xff] %v2644
    %2649 = vst [vmem:[#allocation7 + $0x10] sm:$0xff] %v2645
    %2650 = vst [vmem:[#allocation7 + $0x18] sm:$0xff] %v2646
    %v2651 = vadd.f32 %v2643, %v2644
    %v2652 = vadd.f32 %v2651, %v2645
    %v2653 = vadd.f32 %v2652, %v2646
    %v2654 = vsub.f32 %v2627, %v2630
    %v2655 = vmul.f32 %v2654, %v961
    %v2656 = vmul.f32 %v968, %v2653
    %v2657 = vadd.f32 %v2655, %v2656
    %2658 = vst [vmem:[#allocation6] sm:$0xff] %v2657
    %vm2659 = vcmp.gt.f32.partialorder %v2657, 1.0
    %v2660 = vsel %vm2659, 1, 0
    %v2661 = vcvt.s32.f32 %v2660
    %v2662 = vld [vmem:[#allocation8] sm:$0xff]
    %v2663 = vadd.f32 %v2662, %v2661
    %2664 = vst [vmem:[#allocation8] sm:$0xff] %v2663
    %s2665 = scalar_lea.vmem %s0, 112
    %v2666 = vld [vmem:[%s2665] sm:$0xff]
    %v2667 = vld [vmem:[%s2665 + $0x8] sm:$0xff]
    %v2668 = vunpack.c.l.bf16 %v2666
    %v2669 = vunpack.c.h.bf16 %v2666
    %v2670 = vunpack.c.l.bf16 %v2667
    %v2671 = vunpack.c.h.bf16 %v2667
    %v2672 = vld [vmem:[#allocation2] sm:$0xff]
    %vm2673 = vcmp.gt.f32.partialorder %v2672, 1.0
    %v2674 = vsel %vm2673, 1, 0
    %v2675 = vcvt.s32.f32 %v2674
    %v2676 = vld [vmem:[#allocation3] sm:$0xff]
    %v2677 = vld [vmem:[#allocation3 + $0x8] sm:$0xff]
    %v2678 = vld [vmem:[#allocation3 + $0x10] sm:$0xff]
    %v2679 = vld [vmem:[#allocation3 + $0x18] sm:$0xff]
    %v2680 = vmul.f32 %v193, %v2676
    %v2681 = vmul.f32 %v197, %v2677
    %v2682 = vmul.f32 %v201, %v2678
    %v2683 = vmul.f32 %v205, %v2679
    %v2684 = vmul.f32 %v218, %v2668
    %v2685 = vmul.f32 %v222, %v2669
    %v2686 = vmul.f32 %v226, %v2670
    %v2687 = vmul.f32 %v230, %v2671
    %v2688 = vadd.f32 %v2680, %v2684
    %v2689 = vadd.f32 %v2681, %v2685
    %v2690 = vadd.f32 %v2682, %v2686
    %v2691 = vadd.f32 %v2683, %v2687
    %2692 = vst [vmem:[#allocation3] sm:$0xff] %v2688
    %2693 = vst [vmem:[#allocation3 + $0x8] sm:$0xff] %v2689
    %2694 = vst [vmem:[#allocation3 + $0x10] sm:$0xff] %v2690
    %2695 = vst [vmem:[#allocation3 + $0x18] sm:$0xff] %v2691
    %v2696 = vadd.f32 %v2688, %v2689
    %v2697 = vadd.f32 %v2696, %v2690
    %v2698 = vadd.f32 %v2697, %v2691
    %v2699 = vsub.f32 %v2672, %v2675
    %v2700 = vmul.f32 %v2699, %v255
    %v2701 = vmul.f32 %v262, %v2698
    %v2702 = vadd.f32 %v2700, %v2701
    %2703 = vst [vmem:[#allocation2] sm:$0xff] %v2702
    %vm2704 = vcmp.gt.f32.partialorder %v2702, 1.0
    %v2705 = vsel %vm2704, 1, 0
    %v2706 = vcvt.s32.f32 %v2705
    %v2707 = vpack.c.bf16 %v2706, %v2706
    %2708 = vmatprep.subr.bf16.mxu0 %v417
    %2709 = vmatpush1.bf16.msra.mxu0 %v416
    %2710 = vmatprep.subr.bf16.mxu0 %v413
    %2711 = vmatpush1.bf16.msra.mxu0 %v412
    %2712 = vmatprep.subr.bf16.mxu0 %v409
    %2713 = vmatpush1.bf16.msra.mxu0 %v408
    %2714 = vmatprep.subr.bf16.mxu0 %v405
    %2715 = vmatpush1.bf16.msra.mxu0 %v404
    %2716 = vmatprep.subr.bf16.mxu0 %v401
    %2717 = vmatpush1.bf16.msra.mxu0 %v400
    %2718 = vmatprep.subr.bf16.mxu0 %v397
    %2719 = vmatpush1.bf16.msra.mxu0 %v396
    %2720 = vmatprep.subr.bf16.mxu0 %v393
    %2721 = vmatpush1.bf16.msra.mxu0 %v392
    %2722 = vmatprep.subr.bf16.mxu0 %v389
    %2723 = vmatpush1.bf16.msra.mxu0 %v388
    %2724 = vmatprep.subr.bf16.mxu0 0
    %2725 = vmatpush2.bf16.msra.mxu0 0
    %2726 = vmatprep.subr.bf16.mxu0 0
    %2727 = vmatpush2.bf16.msra.mxu0 0
    %2728 = vmatprep.subr.bf16.mxu0 0
    %2729 = vmatpush2.bf16.msra.mxu0 0
    %2730 = vmatprep.subr.bf16.mxu0 0
    %2731 = vmatpush2.bf16.msra.mxu0 0
    %2732 = vmatprep.subr.bf16.mxu0 0
    %2733 = vmatpush2.bf16.msra.mxu0 0
    %2734 = vmatprep.subr.bf16.mxu0 0
    %2735 = vmatpush2.bf16.msra.mxu0 0
    %2736 = vmatprep.subr.bf16.mxu0 0
    %2737 = vmatpush2.bf16.msra.mxu0 0
    %2738 = vmatprep.subr.bf16.mxu0 0
    %2739 = vmatpush2.bf16.msra.mxu0 0
    %2740 = vmatprep.mubr.bf16.mxu0 0
    %2741 = vmatmul.mubr.bf16.gmra.mxu0 %v2707
    %v2742 = vpop.f32.mrf.mxu0
    %v2743 = vadd.f32 %v275, %v2742
    %v2744 = vpop.f32.mrf.mxu0
    %v2745 = vadd.f32 %v279, %v2744
    %v2746 = vpop.f32.mrf.mxu0
    %v2747 = vpop.f32.mrf.mxu0
    %2748 = vdwg.mxu0
    %2749 = vmatprep.subr.bf16.mxu0 %v419
    %2750 = vmatpush1.bf16.msra.mxu0 %v418
    %2751 = vmatprep.subr.bf16.mxu0 %v415
    %2752 = vmatpush1.bf16.msra.mxu0 %v414
    %2753 = vmatprep.subr.bf16.mxu0 %v411
    %2754 = vmatpush1.bf16.msra.mxu0 %v410
    %2755 = vmatprep.subr.bf16.mxu0 %v407
    %2756 = vmatpush1.bf16.msra.mxu0 %v406
    %2757 = vmatprep.subr.bf16.mxu0 %v403
    %2758 = vmatpush1.bf16.msra.mxu0 %v402
    %2759 = vmatprep.subr.bf16.mxu0 %v399
    %2760 = vmatpush1.bf16.msra.mxu0 %v398
    %2761 = vmatprep.subr.bf16.mxu0 %v395
    %2762 = vmatpush1.bf16.msra.mxu0 %v394
    %2763 = vmatprep.subr.bf16.mxu0 %v391
    %2764 = vmatpush1.bf16.msra.mxu0 %v390
    %2765 = vmatprep.subr.bf16.mxu0 0
    %2766 = vmatpush2.bf16.msra.mxu0 0
    %2767 = vmatprep.subr.bf16.mxu0 0
    %2768 = vmatpush2.bf16.msra.mxu0 0
    %2769 = vmatprep.subr.bf16.mxu0 0
    %2770 = vmatpush2.bf16.msra.mxu0 0
    %2771 = vmatprep.subr.bf16.mxu0 0
    %2772 = vmatpush2.bf16.msra.mxu0 0
    %2773 = vmatprep.subr.bf16.mxu0 0
    %2774 = vmatpush2.bf16.msra.mxu0 0
    %2775 = vmatprep.subr.bf16.mxu0 0
    %2776 = vmatpush2.bf16.msra.mxu0 0
    %2777 = vmatprep.subr.bf16.mxu0 0
    %2778 = vmatpush2.bf16.msra.mxu0 0
    %2779 = vmatprep.subr.bf16.mxu0 0
    %2780 = vmatpush2.bf16.msra.mxu0 0
    %2781 = vmatprep.mubr.bf16.mxu0 0
    %2782 = vmatmul.mubr.bf16.gmra.mxu0 %v2707
    %v2783 = vpop.f32.mrf.mxu0
    %v2784 = vadd.f32 %v283, %v2783
    %v2785 = vpop.f32.mrf.mxu0
    %v2786 = vadd.f32 %v287, %v2785
    %v2787 = vpop.f32.mrf.mxu0
    %v2788 = vpop.f32.mrf.mxu0
    %2789 = vdwg.mxu0
    %v2790 = vld [vmem:[#allocation4] sm:$0xff]
    %vm2791 = vcmp.gt.f32.partialorder %v2790, 1.0
    %v2792 = vsel %vm2791, 1, 0
    %v2793 = vcvt.s32.f32 %v2792
    %v2794 = vld [vmem:[#allocation5] sm:$0xff]
    %v2795 = vld [vmem:[#allocation5 + $0x8] sm:$0xff]
    %v2796 = vld [vmem:[#allocation5 + $0x10] sm:$0xff]
    %v2797 = vld [vmem:[#allocation5 + $0x18] sm:$0xff]
    %v2798 = vmul.f32 %v546, %v2794
    %v2799 = vmul.f32 %v550, %v2795
    %v2800 = vmul.f32 %v554, %v2796
    %v2801 = vmul.f32 %v558, %v2797
    %v2802 = vmul.f32 %v571, %v2743
    %v2803 = vmul.f32 %v575, %v2745
    %v2804 = vmul.f32 %v579, %v2784
    %v2805 = vmul.f32 %v583, %v2786
    %v2806 = vadd.f32 %v2798, %v2802
    %v2807 = vadd.f32 %v2799, %v2803
    %v2808 = vadd.f32 %v2800, %v2804
    %v2809 = vadd.f32 %v2801, %v2805
    %2810 = vst [vmem:[#allocation5] sm:$0xff] %v2806
    %2811 = vst [vmem:[#allocation5 + $0x8] sm:$0xff] %v2807
    %2812 = vst [vmem:[#allocation5 + $0x10] sm:$0xff] %v2808
    %2813 = vst [vmem:[#allocation5 + $0x18] sm:$0xff] %v2809
    %v2814 = vadd.f32 %v2806, %v2807
    %v2815 = vadd.f32 %v2814, %v2808
    %v2816 = vadd.f32 %v2815, %v2809
    %v2817 = vsub.f32 %v2790, %v2793
    %v2818 = vmul.f32 %v2817, %v608
    %v2819 = vmul.f32 %v615, %v2816
    %v2820 = vadd.f32 %v2818, %v2819
    %2821 = vst [vmem:[#allocation4] sm:$0xff] %v2820
    %vm2822 = vcmp.gt.f32.partialorder %v2820, 1.0
    %v2823 = vsel %vm2822, 1, 0
    %v2824 = vcvt.s32.f32 %v2823
    %v2825 = vpack.c.bf16 %v2824, %v2824
    %2826 = vmatprep.subr.bf16.mxu0 %v770
    %2827 = vmatpush1.bf16.msra.mxu0 %v769
    %2828 = vmatprep.subr.bf16.mxu0 %v766
    %2829 = vmatpush1.bf16.msra.mxu0 %v765
    %2830 = vmatprep.subr.bf16.mxu0 %v762
    %2831 = vmatpush1.bf16.msra.mxu0 %v761
    %2832 = vmatprep.subr.bf16.mxu0 %v758
    %2833 = vmatpush1.bf16.msra.mxu0 %v757
    %2834 = vmatprep.subr.bf16.mxu0 %v754
    %2835 = vmatpush1.bf16.msra.mxu0 %v753
    %2836 = vmatprep.subr.bf16.mxu0 %v750
    %2837 = vmatpush1.bf16.msra.mxu0 %v749
    %2838 = vmatprep.subr.bf16.mxu0 %v746
    %2839 = vmatpush1.bf16.msra.mxu0 %v745
    %2840 = vmatprep.subr.bf16.mxu0 %v742
    %2841 = vmatpush1.bf16.msra.mxu0 %v741
    %2842 = vmatprep.subr.bf16.mxu0 0
    %2843 = vmatpush2.bf16.msra.mxu0 0
    %2844 = vmatprep.subr.bf16.mxu0 0
    %2845 = vmatpush2.bf16.msra.mxu0 0
    %2846 = vmatprep.subr.bf16.mxu0 0
    %2847 = vmatpush2.bf16.msra.mxu0 0
    %2848 = vmatprep.subr.bf16.mxu0 0
    %2849 = vmatpush2.bf16.msra.mxu0 0
    %2850 = vmatprep.subr.bf16.mxu0 0
    %2851 = vmatpush2.bf16.msra.mxu0 0
    %2852 = vmatprep.subr.bf16.mxu0 0
    %2853 = vmatpush2.bf16.msra.mxu0 0
    %2854 = vmatprep.subr.bf16.mxu0 0
    %2855 = vmatpush2.bf16.msra.mxu0 0
    %2856 = vmatprep.subr.bf16.mxu0 0
    %2857 = vmatpush2.bf16.msra.mxu0 0
    %2858 = vmatprep.mubr.bf16.mxu0 0
    %2859 = vmatmul.mubr.bf16.gmra.mxu0 %v2825
    %v2860 = vpop.f32.mrf.mxu0
    %v2861 = vadd.f32 %v628, %v2860
    %v2862 = vpop.f32.mrf.mxu0
    %v2863 = vadd.f32 %v632, %v2862
    %v2864 = vpop.f32.mrf.mxu0
    %v2865 = vpop.f32.mrf.mxu0
    %2866 = vdwg.mxu0
    %2867 = vmatprep.subr.bf16.mxu0 %v772
    %2868 = vmatpush1.bf16.msra.mxu0 %v771
    %2869 = vmatprep.subr.bf16.mxu0 %v768
    %2870 = vmatpush1.bf16.msra.mxu0 %v767
    %2871 = vmatprep.subr.bf16.mxu0 %v764
    %2872 = vmatpush1.bf16.msra.mxu0 %v763
    %2873 = vmatprep.subr.bf16.mxu0 %v760
    %2874 = vmatpush1.bf16.msra.mxu0 %v759
    %2875 = vmatprep.subr.bf16.mxu0 %v756
    %2876 = vmatpush1.bf16.msra.mxu0 %v755
    %2877 = vmatprep.subr.bf16.mxu0 %v752
    %2878 = vmatpush1.bf16.msra.mxu0 %v751
    %2879 = vmatprep.subr.bf16.mxu0 %v748
    %2880 = vmatpush1.bf16.msra.mxu0 %v747
    %2881 = vmatprep.subr.bf16.mxu0 %v744
    %2882 = vmatpush1.bf16.msra.mxu0 %v743
    %2883 = vmatprep.subr.bf16.mxu0 0
    %2884 = vmatpush2.bf16.msra.mxu0 0
    %2885 = vmatprep.subr.bf16.mxu0 0
    %2886 = vmatpush2.bf16.msra.mxu0 0
    %2887 = vmatprep.subr.bf16.mxu0 0
    %2888 = vmatpush2.bf16.msra.mxu0 0
    %2889 = vmatprep.subr.bf16.mxu0 0
    %2890 = vmatpush2.bf16.msra.mxu0 0
    %2891 = vmatprep.subr.bf16.mxu0 0
    %2892 = vmatpush2.bf16.msra.mxu0 0
    %2893 = vmatprep.subr.bf16.mxu0 0
    %2894 = vmatpush2.bf16.msra.mxu0 0
    %2895 = vmatprep.subr.bf16.mxu0 0
    %2896 = vmatpush2.bf16.msra.mxu0 0
    %2897 = vmatprep.subr.bf16.mxu0 0
    %2898 = vmatpush2.bf16.msra.mxu0 0
    %2899 = vmatprep.mubr.bf16.mxu0 0
    %2900 = vmatmul.mubr.bf16.gmra.mxu0 %v2825
    %v2901 = vpop.f32.mrf.mxu0
    %v2902 = vadd.f32 %v636, %v2901
    %v2903 = vpop.f32.mrf.mxu0
    %v2904 = vadd.f32 %v640, %v2903
    %v2905 = vpop.f32.mrf.mxu0
    %v2906 = vpop.f32.mrf.mxu0
    %2907 = vdwg.mxu0
    %v2908 = vld [vmem:[#allocation6] sm:$0xff]
    %vm2909 = vcmp.gt.f32.partialorder %v2908, 1.0
    %v2910 = vsel %vm2909, 1, 0
    %v2911 = vcvt.s32.f32 %v2910
    %v2912 = vld [vmem:[#allocation7] sm:$0xff]
    %v2913 = vld [vmem:[#allocation7 + $0x8] sm:$0xff]
    %v2914 = vld [vmem:[#allocation7 + $0x10] sm:$0xff]
    %v2915 = vld [vmem:[#allocation7 + $0x18] sm:$0xff]
    %v2916 = vmul.f32 %v899, %v2912
    %v2917 = vmul.f32 %v903, %v2913
    %v2918 = vmul.f32 %v907, %v2914
    %v2919 = vmul.f32 %v911, %v2915
    %v2920 = vmul.f32 %v924, %v2861
    %v2921 = vmul.f32 %v928, %v2863
    %v2922 = vmul.f32 %v932, %v2902
    %v2923 = vmul.f32 %v936, %v2904
    %v2924 = vadd.f32 %v2916, %v2920
    %v2925 = vadd.f32 %v2917, %v2921
    %v2926 = vadd.f32 %v2918, %v2922
    %v2927 = vadd.f32 %v2919, %v2923
    %2928 = vst [vmem:[#allocation7] sm:$0xff] %v2924
    %2929 = vst [vmem:[#allocation7 + $0x8] sm:$0xff] %v2925
    %2930 = vst [vmem:[#allocation7 + $0x10] sm:$0xff] %v2926
    %2931 = vst [vmem:[#allocation7 + $0x18] sm:$0xff] %v2927
    %v2932 = vadd.f32 %v2924, %v2925
    %v2933 = vadd.f32 %v2932, %v2926
    %v2934 = vadd.f32 %v2933, %v2927
    %v2935 = vsub.f32 %v2908, %v2911
    %v2936 = vmul.f32 %v2935, %v961
    %v2937 = vmul.f32 %v968, %v2934
    %v2938 = vadd.f32 %v2936, %v2937
    %2939 = vst [vmem:[#allocation6] sm:$0xff] %v2938
    %vm2940 = vcmp.gt.f32.partialorder %v2938, 1.0
    %v2941 = vsel %vm2940, 1, 0
    %v2942 = vcvt.s32.f32 %v2941
    %v2943 = vld [vmem:[#allocation8] sm:$0xff]
    %v2944 = vadd.f32 %v2943, %v2942
    %2945 = vst [vmem:[#allocation8] sm:$0xff] %v2944
    // Predicated region
    $region94: #{dense_test_4layer_forward.1} parent=1 // pred_check
      %p2946 = pneg %p73
    $region95: #{dense_test_4layer_forward.1} parent=1 // pred_check_branch
      %2948 = sbr.rel (%p2946) target = $region97
    $region96: #{dense_test_4layer_forward.1} parent=1 // pred_region
      %v2949 = vld [vmem:[#allocation8] sm:$0xff]
      %v2950 = vpack.c.bf16 %v2949, %v2949
      %v2951 = vld [vmem:[%s17] sm:$0xf]
      %v2952 = vld [vmem:[%s17 + $0x4] sm:$0xf]
      %v2953 = vld [vmem:[%s17 + $0x8] sm:$0xf]
      %v2954 = vld [vmem:[%s17 + $0xc] sm:$0xf]
      %v2955 = vld [vmem:[%s17 + $0x10] sm:$0xf]
      %v2956 = vld [vmem:[%s17 + $0x14] sm:$0xf]
      %v2957 = vld [vmem:[%s17 + $0x18] sm:$0xf]
      %v2958 = vld [vmem:[%s17 + $0x1c] sm:$0xf]
      %v2959 = vld [vmem:[%s17 + $0x20] sm:$0xf]
      %v2960 = vld [vmem:[%s17 + $0x24] sm:$0xf]
      %v2961 = vld [vmem:[%s17 + $0x28] sm:$0xf]
      %v2962 = vld [vmem:[%s17 + $0x2c] sm:$0xf]
      %v2963 = vld [vmem:[%s17 + $0x30] sm:$0xf]
      %v2964 = vld [vmem:[%s17 + $0x34] sm:$0xf]
      %v2965 = vld [vmem:[%s17 + $0x38] sm:$0xf]
      %v2966 = vld [vmem:[%s17 + $0x3c] sm:$0xf]
      %v2967 = vld [vmem:[%s18] sm:$0x1]
      %v2969 = vlaneseq
      %v2970 = vshrl.u32 %v2969, 7
      %v2971 = vsub.s32 0, %v2970
      %v2972 = vrot.slane %v2967, %v2971
      %v2990 = vunpack.c.l.b16 %v2951
      %v2991 = vunpack.c.l.b16 %v2952
      %v2992 = vunpack.c.l.b16 %v2953
      %v2993 = vunpack.c.l.b16 %v2954
      %v2994 = vunpack.c.l.b16 %v2955
      %v2995 = vunpack.c.l.b16 %v2956
      %v2996 = vunpack.c.l.b16 %v2957
      %v2997 = vunpack.c.l.b16 %v2958
      %v2998 = vunpack.c.l.b16 %v2959
      %v2999 = vunpack.c.l.b16 %v2960
      %v3000 = vunpack.c.l.b16 %v2961
      %v3001 = vunpack.c.l.b16 %v2962
      %v3002 = vunpack.c.l.b16 %v2963
      %v3003 = vunpack.c.l.b16 %v2964
      %v3004 = vunpack.c.l.b16 %v2965
      %v3005 = vunpack.c.l.b16 %v2966
      %v3006 = vpack.c.b16 %v2991, %v2990
      %v3007 = vpack.c.b16 %v2993, %v2992
      %v3008 = vpack.c.b16 %v2995, %v2994
      %v3009 = vpack.c.b16 %v2997, %v2996
      %v3010 = vpack.c.b16 %v2999, %v2998
      %v3011 = vpack.c.b16 %v3001, %v3000
      %v3012 = vpack.c.b16 %v3003, %v3002
      %v3013 = vpack.c.b16 %v3005, %v3004
      %3022 = vmatprep.subr.bf16.mxu0 0
      %3023 = vmatpush1.bf16.msra.mxu0 %v3013
      %3024 = vmatprep.subr.bf16.mxu0 0
      %3025 = vmatpush1.bf16.msra.mxu0 %v3012
      %3026 = vmatprep.subr.bf16.mxu0 0
      %3027 = vmatpush1.bf16.msra.mxu0 %v3011
      %3028 = vmatprep.subr.bf16.mxu0 0
      %3029 = vmatpush1.bf16.msra.mxu0 %v3010
      %3030 = vmatprep.subr.bf16.mxu0 0
      %3031 = vmatpush1.bf16.msra.mxu0 %v3009
      %3032 = vmatprep.subr.bf16.mxu0 0
      %3033 = vmatpush1.bf16.msra.mxu0 %v3008
      %3034 = vmatprep.subr.bf16.mxu0 0
      %3035 = vmatpush1.bf16.msra.mxu0 %v3007
      %3036 = vmatprep.subr.bf16.mxu0 0
      %3037 = vmatpush1.bf16.msra.mxu0 %v3006
      %3038 = vmatprep.subr.bf16.mxu0 0
      %3039 = vmatpush2.bf16.msra.mxu0 0
      %3040 = vmatprep.subr.bf16.mxu0 0
      %3041 = vmatpush2.bf16.msra.mxu0 0
      %3042 = vmatprep.subr.bf16.mxu0 0
      %3043 = vmatpush2.bf16.msra.mxu0 0
      %3044 = vmatprep.subr.bf16.mxu0 0
      %3045 = vmatpush2.bf16.msra.mxu0 0
      %3046 = vmatprep.subr.bf16.mxu0 0
      %3047 = vmatpush2.bf16.msra.mxu0 0
      %3048 = vmatprep.subr.bf16.mxu0 0
      %3049 = vmatpush2.bf16.msra.mxu0 0
      %3050 = vmatprep.subr.bf16.mxu0 0
      %3051 = vmatpush2.bf16.msra.mxu0 0
      %3052 = vmatprep.subr.bf16.mxu0 0
      %3053 = vmatpush2.bf16.msra.mxu0 0
      %3054 = vmatprep.mubr.bf16.mxu0 0
      %3055 = vmatmul.mubr.bf16.gmra.mxu0 %v2950
      %v3056 = vpop.f32.mrf.mxu0
      %v3057 = vadd.f32 %v2972, %v3056
      %v3058 = vpop.f32.mrf.mxu0
      %v3059 = vpop.f32.mrf.mxu0
      %v3060 = vpop.f32.mrf.mxu0
      %3061 = vdwg.mxu0
      %3062 = vst [vmem:[#allocation9] sm:$0xff] %v3057
    $region97: #{dense_test_4layer_forward.1} parent=1 // pred_fallthru
      _
    // Predicated region
    $region98: #{dense_test_4layer_forward.1} parent=1 // pred_check
      _
    $region99: #{dense_test_4layer_forward.1} parent=1 // pred_check_branch
      %3064 = sbr.rel (0) target = $region101
    $region100: #{dense_test_4layer_forward.1} parent=1 // pred_region
      %s3066 = ssub.s32 128, 128
      %3067 = vsyncadd [#allocation10], %s3066
      %s3069 = sshll.u32 [#allocation9], 4
      %s3070 = int_to_ptr.vmem [resolvable:$true] %s3069
      %3072 = dma.vmem_to_hbm [thread:$0]  %s3070, 128, %s22, [#allocation10]
    $region101: #{dense_test_4layer_forward.1} parent=1 // pred_fallthru
      _
    // Predicated region
    $region102: #{dense_test_4layer_forward.1} parent=1 // pred_check
      _
    $region103: #{dense_test_4layer_forward.1} parent=1 // pred_check_branch
      %3074 = sbr.rel (0) target = $region105
    $region104: #{dense_test_4layer_forward.1} parent=1 // pred_region
      %3075 = dma.done [#allocation10], 128
    $region105: #{dense_test_4layer_forward.1} parent=1 // pred_fallthru
      _
    %3076 = vsyncpa [#allocation10], 1

</llo_original>
